<compile_context>
chip_gen: v7x
topology: tpu7x:2x2x1
jax: 0.10.0
libtpu: 0.0.40
codegen_flags: <defaults>
</compile_context>

<pallas_src>
import functools

import jax
import jax.numpy as jnp
from jax.experimental import pallas as pl
from jax.experimental.pallas import tpu as pltpu

BN_EPS = 1e-5
LANE = 128
SUBLANE_BF16 = 16
MAX_FUSED_BATCH = 1024  # whole-batch (BN-correct) fused path; see TODO above.


def _round_up(n, m):
    return ((n + m - 1) // m) * m


# ----------------------------------------------------------------------------
# Kernel
# ----------------------------------------------------------------------------
def mlp_phi_kernel(x_ref, w1_ref, w_ref, w5_ref, p_ref,
                   l_ref, out_ref, l_vmem, l_sem):
    """Fused L1..L5 + BN1..BN4 (training mode) forward.

    x_ref  : (B, din_p)        f32  VMEM
    w1_ref : (din_p, dh)       bf16 VMEM
    w_ref  : (3*dh, dh)        bf16 VMEM   -- w2 | w3 | w4 stacked on rows
    w5_ref : (dh, dout_p)      bf16 VMEM   -- only the needed output lanes
    p_ref  : (9, dh)           f32  VMEM   -- rows 0-3 gamma, 4-7 beta, 8 L5 bias
    l_ref  : (B, dh)           f32  ANY    -- pre-BN L4 output (manual DMA)
    out_ref: (B, dout_p)       f32  VMEM
    l_vmem : (B, dh)           f32  VMEM scratch (l staging buffer)
    l_sem  : DMA semaphore
    """
    dh = w_ref.shape[1]
    dout = out_ref.shape[1]

    def bn_relu_bf16(h, idx):
        # BatchNorm1d (training mode, biased var) + ReLU + bf16 cast, f32 math.
        gamma = p_ref[idx:idx + 1, :]          # (1, dh)
        beta = p_ref[4 + idx:5 + idx, :]       # (1, dh)
        # Single-pass stats: var = E[h^2] - mean^2 (clamped; benign here).
        mean = jnp.mean(h, axis=0, keepdims=True)
        meansq = jnp.mean(h * h, axis=0, keepdims=True)
        var = jnp.maximum(meansq - mean * mean, 0.0)
        scale = jax.lax.rsqrt(var + BN_EPS) * gamma     # EUP rsqrt
        shift = beta - mean * scale
        # One fused normalize + relu + cast pass over h.
        return jnp.maximum(h * scale + shift, 0.0).astype(jnp.bfloat16)

    x = x_ref[...].astype(jnp.bfloat16)

    h = jnp.dot(x, w1_ref[...], preferred_element_type=jnp.float32)
    h = bn_relu_bf16(h, 0)

    h = jnp.dot(h, w_ref[0:dh, :], preferred_element_type=jnp.float32)
    h = bn_relu_bf16(h, 1)

    h = jnp.dot(h, w_ref[dh:2 * dh, :], preferred_element_type=jnp.float32)
    h = bn_relu_bf16(h, 2)

    # l = L4(x): returned pre-BN, exactly as in the PyTorch forward.
    l = jnp.dot(h, w_ref[2 * dh:3 * dh, :], preferred_element_type=jnp.float32)

    # Overlap the l writeback with BN4 + L5 compute.
    l_vmem[...] = l
    l_copy = pltpu.make_async_copy(l_vmem, l_ref, l_sem)
    l_copy.start()

    h = bn_relu_bf16(l, 3)

    out_ref[...] = (
        jnp.dot(h, w5_ref[...], preferred_element_type=jnp.float32)
        + p_ref[8:9, 0:dout]                            # L5 bias
    )

    l_copy.wait()


# ----------------------------------------------------------------------------
# Parameter packing (done once, outside the hot path)
# ----------------------------------------------------------------------------
def pack_params(params, n_inputs, n_outputs):
    """Pad + pack raw f32 params into bf16 weight blocks and one f32 BN slab."""
    d_hidden = [params[f"w{i}"].shape[1] for i in range(1, 5)]  # 300..303
    dh = max(_round_up(d, LANE) for d in d_hidden)              # 384
    din_p = _round_up(n_inputs, SUBLANE_BF16)                   # NOT lane-padded
    dout_p = _round_up(n_outputs, LANE)

    def pad2(a, rows, cols):
        return jnp.pad(a, ((0, rows - a.shape[0]), (0, cols - a.shape[1])))

    w1 = pad2(params["w1"], din_p, dh).astype(jnp.bfloat16)
    w234 = jnp.concatenate(
        [pad2(params["w2"], dh, dh),
         pad2(params["w3"], dh, dh),
         pad2(params["w4"], dh, dh)], axis=0).astype(jnp.bfloat16)
    w5 = pad2(params["w5"], dh, dout_p).astype(jnp.bfloat16)   # own small block

    # BN/bias slab (f32): rows 0-3 = gammas, 4-7 = betas, 8 = L5 bias.
    rows = [pad2(params[f"g{i}"], 1, dh) for i in range(1, 5)]
    rows += [pad2(params[f"b{i}"], 1, dh) for i in range(1, 5)]
    rows += [pad2(params["b5"], 1, dh)]
    p_slab = jnp.concatenate(rows, axis=0)

    meta = dict(din_p=din_p, dh=dh, dout_p=dout_p,
                n_in=n_inputs, n_out=n_outputs,
                d_l=params["w4"].shape[1])   # true width of `l` (derived)
    return (w1, w234, w5, p_slab), meta


# ----------------------------------------------------------------------------
# Forward wrapper
# ----------------------------------------------------------------------------
def mlp_phi_forward(x, w1, w234, w5, p_slab, *, meta):
    B, n_in = x.shape
    assert n_in == meta["n_in"]
    assert B <= MAX_FUSED_BATCH, (
        "whole-batch fused path (training-mode BN) capped at "
        f"{MAX_FUSED_BATCH} rows; see TODO(synk) for the batch-grid design")

    din_p, dh, dout_p = meta["din_p"], meta["dh"], meta["dout_p"]
    if din_p != n_in:
        x = jnp.pad(x, ((0, 0), (0, din_p - n_in)))   # tiny sublane pad only

    flops = 2 * B * (din_p * dh + 3 * dh * dh + dh * dout_p)
    bytes_accessed = (x.size * 4 + w1.size * 2 + w234.size * 2 + w5.size * 2
                      + p_slab.size * 4 + B * dh * 4 + B * dout_p * 4)
    transcendentals = 4 * dh   # rsqrt per BN feature column

    vmem_spec = pl.BlockSpec(memory_space=pltpu.MemorySpace.VMEM)

    l_p, out_p = pl.pallas_call(
        mlp_phi_kernel,
        out_shape=(
            jax.ShapeDtypeStruct((B, dh), jnp.float32),      # padded l (pre-BN L4)
            jax.ShapeDtypeStruct((B, dout_p), jnp.float32),  # padded final output
        ),
        in_specs=[vmem_spec, vmem_spec, vmem_spec, vmem_spec, vmem_spec],
        out_specs=(
            pl.BlockSpec(memory_space=pl.ANY),   # l: manual async writeback
            vmem_spec,
        ),
        scratch_shapes=[
            pltpu.VMEM((B, dh), jnp.float32),    # l staging buffer
            pltpu.SemaphoreType.DMA(()),
        ],
        compiler_params=pltpu.CompilerParams(
            vmem_limit_bytes=32 * 1024 * 1024),  # safe on v5e / v6e / v7x
        cost_estimate=pl.CostEstimate(
            flops=flops,
            transcendentals=transcendentals,
            bytes_accessed=bytes_accessed),
    )(x, w1, w234, w5, p_slab)

    # Slice the true (unpadded) widths back off outside the kernel.
    return l_p[:, :meta["d_l"]], out_p[:, :meta["n_out"]]


# ----------------------------------------------------------------------------
# Init (matches the PyTorch module's initialization)
# ----------------------------------------------------------------------------
def xavier_uniform(key, fan_out, fan_in):
    bound = jnp.sqrt(6.0 / (fan_in + fan_out))
    return jax.random.uniform(key, (fan_out, fan_in), jnp.float32, -bound, bound)


def init_params(key, n_inputs, n_outputs):
    dims = [n_inputs, 300, 301, 302, 303, n_outputs]
    keys = jax.random.split(key, 5)
    params = {}
    for i in range(5):
        fan_in, fan_out = dims[i], dims[i + 1]
        w = xavier_uniform(keys[i], fan_out, fan_in)      # torch layout (out, in)
        params[f"w{i + 1}"] = jnp.transpose(w)            # kernel layout (in, out)
    for i, c in enumerate([300, 301, 302, 303], start=1):
        params[f"g{i}"] = jnp.ones((1, c), jnp.float32)   # bn weight (init.ones_)
        params[f"b{i}"] = jnp.zeros((1, c), jnp.float32)  # bn bias (default zeros)
    params["b5"] = jnp.zeros((1, n_outputs), jnp.float32) # L5 bias (init.zeros_)
    return params


# ----------------------------------------------------------------------------
# Pure-JAX f32 reference (PyTorch semantics, training-mode BN)
# ----------------------------------------------------------------------------
def reference_forward(x, params):
    def bn(h, g, b):
        mean = jnp.mean(h, axis=0, keepdims=True)
        var = jnp.mean((h - mean) ** 2, axis=0, keepdims=True)
        return (h - mean) * jax.lax.rsqrt(var + BN_EPS) * g + b

    h = x @ params["w1"]
    h = jax.nn.relu(bn(h, params["g1"], params["b1"]))
    h = h @ params["w2"]
    h = jax.nn.relu(bn(h, params["g2"], params["b2"]))
    h = h @ params["w3"]
    h = jax.nn.relu(bn(h, params["g3"], params["b3"]))
    l = h @ params["w4"]
    h = jax.nn.relu(bn(l, params["g4"], params["b4"]))
    out = h @ params["w5"] + params["b5"]
    return l, out


if __name__ == "__main__":
    n_inputs, n_outputs, batch = 32, 10, 64

    key = jax.random.PRNGKey(0)
    k_param, k_x = jax.random.split(key)
    params = init_params(k_param, n_inputs, n_outputs)
    x = jax.random.normal(k_x, (batch, n_inputs), jnp.float32)

    packed, meta = pack_params(params, n_inputs, n_outputs)
    fwd = jax.jit(functools.partial(mlp_phi_forward, meta=meta))

    l, out = fwd(x, *packed)
    jax.block_until_ready((l, out))

    assert l.shape == (batch, 303)
    assert out.shape == (batch, n_outputs)

    # Loose sanity check vs. the f32 reference (bf16 weights => ~1e-2 error).
    l_ref, out_r = reference_forward(x, params)
    err_l = float(jnp.max(jnp.abs(l - l_ref)))
    err_o = float(jnp.max(jnp.abs(out - out_r)))
    assert err_l < 0.25 and err_o < 0.25, (err_l, err_o)

    print("KERNEL_OK")
</pallas_src>

<mosaic_0001>
module attributes {stable_mosaic.version = 11 : i64} {
  func.func @mlp_phi_kernel(%arg0: memref<64x32xf32, #tpu.memory_space<vmem>>, %arg1: memref<32x384xbf16, #tpu.memory_space<vmem>>, %arg2: memref<1152x384xbf16, #tpu.memory_space<vmem>>, %arg3: memref<384x128xbf16, #tpu.memory_space<vmem>>, %arg4: memref<9x384xf32, #tpu.memory_space<vmem>>, %arg5: memref<64x384xf32, #tpu.memory_space<any>>, %arg6: memref<64x128xf32, #tpu.memory_space<vmem>>, %arg7: memref<64x384xf32, #tpu.memory_space<vmem>>, %arg8: memref<!tpu.dma_semaphore, #tpu.memory_space<semaphore_mem>>) attributes {dimension_semantics = [], scalar_prefetch = 0 : i64, scratch_operands = 2 : i64, tpu.core_type = #tpu.core_type<tc>} {
    %c0 = arith.constant 0 : index
    %c0_0 = arith.constant 0 : index
    %0 = vector.load %arg0[%c0, %c0_0] : memref<64x32xf32, #tpu.memory_space<vmem>>, vector<64x32xf32>
    %1 = arith.truncf %0 : vector<64x32xf32> to vector<64x32xbf16>
    %c0_1 = arith.constant 0 : index
    %c0_2 = arith.constant 0 : index
    %2 = vector.load %arg1[%c0_1, %c0_2] : memref<32x384xbf16, #tpu.memory_space<vmem>>, vector<32x384xbf16>
    %cst = arith.constant dense<0.000000e+00> : vector<64x384xf32>
    %3 = tpu.matmul %1, %2, %cst {dimension_numbers = #tpu.dot_dimension_numbers<[1], [0], [0], [1], [0, 0, 1, 1], [], []>} : vector<64x32xbf16>, vector<32x384xbf16>, vector<64x384xf32> -> vector<64x384xf32>
    %c0_3 = arith.constant 0 : index
    %c0_4 = arith.constant 0 : index
    %4 = vector.load %arg4[%c0_3, %c0_4] : memref<9x384xf32, #tpu.memory_space<vmem>>, vector<1x384xf32>
    %c4 = arith.constant 4 : index
    %c0_5 = arith.constant 0 : index
    %5 = vector.load %arg4[%c4, %c0_5] : memref<9x384xf32, #tpu.memory_space<vmem>>, vector<1x384xf32>
    %cst_6 = arith.constant dense<0.000000e+00> : vector<384xf32>
    %6 = vector.multi_reduction <add>, %3, %cst_6 [0] : vector<64x384xf32> to vector<384xf32>
    %7 = vector.shape_cast %6 : vector<384xf32> to vector<1x384xf32>
    %cst_7 = arith.constant 6.400000e+01 : f32
    %8 = vector.broadcast %cst_7 : f32 to vector<1x384xf32>
    %9 = arith.divf %7, %8 : vector<1x384xf32>
    %10 = arith.mulf %3, %3 : vector<64x384xf32>
    %cst_8 = arith.constant dense<0.000000e+00> : vector<384xf32>
    %11 = vector.multi_reduction <add>, %10, %cst_8 [0] : vector<64x384xf32> to vector<384xf32>
    %12 = vector.shape_cast %11 : vector<384xf32> to vector<1x384xf32>
    %cst_9 = arith.constant 6.400000e+01 : f32
    %13 = vector.broadcast %cst_9 : f32 to vector<1x384xf32>
    %14 = arith.divf %12, %13 : vector<1x384xf32>
    %15 = arith.mulf %9, %9 : vector<1x384xf32>
    %16 = arith.subf %14, %15 : vector<1x384xf32>
    %cst_10 = arith.constant 0.000000e+00 : f32
    %17 = vector.broadcast %cst_10 : f32 to vector<1x384xf32>
    %18 = arith.maximumf %16, %17 : vector<1x384xf32>
    %cst_11 = arith.constant 9.99999974E-6 : f32
    %19 = vector.broadcast %cst_11 : f32 to vector<1x384xf32>
    %20 = arith.addf %18, %19 : vector<1x384xf32>
    %21 = math.rsqrt %20 : vector<1x384xf32>
    %22 = arith.mulf %21, %4 : vector<1x384xf32>
    %23 = arith.mulf %9, %22 : vector<1x384xf32>
    %24 = arith.subf %5, %23 : vector<1x384xf32>
    %25 = vector.broadcast %22 : vector<1x384xf32> to vector<64x384xf32>
    %26 = arith.mulf %3, %25 : vector<64x384xf32>
    %27 = vector.broadcast %24 : vector<1x384xf32> to vector<64x384xf32>
    %28 = arith.addf %26, %27 : vector<64x384xf32>
    %cst_12 = arith.constant 0.000000e+00 : f32
    %29 = vector.broadcast %cst_12 : f32 to vector<64x384xf32>
    %30 = arith.maximumf %28, %29 : vector<64x384xf32>
    %31 = arith.truncf %30 : vector<64x384xf32> to vector<64x384xbf16>
    %c0_13 = arith.constant 0 : index
    %c0_14 = arith.constant 0 : index
    %32 = vector.load %arg2[%c0_13, %c0_14] : memref<1152x384xbf16, #tpu.memory_space<vmem>>, vector<384x384xbf16>
    %cst_15 = arith.constant dense<0.000000e+00> : vector<64x384xf32>
    %33 = tpu.matmul %31, %32, %cst_15 {dimension_numbers = #tpu.dot_dimension_numbers<[1], [0], [0], [1], [0, 0, 1, 1], [], []>} : vector<64x384xbf16>, vector<384x384xbf16>, vector<64x384xf32> -> vector<64x384xf32>
    %c1 = arith.constant 1 : index
    %c0_16 = arith.constant 0 : index
    %34 = vector.load %arg4[%c1, %c0_16] : memref<9x384xf32, #tpu.memory_space<vmem>>, vector<1x384xf32>
    %c5 = arith.constant 5 : index
    %c0_17 = arith.constant 0 : index
    %35 = vector.load %arg4[%c5, %c0_17] : memref<9x384xf32, #tpu.memory_space<vmem>>, vector<1x384xf32>
    %cst_18 = arith.constant dense<0.000000e+00> : vector<384xf32>
    %36 = vector.multi_reduction <add>, %33, %cst_18 [0] : vector<64x384xf32> to vector<384xf32>
    %37 = vector.shape_cast %36 : vector<384xf32> to vector<1x384xf32>
    %cst_19 = arith.constant 6.400000e+01 : f32
    %38 = vector.broadcast %cst_19 : f32 to vector<1x384xf32>
    %39 = arith.divf %37, %38 : vector<1x384xf32>
    %40 = arith.mulf %33, %33 : vector<64x384xf32>
    %cst_20 = arith.constant dense<0.000000e+00> : vector<384xf32>
    %41 = vector.multi_reduction <add>, %40, %cst_20 [0] : vector<64x384xf32> to vector<384xf32>
    %42 = vector.shape_cast %41 : vector<384xf32> to vector<1x384xf32>
    %cst_21 = arith.constant 6.400000e+01 : f32
    %43 = vector.broadcast %cst_21 : f32 to vector<1x384xf32>
    %44 = arith.divf %42, %43 : vector<1x384xf32>
    %45 = arith.mulf %39, %39 : vector<1x384xf32>
    %46 = arith.subf %44, %45 : vector<1x384xf32>
    %cst_22 = arith.constant 0.000000e+00 : f32
    %47 = vector.broadcast %cst_22 : f32 to vector<1x384xf32>
    %48 = arith.maximumf %46, %47 : vector<1x384xf32>
    %cst_23 = arith.constant 9.99999974E-6 : f32
    %49 = vector.broadcast %cst_23 : f32 to vector<1x384xf32>
    %50 = arith.addf %48, %49 : vector<1x384xf32>
    %51 = math.rsqrt %50 : vector<1x384xf32>
    %52 = arith.mulf %51, %34 : vector<1x384xf32>
    %53 = arith.mulf %39, %52 : vector<1x384xf32>
    %54 = arith.subf %35, %53 : vector<1x384xf32>
    %55 = vector.broadcast %52 : vector<1x384xf32> to vector<64x384xf32>
    %56 = arith.mulf %33, %55 : vector<64x384xf32>
    %57 = vector.broadcast %54 : vector<1x384xf32> to vector<64x384xf32>
    %58 = arith.addf %56, %57 : vector<64x384xf32>
    %cst_24 = arith.constant 0.000000e+00 : f32
    %59 = vector.broadcast %cst_24 : f32 to vector<64x384xf32>
    %60 = arith.maximumf %58, %59 : vector<64x384xf32>
    %61 = arith.truncf %60 : vector<64x384xf32> to vector<64x384xbf16>
    %c384 = arith.constant 384 : index
    %c0_25 = arith.constant 0 : index
    %62 = vector.load %arg2[%c384, %c0_25] : memref<1152x384xbf16, #tpu.memory_space<vmem>>, vector<384x384xbf16>
    %cst_26 = arith.constant dense<0.000000e+00> : vector<64x384xf32>
    %63 = tpu.matmul %61, %62, %cst_26 {dimension_numbers = #tpu.dot_dimension_numbers<[1], [0], [0], [1], [0, 0, 1, 1], [], []>} : vector<64x384xbf16>, vector<384x384xbf16>, vector<64x384xf32> -> vector<64x384xf32>
    %c2 = arith.constant 2 : index
    %c0_27 = arith.constant 0 : index
    %64 = vector.load %arg4[%c2, %c0_27] : memref<9x384xf32, #tpu.memory_space<vmem>>, vector<1x384xf32>
    %c6 = arith.constant 6 : index
    %c0_28 = arith.constant 0 : index
    %65 = vector.load %arg4[%c6, %c0_28] : memref<9x384xf32, #tpu.memory_space<vmem>>, vector<1x384xf32>
    %cst_29 = arith.constant dense<0.000000e+00> : vector<384xf32>
    %66 = vector.multi_reduction <add>, %63, %cst_29 [0] : vector<64x384xf32> to vector<384xf32>
    %67 = vector.shape_cast %66 : vector<384xf32> to vector<1x384xf32>
    %cst_30 = arith.constant 6.400000e+01 : f32
    %68 = vector.broadcast %cst_30 : f32 to vector<1x384xf32>
    %69 = arith.divf %67, %68 : vector<1x384xf32>
    %70 = arith.mulf %63, %63 : vector<64x384xf32>
    %cst_31 = arith.constant dense<0.000000e+00> : vector<384xf32>
    %71 = vector.multi_reduction <add>, %70, %cst_31 [0] : vector<64x384xf32> to vector<384xf32>
    %72 = vector.shape_cast %71 : vector<384xf32> to vector<1x384xf32>
    %cst_32 = arith.constant 6.400000e+01 : f32
    %73 = vector.broadcast %cst_32 : f32 to vector<1x384xf32>
    %74 = arith.divf %72, %73 : vector<1x384xf32>
    %75 = arith.mulf %69, %69 : vector<1x384xf32>
    %76 = arith.subf %74, %75 : vector<1x384xf32>
    %cst_33 = arith.constant 0.000000e+00 : f32
    %77 = vector.broadcast %cst_33 : f32 to vector<1x384xf32>
    %78 = arith.maximumf %76, %77 : vector<1x384xf32>
    %cst_34 = arith.constant 9.99999974E-6 : f32
    %79 = vector.broadcast %cst_34 : f32 to vector<1x384xf32>
    %80 = arith.addf %78, %79 : vector<1x384xf32>
    %81 = math.rsqrt %80 : vector<1x384xf32>
    %82 = arith.mulf %81, %64 : vector<1x384xf32>
    %83 = arith.mulf %69, %82 : vector<1x384xf32>
    %84 = arith.subf %65, %83 : vector<1x384xf32>
    %85 = vector.broadcast %82 : vector<1x384xf32> to vector<64x384xf32>
    %86 = arith.mulf %63, %85 : vector<64x384xf32>
    %87 = vector.broadcast %84 : vector<1x384xf32> to vector<64x384xf32>
    %88 = arith.addf %86, %87 : vector<64x384xf32>
    %cst_35 = arith.constant 0.000000e+00 : f32
    %89 = vector.broadcast %cst_35 : f32 to vector<64x384xf32>
    %90 = arith.maximumf %88, %89 : vector<64x384xf32>
    %91 = arith.truncf %90 : vector<64x384xf32> to vector<64x384xbf16>
    %c768 = arith.constant 768 : index
    %c0_36 = arith.constant 0 : index
    %92 = vector.load %arg2[%c768, %c0_36] : memref<1152x384xbf16, #tpu.memory_space<vmem>>, vector<384x384xbf16>
    %cst_37 = arith.constant dense<0.000000e+00> : vector<64x384xf32>
    %93 = tpu.matmul %91, %92, %cst_37 {dimension_numbers = #tpu.dot_dimension_numbers<[1], [0], [0], [1], [0, 0, 1, 1], [], []>} : vector<64x384xbf16>, vector<384x384xbf16>, vector<64x384xf32> -> vector<64x384xf32>
    %c0_38 = arith.constant 0 : index
    %c0_39 = arith.constant 0 : index
    %94 = vector.load %arg7[%c0_38, %c0_39] : memref<64x384xf32, #tpu.memory_space<vmem>>, vector<64x384xf32>
    tpu.vector_store %arg7[%c0_38, %c0_39], %93 {strides = array<i32>} : memref<64x384xf32, #tpu.memory_space<vmem>>, vector<64x384xf32>,
    tpu.enqueue_dma source(%arg7 : memref<64x384xf32, #tpu.memory_space<vmem>>) target(%arg5 : memref<64x384xf32, #tpu.memory_space<any>>) target_semaphore(%arg8 : memref<!tpu.dma_semaphore, #tpu.memory_space<semaphore_mem>>)
    %c3 = arith.constant 3 : index
    %c0_40 = arith.constant 0 : index
    %95 = vector.load %arg4[%c3, %c0_40] : memref<9x384xf32, #tpu.memory_space<vmem>>, vector<1x384xf32>
    %c7 = arith.constant 7 : index
    %c0_41 = arith.constant 0 : index
    %96 = vector.load %arg4[%c7, %c0_41] : memref<9x384xf32, #tpu.memory_space<vmem>>, vector<1x384xf32>
    %cst_42 = arith.constant dense<0.000000e+00> : vector<384xf32>
    %97 = vector.multi_reduction <add>, %93, %cst_42 [0] : vector<64x384xf32> to vector<384xf32>
    %98 = vector.shape_cast %97 : vector<384xf32> to vector<1x384xf32>
    %cst_43 = arith.constant 6.400000e+01 : f32
    %99 = vector.broadcast %cst_43 : f32 to vector<1x384xf32>
    %100 = arith.divf %98, %99 : vector<1x384xf32>
    %101 = arith.mulf %93, %93 : vector<64x384xf32>
    %cst_44 = arith.constant dense<0.000000e+00> : vector<384xf32>
    %102 = vector.multi_reduction <add>, %101, %cst_44 [0] : vector<64x384xf32> to vector<384xf32>
    %103 = vector.shape_cast %102 : vector<384xf32> to vector<1x384xf32>
    %cst_45 = arith.constant 6.400000e+01 : f32
    %104 = vector.broadcast %cst_45 : f32 to vector<1x384xf32>
    %105 = arith.divf %103, %104 : vector<1x384xf32>
    %106 = arith.mulf %100, %100 : vector<1x384xf32>
    %107 = arith.subf %105, %106 : vector<1x384xf32>
    %cst_46 = arith.constant 0.000000e+00 : f32
    %108 = vector.broadcast %cst_46 : f32 to vector<1x384xf32>
    %109 = arith.maximumf %107, %108 : vector<1x384xf32>
    %cst_47 = arith.constant 9.99999974E-6 : f32
    %110 = vector.broadcast %cst_47 : f32 to vector<1x384xf32>
    %111 = arith.addf %109, %110 : vector<1x384xf32>
    %112 = math.rsqrt %111 : vector<1x384xf32>
    %113 = arith.mulf %112, %95 : vector<1x384xf32>
    %114 = arith.mulf %100, %113 : vector<1x384xf32>
    %115 = arith.subf %96, %114 : vector<1x384xf32>
    %116 = vector.broadcast %113 : vector<1x384xf32> to vector<64x384xf32>
    %117 = arith.mulf %93, %116 : vector<64x384xf32>
    %118 = vector.broadcast %115 : vector<1x384xf32> to vector<64x384xf32>
    %119 = arith.addf %117, %118 : vector<64x384xf32>
    %cst_48 = arith.constant 0.000000e+00 : f32
    %120 = vector.broadcast %cst_48 : f32 to vector<64x384xf32>
    %121 = arith.maximumf %119, %120 : vector<64x384xf32>
    %122 = arith.truncf %121 : vector<64x384xf32> to vector<64x384xbf16>
    %c0_49 = arith.constant 0 : index
    %c0_50 = arith.constant 0 : index
    %123 = vector.load %arg3[%c0_49, %c0_50] : memref<384x128xbf16, #tpu.memory_space<vmem>>, vector<384x128xbf16>
    %cst_51 = arith.constant dense<0.000000e+00> : vector<64x128xf32>
    %124 = tpu.matmul %122, %123, %cst_51 {dimension_numbers = #tpu.dot_dimension_numbers<[1], [0], [0], [1], [0, 0, 1, 1], [], []>} : vector<64x384xbf16>, vector<384x128xbf16>, vector<64x128xf32> -> vector<64x128xf32>
    %c8 = arith.constant 8 : index
    %c0_52 = arith.constant 0 : index
    %125 = vector.load %arg4[%c8, %c0_52] : memref<9x384xf32, #tpu.memory_space<vmem>>, vector<1x128xf32>
    %126 = vector.broadcast %125 : vector<1x128xf32> to vector<64x128xf32>
    %127 = arith.addf %124, %126 : vector<64x128xf32>
    %c0_53 = arith.constant 0 : index
    %c0_54 = arith.constant 0 : index
    %128 = vector.load %arg6[%c0_53, %c0_54] : memref<64x128xf32, #tpu.memory_space<vmem>>, vector<64x128xf32>
    tpu.vector_store %arg6[%c0_53, %c0_54], %127 {strides = array<i32>} : memref<64x128xf32, #tpu.memory_space<vmem>>, vector<64x128xf32>,
    tpu.wait_dma2 semaphore(%arg8 : memref<!tpu.dma_semaphore, #tpu.memory_space<semaphore_mem>>) src(%arg7 : memref<64x384xf32, #tpu.memory_space<vmem>>) dst(%arg5 : memref<64x384xf32, #tpu.memory_space<any>>)
    return
  }
}

</mosaic_0001>

<llo_original>
// kernel: mlp_phi_forward.1
$region0: #{mlp_phi_forward.1}
  #allocation0 [shape = 'u32[]', space=smem, size = 0x4, offset = 0x4, fixed_abs, tag = 'smem constant byte address 0x4 - core index']
  #allocation1 [shape = 'u32[144,128]{1,0:T(1,128)}', space=vmem, size = 0x12000, scoped, tag = 'internal scratch']
  #allocation2 [shape = 'f32[64,384]{1,0:T(8,128)}', space=vmem, size = 0x18000, scoped, tag = 'scratch operand']
  #allocation3 [shape = 's32[1]{0}', space=sflag, size = 0x4, scoped, tag = 'scratch operand']
  #allocation8 [shape = 's32[]', space=sflag, size = 0x4, offset = 0, fixed_abs, tag = 'sflag constant byte address 0x0 - dummy sync flag']
  #allocation9 [shape = 's32[]', space=sflag, size = 0x4, offset = 0, fixed_abs, tag = 'sflag constant byte address 0x0 - dummy sync flag']
  #allocation10 [shape = 'u32[]', space=smem, size = 0x4, offset = 0x44, fixed_abs, tag = 'smem constant byte address 0x44 - assertion arg 0']
  #allocation11 [shape = 'u32[]', space=smem, size = 0x4, offset = 0x48, fixed_abs, tag = 'smem constant byte address 0x48 - assertion arg 1']
  %s0 = inlined_call_operand.vmem [shape: f32[64,32], index: 0, kind: input, shape index: {}]
  %s1 = inlined_call_operand.vmem [shape: bf16[32,384], index: 1, kind: input, shape index: {}]
  %s2 = inlined_call_operand.hbm [shape: bf16[1152,384], index: 2, kind: input, shape index: {}]
  %s3 = inlined_call_operand.hbm [shape: bf16[384,128], index: 3, kind: input, shape index: {}]
  %s4 = inlined_call_operand.vmem [shape: f32[9,384], index: 4, kind: input, shape index: {}]
  %s5 = inlined_call_operand.hbm [shape: f32[64,384], index: 5, kind: output, shape index: {0}]
  %s6 = inlined_call_operand.vmem [shape: f32[64,128], index: 6, kind: output, shape index: {1}]
  %7 = xla_tuple %s5, %s6
  %s8 = sld [smem:[#allocation0]]
  $region42: #{mlp_phi_forward.1} parent=0
    _
  %s10 = ssub.s32 1, %s8
  %s11 = scalar_select 0, %s10, %s8
  $region1: #{mlp_phi_forward.1} parent=0
    #allocation4 [shape = 'u8[884736]{0}', space=vmem, size = 0xd8000, scoped, tag = 'input window, operand 2, single buffered']
    #allocation5 [shape = 's32[1]{0}', space=sflag, size = 0x4, scoped, tag = 'scoped memory for mlp_phi_forward.1']
    #allocation6 [shape = 'u8[98304]{0}', space=vmem, size = 0x18000, scoped, tag = 'input window, operand 3, single buffered']
    #allocation7 [shape = 's32[1]{0}', space=sflag, size = 0x4, scoped, tag = 'scoped memory for mlp_phi_forward.1']
    %12 = vsyncpa [#allocation5], 0
    %13 = vsyncpa [#allocation7], 0
    // Predicated region
    $region2: #{mlp_phi_forward.1} parent=1 // pred_check
      _
    $region3: #{mlp_phi_forward.1} parent=1 // pred_check_branch
      %15 = sbr.rel (0) target = $region5
    $region4: #{mlp_phi_forward.1} parent=1 // pred_region
      _
    $region5: #{mlp_phi_forward.1} parent=1 // pred_fallthru
      _
    // Predicated region
    $region6: #{mlp_phi_forward.1} parent=1 // pred_check
      _
    $region7: #{mlp_phi_forward.1} parent=1 // pred_check_branch
      %17 = sbr.rel (0) target = $region9
    $region8: #{mlp_phi_forward.1} parent=1 // pred_region
      _
    $region9: #{mlp_phi_forward.1} parent=1 // pred_fallthru
      _
    // Predicated region
    $region10: #{mlp_phi_forward.1} parent=1 // pred_check
      _
    $region11: #{mlp_phi_forward.1} parent=1 // pred_check_branch
      %19 = sbr.rel (0) target = $region13
    $region12: #{mlp_phi_forward.1} parent=1 // pred_region
      %s21 = ssub.s32 27648, 27648
      %22 = vsyncadd [#allocation5], %s21
      %s23 = sshll.u32 [#allocation4], 4
      %s24 = int_to_ptr.vmem [resolvable:$true] %s23
      %29 = dma.hbm_to_vmem [thread:$0]  %s2, 27648, %s24, [#allocation5], 192, 192, 12
    $region13: #{mlp_phi_forward.1} parent=1 // pred_fallthru
      _
    // Predicated region
    $region14: #{mlp_phi_forward.1} parent=1 // pred_check
      _
    $region15: #{mlp_phi_forward.1} parent=1 // pred_check_branch
      %31 = sbr.rel (0) target = $region17
    $region16: #{mlp_phi_forward.1} parent=1 // pred_region
      %s33 = ssub.s32 3072, 3072
      %34 = vsyncadd [#allocation7], %s33
      %s35 = sshll.u32 [#allocation6], 4
      %s36 = int_to_ptr.vmem [resolvable:$true] %s35
      %41 = dma.hbm_to_vmem [thread:$0]  %s3, 3072, %s36, [#allocation7], 64, 64, 4
    $region17: #{mlp_phi_forward.1} parent=1 // pred_fallthru
      _
    // Predicated region
    $region18: #{mlp_phi_forward.1} parent=1 // pred_check
      _
    $region19: #{mlp_phi_forward.1} parent=1 // pred_check_branch
      %43 = sbr.rel (0) target = $region21
    $region20: #{mlp_phi_forward.1} parent=1 // pred_region
      _
    $region21: #{mlp_phi_forward.1} parent=1 // pred_fallthru
      _
    // Predicated region
    $region22: #{mlp_phi_forward.1} parent=1 // pred_check
      _
    $region23: #{mlp_phi_forward.1} parent=1 // pred_check_branch
      %45 = sbr.rel (0) target = $region25
    $region24: #{mlp_phi_forward.1} parent=1 // pred_region
      %46 = dma.done [#allocation5], 27648
    $region25: #{mlp_phi_forward.1} parent=1 // pred_fallthru
      _
    // Predicated region
    $region26: #{mlp_phi_forward.1} parent=1 // pred_check
      _
    $region27: #{mlp_phi_forward.1} parent=1 // pred_check_branch
      %48 = sbr.rel (0) target = $region29
    $region28: #{mlp_phi_forward.1} parent=1 // pred_region
      %49 = dma.done [#allocation7], 3072
    $region29: #{mlp_phi_forward.1} parent=1 // pred_fallthru
      _
    %v51 = vld [vmem:[%s0] sm:$0xff]
    %v52 = vld [vmem:[%s0 + $0x8] sm:$0xff]
    %v53 = vld [vmem:[%s0 + $0x10] sm:$0xff]
    %v54 = vld [vmem:[%s0 + $0x18] sm:$0xff]
    %v55 = vld [vmem:[%s0 + $0x20] sm:$0xff]
    %v56 = vld [vmem:[%s0 + $0x28] sm:$0xff]
    %v57 = vld [vmem:[%s0 + $0x30] sm:$0xff]
    %v58 = vld [vmem:[%s0 + $0x38] sm:$0xff]
    %v59 = vpack.c.bf16 %v52, %v51
    %v60 = vpack.c.bf16 %v54, %v53
    %v61 = vpack.c.bf16 %v56, %v55
    %v62 = vpack.c.bf16 %v58, %v57
    %v63 = vld [vmem:[%s1] sm:$0xff]
    %v64 = vld [vmem:[%s1 + $0x8] sm:$0xf]
    %v65 = vld [vmem:[%s1 + $0xc] sm:$0xff]
    %v66 = vld [vmem:[%s1 + $0x14] sm:$0xf]
    %v67 = vld [vmem:[%s1 + $0x18] sm:$0xff]
    %v68 = vld [vmem:[%s1 + $0x20] sm:$0xf]
    %v69 = vld [vmem:[%s1 + $0x24] sm:$0xff]
    %v70 = vld [vmem:[%s1 + $0x2c] sm:$0xf]
    %v79 = vunpack.c.l.b16 %v63
    %v80 = vunpack.c.h.b16 %v63
    %v81 = vunpack.c.l.b16 %v64
    %v82 = vunpack.c.l.b16 %v65
    %v83 = vunpack.c.h.b16 %v65
    %v84 = vunpack.c.l.b16 %v66
    %v85 = vunpack.c.l.b16 %v67
    %v86 = vunpack.c.h.b16 %v67
    %v87 = vunpack.c.l.b16 %v68
    %v88 = vunpack.c.l.b16 %v69
    %v89 = vunpack.c.h.b16 %v69
    %v90 = vunpack.c.l.b16 %v70
    %v91 = vpack.c.b16 %v82, %v79
    %v92 = vpack.c.b16 %v83, %v80
    %v93 = vpack.c.b16 %v84, %v81
    %v94 = vpack.c.b16 %v88, %v85
    %v95 = vpack.c.b16 %v89, %v86
    %v96 = vpack.c.b16 %v90, %v87
    %vm103 = vcmask 261120
    %v105 = vsel %vm103, %v59, 0
    %v108 = vsel %vm103, %v60, 0
    %v111 = vsel %vm103, %v61, 0
    %v114 = vsel %vm103, %v62, 0
    %116 = vmatprep.subr.bf16.mxu0 %v92
    %117 = vmatpush1.bf16.msra.mxu0 %v91
    %118 = vmatprep.subr.bf16.mxu0 %v95
    %119 = vmatpush1.bf16.msra.mxu0 %v94
    %120 = vmatprep.subr.bf16.mxu0 0
    %121 = vmatpush1.bf16.msra.mxu0 0
    %122 = vmatprep.subr.bf16.mxu0 0
    %123 = vmatpush1.bf16.msra.mxu0 0
    %124 = vmatprep.subr.bf16.mxu0 0
    %125 = vmatpush1.bf16.msra.mxu0 0
    %126 = vmatprep.subr.bf16.mxu0 0
    %127 = vmatpush1.bf16.msra.mxu0 0
    %128 = vmatprep.subr.bf16.mxu0 0
    %129 = vmatpush1.bf16.msra.mxu0 0
    %130 = vmatprep.subr.bf16.mxu0 0
    %131 = vmatpush1.bf16.msra.mxu0 0
    %132 = vmatprep.subr.bf16.mxu0 0
    %133 = vmatpush1.bf16.msra.mxu0 0
    %134 = vmatprep.subr.bf16.mxu0 0
    %135 = vmatpush1.bf16.msra.mxu0 0
    %136 = vmatprep.subr.bf16.mxu0 0
    %137 = vmatpush1.bf16.msra.mxu0 0
    %138 = vmatprep.subr.bf16.mxu0 0
    %139 = vmatpush1.bf16.msra.mxu0 0
    %140 = vmatprep.subr.bf16.mxu0 0
    %141 = vmatpush1.bf16.msra.mxu0 0
    %142 = vmatprep.subr.bf16.mxu0 0
    %143 = vmatpush1.bf16.msra.mxu0 0
    %144 = vmatprep.subr.bf16.mxu0 0
    %145 = vmatpush1.bf16.msra.mxu0 0
    %146 = vmatprep.subr.bf16.mxu0 0
    %147 = vmatpush1.bf16.msra.mxu0 0
    %148 = vmatprep.mubr.bf16.mxu0 0
    %149 = vmatmul.mubr.bf16.gmra.mrb[0].mxu0 %v105
    %v150 = vpop.f32.mrb[0].mxu0
    %v151 = vadd.f32 0.0, %v150
    %v152 = vpop.f32.mrb[0].mxu0
    %v153 = vadd.f32 0.0, %v152
    %v154 = vpop.f32.mrb[0].mxu0
    %v155 = vadd.f32 0.0, %v154
    %v156 = vpop.f32.mrb[0].mxu0
    %v157 = vadd.f32 0.0, %v156
    %158 = vmatprep.mubr.bf16.mxu0 0
    %159 = vmatmul.mubr.bf16.gmra.mrb[0].mxu0 %v108
    %v160 = vpop.f32.mrb[0].mxu0
    %v161 = vadd.f32 0.0, %v160
    %v162 = vpop.f32.mrb[0].mxu0
    %v163 = vadd.f32 0.0, %v162
    %v164 = vpop.f32.mrb[0].mxu0
    %v165 = vadd.f32 0.0, %v164
    %v166 = vpop.f32.mrb[0].mxu0
    %v167 = vadd.f32 0.0, %v166
    %168 = vmatprep.mubr.bf16.mxu0 0
    %169 = vmatmul.mubr.bf16.gmra.mrb[0].mxu0 %v111
    %v170 = vpop.f32.mrb[0].mxu0
    %v171 = vadd.f32 0.0, %v170
    %v172 = vpop.f32.mrb[0].mxu0
    %v173 = vadd.f32 0.0, %v172
    %v174 = vpop.f32.mrb[0].mxu0
    %v175 = vadd.f32 0.0, %v174
    %v176 = vpop.f32.mrb[0].mxu0
    %v177 = vadd.f32 0.0, %v176
    %178 = vmatprep.mubr.bf16.mxu0 0
    %179 = vmatmul.mubr.bf16.gmra.mrb[0].mxu0 %v114
    %v180 = vpop.f32.mrb[0].mxu0
    %v181 = vadd.f32 0.0, %v180
    %v182 = vpop.f32.mrb[0].mxu0
    %v183 = vadd.f32 0.0, %v182
    %v184 = vpop.f32.mrb[0].mxu0
    %v185 = vadd.f32 0.0, %v184
    %v186 = vpop.f32.mrb[0].mxu0
    %v187 = vadd.f32 0.0, %v186
    %188 = vdwg.mxu0
    %189 = vmatprep.subr.bf16.mxu0 0
    %190 = vmatpush1.bf16.msra.mxu0 %v93
    %191 = vmatprep.subr.bf16.mxu0 0
    %192 = vmatpush1.bf16.msra.mxu0 %v96
    %193 = vmatprep.subr.bf16.mxu0 0
    %194 = vmatpush1.bf16.msra.mxu0 0
    %195 = vmatprep.subr.bf16.mxu0 0
    %196 = vmatpush1.bf16.msra.mxu0 0
    %197 = vmatprep.subr.bf16.mxu0 0
    %198 = vmatpush1.bf16.msra.mxu0 0
    %199 = vmatprep.subr.bf16.mxu0 0
    %200 = vmatpush1.bf16.msra.mxu0 0
    %201 = vmatprep.subr.bf16.mxu0 0
    %202 = vmatpush1.bf16.msra.mxu0 0
    %203 = vmatprep.subr.bf16.mxu0 0
    %204 = vmatpush1.bf16.msra.mxu0 0
    %205 = vmatprep.subr.bf16.mxu0 0
    %206 = vmatpush1.bf16.msra.mxu0 0
    %207 = vmatprep.subr.bf16.mxu0 0
    %208 = vmatpush1.bf16.msra.mxu0 0
    %209 = vmatprep.subr.bf16.mxu0 0
    %210 = vmatpush1.bf16.msra.mxu0 0
    %211 = vmatprep.subr.bf16.mxu0 0
    %212 = vmatpush1.bf16.msra.mxu0 0
    %213 = vmatprep.subr.bf16.mxu0 0
    %214 = vmatpush1.bf16.msra.mxu0 0
    %215 = vmatprep.subr.bf16.mxu0 0
    %216 = vmatpush1.bf16.msra.mxu0 0
    %217 = vmatprep.subr.bf16.mxu0 0
    %218 = vmatpush1.bf16.msra.mxu0 0
    %219 = vmatprep.subr.bf16.mxu0 0
    %220 = vmatpush1.bf16.msra.mxu0 0
    %221 = vmatprep.mubr.bf16.mxu0 0
    %222 = vmatmul.mubr.bf16.gmra.mrb[0].mxu0 %v105
    %v223 = vpop.f32.mrb[0].mxu0
    %v224 = vadd.f32 0.0, %v223
    %v225 = vpop.f32.mrb[0].mxu0
    %v226 = vpop.f32.mrb[0].mxu0
    %v227 = vadd.f32 0.0, %v226
    %v228 = vpop.f32.mrb[0].mxu0
    %229 = vmatprep.mubr.bf16.mxu0 0
    %230 = vmatmul.mubr.bf16.gmra.mrb[0].mxu0 %v108
    %v231 = vpop.f32.mrb[0].mxu0
    %v232 = vadd.f32 0.0, %v231
    %v233 = vpop.f32.mrb[0].mxu0
    %v234 = vpop.f32.mrb[0].mxu0
    %v235 = vadd.f32 0.0, %v234
    %v236 = vpop.f32.mrb[0].mxu0
    %237 = vmatprep.mubr.bf16.mxu0 0
    %238 = vmatmul.mubr.bf16.gmra.mrb[0].mxu0 %v111
    %v239 = vpop.f32.mrb[0].mxu0
    %v240 = vadd.f32 0.0, %v239
    %v241 = vpop.f32.mrb[0].mxu0
    %v242 = vpop.f32.mrb[0].mxu0
    %v243 = vadd.f32 0.0, %v242
    %v244 = vpop.f32.mrb[0].mxu0
    %245 = vmatprep.mubr.bf16.mxu0 0
    %246 = vmatmul.mubr.bf16.gmra.mrb[0].mxu0 %v114
    %v247 = vpop.f32.mrb[0].mxu0
    %v248 = vadd.f32 0.0, %v247
    %v249 = vpop.f32.mrb[0].mxu0
    %v250 = vpop.f32.mrb[0].mxu0
    %v251 = vadd.f32 0.0, %v250
    %v252 = vpop.f32.mrb[0].mxu0
    %253 = vdwg.mxu0
    %v254 = vld [vmem:[%s4] ss:$8 sm:$0x7]
    %s255 = scalar_lea.vmem %s4, 4
    %v256 = vld [vmem:[%s255] ss:$8 sm:$0x7]
    %v257 = vadd.f32 %v151, %v155
    %v258 = vadd.f32 %v257, %v161
    %v259 = vadd.f32 %v258, %v165
    %v260 = vadd.f32 %v259, %v171
    %v261 = vadd.f32 %v260, %v175
    %v262 = vadd.f32 %v261, %v181
    %v263 = vadd.f32 %v262, %v185
    %v264 = vrot.slane %v263, 4
    %v265 = vadd.f32 %v263, %v264
    %v266 = vrot.slane %v265, 2
    %v267 = vadd.f32 %v265, %v266
    %v268 = vrot.slane %v267, 1
    %v269 = vadd.f32 %v267, %v268
    %v270 = vadd.f32 %v153, %v157
    %v271 = vadd.f32 %v270, %v163
    %v272 = vadd.f32 %v271, %v167
    %v273 = vadd.f32 %v272, %v173
    %v274 = vadd.f32 %v273, %v177
    %v275 = vadd.f32 %v274, %v183
    %v276 = vadd.f32 %v275, %v187
    %v277 = vrot.slane %v276, 4
    %v278 = vadd.f32 %v276, %v277
    %v279 = vrot.slane %v278, 2
    %v280 = vadd.f32 %v278, %v279
    %v281 = vrot.slane %v280, 1
    %v282 = vadd.f32 %v280, %v281
    %v283 = vadd.f32 %v224, %v227
    %v284 = vadd.f32 %v283, %v232
    %v285 = vadd.f32 %v284, %v235
    %v286 = vadd.f32 %v285, %v240
    %v287 = vadd.f32 %v286, %v243
    %v288 = vadd.f32 %v287, %v248
    %v289 = vadd.f32 %v288, %v251
    %v290 = vrot.slane %v289, 4
    %v291 = vadd.f32 %v289, %v290
    %v292 = vrot.slane %v291, 2
    %v293 = vadd.f32 %v291, %v292
    %v294 = vrot.slane %v293, 1
    %v295 = vadd.f32 %v293, %v294
    %v296 = vrcp.pop 64.0
    %v297 = vmul.f32 %v269, %v296
    %v298 = vmul.f32 %v282, %v296
    %v299 = vmul.f32 %v295, %v296
    %v300 = vmul.f32 %v151, %v151
    %v301 = vmul.f32 %v153, %v153
    %v302 = vmul.f32 %v224, %v224
    %v303 = vmul.f32 %v155, %v155
    %v304 = vmul.f32 %v157, %v157
    %v305 = vmul.f32 %v227, %v227
    %v306 = vmul.f32 %v161, %v161
    %v307 = vmul.f32 %v163, %v163
    %v308 = vmul.f32 %v232, %v232
    %v309 = vmul.f32 %v165, %v165
    %v310 = vmul.f32 %v167, %v167
    %v311 = vmul.f32 %v235, %v235
    %v312 = vmul.f32 %v171, %v171
    %v313 = vmul.f32 %v173, %v173
    %v314 = vmul.f32 %v240, %v240
    %v315 = vmul.f32 %v175, %v175
    %v316 = vmul.f32 %v177, %v177
    %v317 = vmul.f32 %v243, %v243
    %v318 = vmul.f32 %v181, %v181
    %v319 = vmul.f32 %v183, %v183
    %v320 = vmul.f32 %v248, %v248
    %v321 = vmul.f32 %v185, %v185
    %v322 = vmul.f32 %v187, %v187
    %v323 = vmul.f32 %v251, %v251
    %v324 = vadd.f32 %v300, %v303
    %v325 = vadd.f32 %v324, %v306
    %v326 = vadd.f32 %v325, %v309
    %v327 = vadd.f32 %v326, %v312
    %v328 = vadd.f32 %v327, %v315
    %v329 = vadd.f32 %v328, %v318
    %v330 = vadd.f32 %v329, %v321
    %v331 = vrot.slane %v330, 4
    %v332 = vadd.f32 %v330, %v331
    %v333 = vrot.slane %v332, 2
    %v334 = vadd.f32 %v332, %v333
    %v335 = vrot.slane %v334, 1
    %v336 = vadd.f32 %v334, %v335
    %v337 = vadd.f32 %v301, %v304
    %v338 = vadd.f32 %v337, %v307
    %v339 = vadd.f32 %v338, %v310
    %v340 = vadd.f32 %v339, %v313
    %v341 = vadd.f32 %v340, %v316
    %v342 = vadd.f32 %v341, %v319
    %v343 = vadd.f32 %v342, %v322
    %v344 = vrot.slane %v343, 4
    %v345 = vadd.f32 %v343, %v344
    %v346 = vrot.slane %v345, 2
    %v347 = vadd.f32 %v345, %v346
    %v348 = vrot.slane %v347, 1
    %v349 = vadd.f32 %v347, %v348
    %v350 = vadd.f32 %v302, %v305
    %v351 = vadd.f32 %v350, %v308
    %v352 = vadd.f32 %v351, %v311
    %v353 = vadd.f32 %v352, %v314
    %v354 = vadd.f32 %v353, %v317
    %v355 = vadd.f32 %v354, %v320
    %v356 = vadd.f32 %v355, %v323
    %v357 = vrot.slane %v356, 4
    %v358 = vadd.f32 %v356, %v357
    %v359 = vrot.slane %v358, 2
    %v360 = vadd.f32 %v358, %v359
    %v361 = vrot.slane %v360, 1
    %v362 = vadd.f32 %v360, %v361
    %v363 = vmul.f32 %v336, %v296
    %v364 = vmul.f32 %v349, %v296
    %v365 = vmul.f32 %v362, %v296
    %v366 = vmul.f32 %v297, %v297
    %v367 = vmul.f32 %v298, %v298
    %v368 = vmul.f32 %v299, %v299
    %v369 = vsub.f32 %v363, %v366
    %v370 = vsub.f32 %v364, %v367
    %v371 = vsub.f32 %v365, %v368
    %v372 = vmax.f32 %v369, 0.0
    %v373 = vmax.f32 %v370, 0.0
    %v374 = vmax.f32 %v371, 0.0
    %v375 = vadd.f32 %v372, 1e-05
    %v376 = vadd.f32 %v373, 1e-05
    %v377 = vadd.f32 %v374, 1e-05
    %v378 = vrsqrt.pop %v375
    %v379 = vrsqrt.pop %v376
    %v380 = vrsqrt.pop %v377
    %v382 = vlaneseq
    %v383 = vshrl.u32 %v382, 7
    %v384 = vsub.s32 0, %v383
    %v385 = vrot.slane %v254, %v384
    %v386 = vlaneseq
    %v387 = vshrl.u32 %v386, 7
    %v388 = vsub.s32 1, %v387
    %v389 = vrot.slane %v254, %v388
    %v390 = vlaneseq
    %v391 = vshrl.u32 %v390, 7
    %v392 = vsub.s32 2, %v391
    %v393 = vrot.slane %v254, %v392
    %v397 = vmul.f32 %v378, %v385
    %v398 = vmul.f32 %v379, %v389
    %v399 = vmul.f32 %v380, %v393
    %v400 = vmul.f32 %v297, %v397
    %v401 = vmul.f32 %v298, %v398
    %v402 = vmul.f32 %v299, %v399
    %v406 = vcombine.low %v400, %v401
    %v408 = vunpack.c.l.s4 1966171168
    %v409 = vunpack.c.0.s8 %v408
    %v410 = vlaneseq
    %v411 = vshrl.u32 %v410, 7
    %v412 = vsub.s32 %v409, %v411
    %v413 = vrot.slane %v406, %v412
    %v415 = vunpack.c.l.s4 1966171168
    %v416 = vunpack.c.0.s8 %v415
    %v417 = vlaneseq
    %v418 = vshrl.u32 %v417, 7
    %v419 = vsub.s32 %v416, %v418
    %v420 = vrot.slane %v402, %v419
    %v421 = vcombine.low %v413, %v420
    %v423 = vunpack.c.l.s4 1966171168
    %v424 = vunpack.c.0.s8 %v423
    %v425 = vlaneseq
    %v426 = vshrl.u32 %v425, 7
    %v427 = vsub.s32 %v424, %v426
    %v428 = vrot.slane %v421, %v427
    %v430 = vsub.f32 %v256, %v428
    %v431 = vlaneseq
    %v432 = vshrl.u32 %v431, 7
    %v433 = vsub.s32 0, %v432
    %v434 = vrot.slane %v397, %v433
    %v435 = vlaneseq
    %v436 = vshrl.u32 %v435, 7
    %v437 = vsub.s32 0, %v436
    %v438 = vrot.slane %v398, %v437
    %v439 = vlaneseq
    %v440 = vshrl.u32 %v439, 7
    %v441 = vsub.s32 0, %v440
    %v442 = vrot.slane %v399, %v441
    %v443 = vmul.f32 %v151, %v434
    %v444 = vmul.f32 %v153, %v438
    %v445 = vmul.f32 %v224, %v442
    %v446 = vmul.f32 %v155, %v434
    %v447 = vmul.f32 %v157, %v438
    %v448 = vmul.f32 %v227, %v442
    %v449 = vmul.f32 %v161, %v434
    %v450 = vmul.f32 %v163, %v438
    %v451 = vmul.f32 %v232, %v442
    %v452 = vmul.f32 %v165, %v434
    %v453 = vmul.f32 %v167, %v438
    %v454 = vmul.f32 %v235, %v442
    %v455 = vmul.f32 %v171, %v434
    %v456 = vmul.f32 %v173, %v438
    %v457 = vmul.f32 %v240, %v442
    %v458 = vmul.f32 %v175, %v434
    %v459 = vmul.f32 %v177, %v438
    %v460 = vmul.f32 %v243, %v442
    %v461 = vmul.f32 %v181, %v434
    %v462 = vmul.f32 %v183, %v438
    %v463 = vmul.f32 %v248, %v442
    %v464 = vmul.f32 %v185, %v434
    %v465 = vmul.f32 %v187, %v438
    %v466 = vmul.f32 %v251, %v442
    %v468 = vlaneseq
    %v469 = vshrl.u32 %v468, 7
    %v470 = vsub.s32 0, %v469
    %v471 = vrot.slane %v430, %v470
    %v472 = vlaneseq
    %v473 = vshrl.u32 %v472, 7
    %v474 = vsub.s32 1, %v473
    %v475 = vrot.slane %v430, %v474
    %v476 = vlaneseq
    %v477 = vshrl.u32 %v476, 7
    %v478 = vsub.s32 2, %v477
    %v479 = vrot.slane %v430, %v478
    %v483 = vadd.f32 %v443, %v471
    %v484 = vadd.f32 %v444, %v475
    %v485 = vadd.f32 %v445, %v479
    %v486 = vadd.f32 %v446, %v471
    %v487 = vadd.f32 %v447, %v475
    %v488 = vadd.f32 %v448, %v479
    %v489 = vadd.f32 %v449, %v471
    %v490 = vadd.f32 %v450, %v475
    %v491 = vadd.f32 %v451, %v479
    %v492 = vadd.f32 %v452, %v471
    %v493 = vadd.f32 %v453, %v475
    %v494 = vadd.f32 %v454, %v479
    %v495 = vadd.f32 %v455, %v471
    %v496 = vadd.f32 %v456, %v475
    %v497 = vadd.f32 %v457, %v479
    %v498 = vadd.f32 %v458, %v471
    %v499 = vadd.f32 %v459, %v475
    %v500 = vadd.f32 %v460, %v479
    %v501 = vadd.f32 %v461, %v471
    %v502 = vadd.f32 %v462, %v475
    %v503 = vadd.f32 %v463, %v479
    %v504 = vadd.f32 %v464, %v471
    %v505 = vadd.f32 %v465, %v475
    %v506 = vadd.f32 %v466, %v479
    %v507 = vmax.f32 %v483, 0.0
    %v508 = vmax.f32 %v484, 0.0
    %v509 = vmax.f32 %v485, 0.0
    %v510 = vmax.f32 %v486, 0.0
    %v511 = vmax.f32 %v487, 0.0
    %v512 = vmax.f32 %v488, 0.0
    %v513 = vmax.f32 %v489, 0.0
    %v514 = vmax.f32 %v490, 0.0
    %v515 = vmax.f32 %v491, 0.0
    %v516 = vmax.f32 %v492, 0.0
    %v517 = vmax.f32 %v493, 0.0
    %v518 = vmax.f32 %v494, 0.0
    %v519 = vmax.f32 %v495, 0.0
    %v520 = vmax.f32 %v496, 0.0
    %v521 = vmax.f32 %v497, 0.0
    %v522 = vmax.f32 %v498, 0.0
    %v523 = vmax.f32 %v499, 0.0
    %v524 = vmax.f32 %v500, 0.0
    %v525 = vmax.f32 %v501, 0.0
    %v526 = vmax.f32 %v502, 0.0
    %v527 = vmax.f32 %v503, 0.0
    %v528 = vmax.f32 %v504, 0.0
    %v529 = vmax.f32 %v505, 0.0
    %v530 = vmax.f32 %v506, 0.0
    %v531 = vpack.c.bf16 %v510, %v507
    %v532 = vpack.c.bf16 %v511, %v508
    %v533 = vpack.c.bf16 %v512, %v509
    %v534 = vpack.c.bf16 %v516, %v513
    %v535 = vpack.c.bf16 %v517, %v514
    %v536 = vpack.c.bf16 %v518, %v515
    %v537 = vpack.c.bf16 %v522, %v519
    %v538 = vpack.c.bf16 %v523, %v520
    %v539 = vpack.c.bf16 %v524, %v521
    %v540 = vpack.c.bf16 %v528, %v525
    %v541 = vpack.c.bf16 %v529, %v526
    %v542 = vpack.c.bf16 %v530, %v527
    %v543 = vld [vmem:[#allocation4] sm:$0xff]
    %v544 = vld [vmem:[#allocation4 + $0x8] sm:$0xf]
    %v545 = vld [vmem:[#allocation4 + $0xc] sm:$0xff]
    %v546 = vld [vmem:[#allocation4 + $0x14] sm:$0xf]
    %v547 = vld [vmem:[#allocation4 + $0x18] sm:$0xff]
    %v548 = vld [vmem:[#allocation4 + $0x20] sm:$0xf]
    %v549 = vld [vmem:[#allocation4 + $0x24] sm:$0xff]
    %v550 = vld [vmem:[#allocation4 + $0x2c] sm:$0xf]
    %v551 = vld [vmem:[#allocation4 + $0x30] sm:$0xff]
    %v552 = vld [vmem:[#allocation4 + $0x38] sm:$0xf]
    %v553 = vld [vmem:[#allocation4 + $0x3c] sm:$0xff]
    %v554 = vld [vmem:[#allocation4 + $0x44] sm:$0xf]
    %v555 = vld [vmem:[#allocation4 + $0x48] sm:$0xff]
    %v556 = vld [vmem:[#allocation4 + $0x50] sm:$0xf]
    %v557 = vld [vmem:[#allocation4 + $0x54] sm:$0xff]
    %v558 = vld [vmem:[#allocation4 + $0x5c] sm:$0xf]
    %v559 = vld [vmem:[#allocation4 + $0x60] sm:$0xff]
    %v560 = vld [vmem:[#allocation4 + $0x68] sm:$0xf]
    %v561 = vld [vmem:[#allocation4 + $0x6c] sm:$0xff]
    %v562 = vld [vmem:[#allocation4 + $0x74] sm:$0xf]
    %v563 = vld [vmem:[#allocation4 + $0x78] sm:$0xff]
    %v564 = vld [vmem:[#allocation4 + $0x80] sm:$0xf]
    %v565 = vld [vmem:[#allocation4 + $0x84] sm:$0xff]
    %v566 = vld [vmem:[#allocation4 + $0x8c] sm:$0xf]
    %v567 = vld [vmem:[#allocation4 + $0x90] sm:$0xff]
    %v568 = vld [vmem:[#allocation4 + $0x98] sm:$0xf]
    %v569 = vld [vmem:[#allocation4 + $0x9c] sm:$0xff]
    %v570 = vld [vmem:[#allocation4 + $0xa4] sm:$0xf]
    %v571 = vld [vmem:[#allocation4 + $0xa8] sm:$0xff]
    %v572 = vld [vmem:[#allocation4 + $0xb0] sm:$0xf]
    %v573 = vld [vmem:[#allocation4 + $0xb4] sm:$0xff]
    %v574 = vld [vmem:[#allocation4 + $0xbc] sm:$0xf]
    %v575 = vld [vmem:[#allocation4 + $0xc0] sm:$0xff]
    %v576 = vld [vmem:[#allocation4 + $0xc8] sm:$0xf]
    %v577 = vld [vmem:[#allocation4 + $0xcc] sm:$0xff]
    %v578 = vld [vmem:[#allocation4 + $0xd4] sm:$0xf]
    %v579 = vld [vmem:[#allocation4 + $0xd8] sm:$0xff]
    %v580 = vld [vmem:[#allocation4 + $0xe0] sm:$0xf]
    %v581 = vld [vmem:[#allocation4 + $0xe4] sm:$0xff]
    %v582 = vld [vmem:[#allocation4 + $0xec] sm:$0xf]
    %v583 = vld [vmem:[#allocation4 + $0xf0] sm:$0xff]
    %v584 = vld [vmem:[#allocation4 + $0xf8] sm:$0xf]
    %v585 = vld [vmem:[#allocation4 + $0xfc] sm:$0xff]
    %v586 = vld [vmem:[#allocation4 + $0x104] sm:$0xf]
    %v587 = vld [vmem:[#allocation4 + $0x108] sm:$0xff]
    %v588 = vld [vmem:[#allocation4 + $0x110] sm:$0xf]
    %v589 = vld [vmem:[#allocation4 + $0x114] sm:$0xff]
    %v590 = vld [vmem:[#allocation4 + $0x11c] sm:$0xf]
    %v591 = vld [vmem:[#allocation4 + $0x120] sm:$0xff]
    %v592 = vld [vmem:[#allocation4 + $0x128] sm:$0xf]
    %v593 = vld [vmem:[#allocation4 + $0x12c] sm:$0xff]
    %v594 = vld [vmem:[#allocation4 + $0x134] sm:$0xf]
    %v595 = vld [vmem:[#allocation4 + $0x138] sm:$0xff]
    %v596 = vld [vmem:[#allocation4 + $0x140] sm:$0xf]
    %v597 = vld [vmem:[#allocation4 + $0x144] sm:$0xff]
    %v598 = vld [vmem:[#allocation4 + $0x14c] sm:$0xf]
    %v599 = vld [vmem:[#allocation4 + $0x150] sm:$0xff]
    %v600 = vld [vmem:[#allocation4 + $0x158] sm:$0xf]
    %v601 = vld [vmem:[#allocation4 + $0x15c] sm:$0xff]
    %v602 = vld [vmem:[#allocation4 + $0x164] sm:$0xf]
    %v603 = vld [vmem:[#allocation4 + $0x168] sm:$0xff]
    %v604 = vld [vmem:[#allocation4 + $0x170] sm:$0xf]
    %v605 = vld [vmem:[#allocation4 + $0x174] sm:$0xff]
    %v606 = vld [vmem:[#allocation4 + $0x17c] sm:$0xf]
    %v607 = vld [vmem:[#allocation4 + $0x180] sm:$0xff]
    %v608 = vld [vmem:[#allocation4 + $0x188] sm:$0xf]
    %v609 = vld [vmem:[#allocation4 + $0x18c] sm:$0xff]
    %v610 = vld [vmem:[#allocation4 + $0x194] sm:$0xf]
    %v611 = vld [vmem:[#allocation4 + $0x198] sm:$0xff]
    %v612 = vld [vmem:[#allocation4 + $0x1a0] sm:$0xf]
    %v613 = vld [vmem:[#allocation4 + $0x1a4] sm:$0xff]
    %v614 = vld [vmem:[#allocation4 + $0x1ac] sm:$0xf]
    %v615 = vld [vmem:[#allocation4 + $0x1b0] sm:$0xff]
    %v616 = vld [vmem:[#allocation4 + $0x1b8] sm:$0xf]
    %v617 = vld [vmem:[#allocation4 + $0x1bc] sm:$0xff]
    %v618 = vld [vmem:[#allocation4 + $0x1c4] sm:$0xf]
    %v619 = vld [vmem:[#allocation4 + $0x1c8] sm:$0xff]
    %v620 = vld [vmem:[#allocation4 + $0x1d0] sm:$0xf]
    %v621 = vld [vmem:[#allocation4 + $0x1d4] sm:$0xff]
    %v622 = vld [vmem:[#allocation4 + $0x1dc] sm:$0xf]
    %v623 = vld [vmem:[#allocation4 + $0x1e0] sm:$0xff]
    %v624 = vld [vmem:[#allocation4 + $0x1e8] sm:$0xf]
    %v625 = vld [vmem:[#allocation4 + $0x1ec] sm:$0xff]
    %v626 = vld [vmem:[#allocation4 + $0x1f4] sm:$0xf]
    %v627 = vld [vmem:[#allocation4 + $0x1f8] sm:$0xff]
    %v628 = vld [vmem:[#allocation4 + $0x200] sm:$0xf]
    %v629 = vld [vmem:[#allocation4 + $0x204] sm:$0xff]
    %v630 = vld [vmem:[#allocation4 + $0x20c] sm:$0xf]
    %v631 = vld [vmem:[#allocation4 + $0x210] sm:$0xff]
    %v632 = vld [vmem:[#allocation4 + $0x218] sm:$0xf]
    %v633 = vld [vmem:[#allocation4 + $0x21c] sm:$0xff]
    %v634 = vld [vmem:[#allocation4 + $0x224] sm:$0xf]
    %v635 = vld [vmem:[#allocation4 + $0x228] sm:$0xff]
    %v636 = vld [vmem:[#allocation4 + $0x230] sm:$0xf]
    %v637 = vld [vmem:[#allocation4 + $0x234] sm:$0xff]
    %v638 = vld [vmem:[#allocation4 + $0x23c] sm:$0xf]
    %v735 = vunpack.c.l.b16 %v543
    %v736 = vunpack.c.h.b16 %v543
    %v737 = vunpack.c.l.b16 %v544
    %v738 = vunpack.c.l.b16 %v545
    %v739 = vunpack.c.h.b16 %v545
    %v740 = vunpack.c.l.b16 %v546
    %v741 = vunpack.c.l.b16 %v547
    %v742 = vunpack.c.h.b16 %v547
    %v743 = vunpack.c.l.b16 %v548
    %v744 = vunpack.c.l.b16 %v549
    %v745 = vunpack.c.h.b16 %v549
    %v746 = vunpack.c.l.b16 %v550
    %v747 = vunpack.c.l.b16 %v551
    %v748 = vunpack.c.h.b16 %v551
    %v749 = vunpack.c.l.b16 %v552
    %v750 = vunpack.c.l.b16 %v553
    %v751 = vunpack.c.h.b16 %v553
    %v752 = vunpack.c.l.b16 %v554
    %v753 = vunpack.c.l.b16 %v555
    %v754 = vunpack.c.h.b16 %v555
    %v755 = vunpack.c.l.b16 %v556
    %v756 = vunpack.c.l.b16 %v557
    %v757 = vunpack.c.h.b16 %v557
    %v758 = vunpack.c.l.b16 %v558
    %v759 = vunpack.c.l.b16 %v559
    %v760 = vunpack.c.h.b16 %v559
    %v761 = vunpack.c.l.b16 %v560
    %v762 = vunpack.c.l.b16 %v561
    %v763 = vunpack.c.h.b16 %v561
    %v764 = vunpack.c.l.b16 %v562
    %v765 = vunpack.c.l.b16 %v563
    %v766 = vunpack.c.h.b16 %v563
    %v767 = vunpack.c.l.b16 %v564
    %v768 = vunpack.c.l.b16 %v565
    %v769 = vunpack.c.h.b16 %v565
    %v770 = vunpack.c.l.b16 %v566
    %v771 = vunpack.c.l.b16 %v567
    %v772 = vunpack.c.h.b16 %v567
    %v773 = vunpack.c.l.b16 %v568
    %v774 = vunpack.c.l.b16 %v569
    %v775 = vunpack.c.h.b16 %v569
    %v776 = vunpack.c.l.b16 %v570
    %v777 = vunpack.c.l.b16 %v571
    %v778 = vunpack.c.h.b16 %v571
    %v779 = vunpack.c.l.b16 %v572
    %v780 = vunpack.c.l.b16 %v573
    %v781 = vunpack.c.h.b16 %v573
    %v782 = vunpack.c.l.b16 %v574
    %v783 = vunpack.c.l.b16 %v575
    %v784 = vunpack.c.h.b16 %v575
    %v785 = vunpack.c.l.b16 %v576
    %v786 = vunpack.c.l.b16 %v577
    %v787 = vunpack.c.h.b16 %v577
    %v788 = vunpack.c.l.b16 %v578
    %v789 = vunpack.c.l.b16 %v579
    %v790 = vunpack.c.h.b16 %v579
    %v791 = vunpack.c.l.b16 %v580
    %v792 = vunpack.c.l.b16 %v581
    %v793 = vunpack.c.h.b16 %v581
    %v794 = vunpack.c.l.b16 %v582
    %v795 = vunpack.c.l.b16 %v583
    %v796 = vunpack.c.h.b16 %v583
    %v797 = vunpack.c.l.b16 %v584
    %v798 = vunpack.c.l.b16 %v585
    %v799 = vunpack.c.h.b16 %v585
    %v800 = vunpack.c.l.b16 %v586
    %v801 = vunpack.c.l.b16 %v587
    %v802 = vunpack.c.h.b16 %v587
    %v803 = vunpack.c.l.b16 %v588
    %v804 = vunpack.c.l.b16 %v589
    %v805 = vunpack.c.h.b16 %v589
    %v806 = vunpack.c.l.b16 %v590
    %v807 = vunpack.c.l.b16 %v591
    %v808 = vunpack.c.h.b16 %v591
    %v809 = vunpack.c.l.b16 %v592
    %v810 = vunpack.c.l.b16 %v593
    %v811 = vunpack.c.h.b16 %v593
    %v812 = vunpack.c.l.b16 %v594
    %v813 = vunpack.c.l.b16 %v595
    %v814 = vunpack.c.h.b16 %v595
    %v815 = vunpack.c.l.b16 %v596
    %v816 = vunpack.c.l.b16 %v597
    %v817 = vunpack.c.h.b16 %v597
    %v818 = vunpack.c.l.b16 %v598
    %v819 = vunpack.c.l.b16 %v599
    %v820 = vunpack.c.h.b16 %v599
    %v821 = vunpack.c.l.b16 %v600
    %v822 = vunpack.c.l.b16 %v601
    %v823 = vunpack.c.h.b16 %v601
    %v824 = vunpack.c.l.b16 %v602
    %v825 = vunpack.c.l.b16 %v603
    %v826 = vunpack.c.h.b16 %v603
    %v827 = vunpack.c.l.b16 %v604
    %v828 = vunpack.c.l.b16 %v605
    %v829 = vunpack.c.h.b16 %v605
    %v830 = vunpack.c.l.b16 %v606
    %v831 = vunpack.c.l.b16 %v607
    %v832 = vunpack.c.h.b16 %v607
    %v833 = vunpack.c.l.b16 %v608
    %v834 = vunpack.c.l.b16 %v609
    %v835 = vunpack.c.h.b16 %v609
    %v836 = vunpack.c.l.b16 %v610
    %v837 = vunpack.c.l.b16 %v611
    %v838 = vunpack.c.h.b16 %v611
    %v839 = vunpack.c.l.b16 %v612
    %v840 = vunpack.c.l.b16 %v613
    %v841 = vunpack.c.h.b16 %v613
    %v842 = vunpack.c.l.b16 %v614
    %v843 = vunpack.c.l.b16 %v615
    %v844 = vunpack.c.h.b16 %v615
    %v845 = vunpack.c.l.b16 %v616
    %v846 = vunpack.c.l.b16 %v617
    %v847 = vunpack.c.h.b16 %v617
    %v848 = vunpack.c.l.b16 %v618
    %v849 = vunpack.c.l.b16 %v619
    %v850 = vunpack.c.h.b16 %v619
    %v851 = vunpack.c.l.b16 %v620
    %v852 = vunpack.c.l.b16 %v621
    %v853 = vunpack.c.h.b16 %v621
    %v854 = vunpack.c.l.b16 %v622
    %v855 = vunpack.c.l.b16 %v623
    %v856 = vunpack.c.h.b16 %v623
    %v857 = vunpack.c.l.b16 %v624
    %v858 = vunpack.c.l.b16 %v625
    %v859 = vunpack.c.h.b16 %v625
    %v860 = vunpack.c.l.b16 %v626
    %v861 = vunpack.c.l.b16 %v627
    %v862 = vunpack.c.h.b16 %v627
    %v863 = vunpack.c.l.b16 %v628
    %v864 = vunpack.c.l.b16 %v629
    %v865 = vunpack.c.h.b16 %v629
    %v866 = vunpack.c.l.b16 %v630
    %v867 = vunpack.c.l.b16 %v631
    %v868 = vunpack.c.h.b16 %v631
    %v869 = vunpack.c.l.b16 %v632
    %v870 = vunpack.c.l.b16 %v633
    %v871 = vunpack.c.h.b16 %v633
    %v872 = vunpack.c.l.b16 %v634
    %v873 = vunpack.c.l.b16 %v635
    %v874 = vunpack.c.h.b16 %v635
    %v875 = vunpack.c.l.b16 %v636
    %v876 = vunpack.c.l.b16 %v637
    %v877 = vunpack.c.h.b16 %v637
    %v878 = vunpack.c.l.b16 %v638
    %v879 = vpack.c.b16 %v738, %v735
    %v880 = vpack.c.b16 %v739, %v736
    %v881 = vpack.c.b16 %v740, %v737
    %v882 = vpack.c.b16 %v744, %v741
    %v883 = vpack.c.b16 %v745, %v742
    %v884 = vpack.c.b16 %v746, %v743
    %v885 = vpack.c.b16 %v750, %v747
    %v886 = vpack.c.b16 %v751, %v748
    %v887 = vpack.c.b16 %v752, %v749
    %v888 = vpack.c.b16 %v756, %v753
    %v889 = vpack.c.b16 %v757, %v754
    %v890 = vpack.c.b16 %v758, %v755
    %v891 = vpack.c.b16 %v762, %v759
    %v892 = vpack.c.b16 %v763, %v760
    %v893 = vpack.c.b16 %v764, %v761
    %v894 = vpack.c.b16 %v768, %v765
    %v895 = vpack.c.b16 %v769, %v766
    %v896 = vpack.c.b16 %v770, %v767
    %v897 = vpack.c.b16 %v774, %v771
    %v898 = vpack.c.b16 %v775, %v772
    %v899 = vpack.c.b16 %v776, %v773
    %v900 = vpack.c.b16 %v780, %v777
    %v901 = vpack.c.b16 %v781, %v778
    %v902 = vpack.c.b16 %v782, %v779
    %v903 = vpack.c.b16 %v786, %v783
    %v904 = vpack.c.b16 %v787, %v784
    %v905 = vpack.c.b16 %v788, %v785
    %v906 = vpack.c.b16 %v792, %v789
    %v907 = vpack.c.b16 %v793, %v790
    %v908 = vpack.c.b16 %v794, %v791
    %v909 = vpack.c.b16 %v798, %v795
    %v910 = vpack.c.b16 %v799, %v796
    %v911 = vpack.c.b16 %v800, %v797
    %v912 = vpack.c.b16 %v804, %v801
    %v913 = vpack.c.b16 %v805, %v802
    %v914 = vpack.c.b16 %v806, %v803
    %v915 = vpack.c.b16 %v810, %v807
    %v916 = vpack.c.b16 %v811, %v808
    %v917 = vpack.c.b16 %v812, %v809
    %v918 = vpack.c.b16 %v816, %v813
    %v919 = vpack.c.b16 %v817, %v814
    %v920 = vpack.c.b16 %v818, %v815
    %v921 = vpack.c.b16 %v822, %v819
    %v922 = vpack.c.b16 %v823, %v820
    %v923 = vpack.c.b16 %v824, %v821
    %v924 = vpack.c.b16 %v828, %v825
    %v925 = vpack.c.b16 %v829, %v826
    %v926 = vpack.c.b16 %v830, %v827
    %v927 = vpack.c.b16 %v834, %v831
    %v928 = vpack.c.b16 %v835, %v832
    %v929 = vpack.c.b16 %v836, %v833
    %v930 = vpack.c.b16 %v840, %v837
    %v931 = vpack.c.b16 %v841, %v838
    %v932 = vpack.c.b16 %v842, %v839
    %v933 = vpack.c.b16 %v846, %v843
    %v934 = vpack.c.b16 %v847, %v844
    %v935 = vpack.c.b16 %v848, %v845
    %v936 = vpack.c.b16 %v852, %v849
    %v937 = vpack.c.b16 %v853, %v850
    %v938 = vpack.c.b16 %v854, %v851
    %v939 = vpack.c.b16 %v858, %v855
    %v940 = vpack.c.b16 %v859, %v856
    %v941 = vpack.c.b16 %v860, %v857
    %v942 = vpack.c.b16 %v864, %v861
    %v943 = vpack.c.b16 %v865, %v862
    %v944 = vpack.c.b16 %v866, %v863
    %v945 = vpack.c.b16 %v870, %v867
    %v946 = vpack.c.b16 %v871, %v868
    %v947 = vpack.c.b16 %v872, %v869
    %v948 = vpack.c.b16 %v876, %v873
    %v949 = vpack.c.b16 %v877, %v874
    %v950 = vpack.c.b16 %v878, %v875
    %1023 = vmatprep.subr.bf16.mxu0 %v880
    %1024 = vmatpush1.bf16.msra.mxu0 %v879
    %1025 = vmatprep.subr.bf16.mxu0 %v883
    %1026 = vmatpush1.bf16.msra.mxu0 %v882
    %1027 = vmatprep.subr.bf16.mxu0 %v886
    %1028 = vmatpush1.bf16.msra.mxu0 %v885
    %1029 = vmatprep.subr.bf16.mxu0 %v889
    %1030 = vmatpush1.bf16.msra.mxu0 %v888
    %1031 = vmatprep.subr.bf16.mxu0 %v892
    %1032 = vmatpush1.bf16.msra.mxu0 %v891
    %1033 = vmatprep.subr.bf16.mxu0 %v895
    %1034 = vmatpush1.bf16.msra.mxu0 %v894
    %1035 = vmatprep.subr.bf16.mxu0 %v898
    %1036 = vmatpush1.bf16.msra.mxu0 %v897
    %1037 = vmatprep.subr.bf16.mxu0 %v901
    %1038 = vmatpush1.bf16.msra.mxu0 %v900
    %1039 = vmatprep.subr.bf16.mxu0 %v904
    %1040 = vmatpush1.bf16.msra.mxu0 %v903
    %1041 = vmatprep.subr.bf16.mxu0 %v907
    %1042 = vmatpush1.bf16.msra.mxu0 %v906
    %1043 = vmatprep.subr.bf16.mxu0 %v910
    %1044 = vmatpush1.bf16.msra.mxu0 %v909
    %1045 = vmatprep.subr.bf16.mxu0 %v913
    %1046 = vmatpush1.bf16.msra.mxu0 %v912
    %1047 = vmatprep.subr.bf16.mxu0 %v916
    %1048 = vmatpush1.bf16.msra.mxu0 %v915
    %1049 = vmatprep.subr.bf16.mxu0 %v919
    %1050 = vmatpush1.bf16.msra.mxu0 %v918
    %1051 = vmatprep.subr.bf16.mxu0 %v922
    %1052 = vmatpush1.bf16.msra.mxu0 %v921
    %1053 = vmatprep.subr.bf16.mxu0 %v925
    %1054 = vmatpush1.bf16.msra.mxu0 %v924
    %1055 = vmatprep.mubr.bf16.mxu0 %v532
    %1056 = vmatmul.mubr.bf16.gmra.mrb[0].mxu0 %v531
    %v1057 = vpop.f32.mrb[0].mxu0
    %v1058 = vadd.f32 0.0, %v1057
    %v1059 = vpop.f32.mrb[0].mxu0
    %v1060 = vadd.f32 0.0, %v1059
    %v1061 = vpop.f32.mrb[0].mxu0
    %v1062 = vadd.f32 0.0, %v1061
    %v1063 = vpop.f32.mrb[0].mxu0
    %v1064 = vadd.f32 0.0, %v1063
    %1065 = vmatprep.mubr.bf16.mxu0 %v535
    %1066 = vmatmul.mubr.bf16.gmra.mrb[0].mxu0 %v534
    %v1067 = vpop.f32.mrb[0].mxu0
    %v1068 = vadd.f32 0.0, %v1067
    %v1069 = vpop.f32.mrb[0].mxu0
    %v1070 = vadd.f32 0.0, %v1069
    %v1071 = vpop.f32.mrb[0].mxu0
    %v1072 = vadd.f32 0.0, %v1071
    %v1073 = vpop.f32.mrb[0].mxu0
    %v1074 = vadd.f32 0.0, %v1073
    %1075 = vmatprep.mubr.bf16.mxu0 %v538
    %1076 = vmatmul.mubr.bf16.gmra.mrb[0].mxu0 %v537
    %v1077 = vpop.f32.mrb[0].mxu0
    %v1078 = vadd.f32 0.0, %v1077
    %v1079 = vpop.f32.mrb[0].mxu0
    %v1080 = vadd.f32 0.0, %v1079
    %v1081 = vpop.f32.mrb[0].mxu0
    %v1082 = vadd.f32 0.0, %v1081
    %v1083 = vpop.f32.mrb[0].mxu0
    %v1084 = vadd.f32 0.0, %v1083
    %1085 = vmatprep.mubr.bf16.mxu0 %v541
    %1086 = vmatmul.mubr.bf16.gmra.mrb[0].mxu0 %v540
    %v1087 = vpop.f32.mrb[0].mxu0
    %v1088 = vadd.f32 0.0, %v1087
    %v1089 = vpop.f32.mrb[0].mxu0
    %v1090 = vadd.f32 0.0, %v1089
    %v1091 = vpop.f32.mrb[0].mxu0
    %v1092 = vadd.f32 0.0, %v1091
    %v1093 = vpop.f32.mrb[0].mxu0
    %v1094 = vadd.f32 0.0, %v1093
    %1095 = vdwg.mxu0
    %1096 = vmatprep.subr.bf16.mxu0 %v928
    %1097 = vmatpush1.bf16.msra.mxu0 %v927
    %1098 = vmatprep.subr.bf16.mxu0 %v931
    %1099 = vmatpush1.bf16.msra.mxu0 %v930
    %1100 = vmatprep.subr.bf16.mxu0 %v934
    %1101 = vmatpush1.bf16.msra.mxu0 %v933
    %1102 = vmatprep.subr.bf16.mxu0 %v937
    %1103 = vmatpush1.bf16.msra.mxu0 %v936
    %1104 = vmatprep.subr.bf16.mxu0 %v940
    %1105 = vmatpush1.bf16.msra.mxu0 %v939
    %1106 = vmatprep.subr.bf16.mxu0 %v943
    %1107 = vmatpush1.bf16.msra.mxu0 %v942
    %1108 = vmatprep.subr.bf16.mxu0 %v946
    %1109 = vmatpush1.bf16.msra.mxu0 %v945
    %1110 = vmatprep.subr.bf16.mxu0 %v949
    %1111 = vmatpush1.bf16.msra.mxu0 %v948
    %1112 = vmatprep.subr.bf16.mxu0 0
    %1113 = vmatpush1.bf16.msra.mxu0 0
    %1114 = vmatprep.subr.bf16.mxu0 0
    %1115 = vmatpush1.bf16.msra.mxu0 0
    %1116 = vmatprep.subr.bf16.mxu0 0
    %1117 = vmatpush1.bf16.msra.mxu0 0
    %1118 = vmatprep.subr.bf16.mxu0 0
    %1119 = vmatpush1.bf16.msra.mxu0 0
    %1120 = vmatprep.subr.bf16.mxu0 0
    %1121 = vmatpush1.bf16.msra.mxu0 0
    %1122 = vmatprep.subr.bf16.mxu0 0
    %1123 = vmatpush1.bf16.msra.mxu0 0
    %1124 = vmatprep.subr.bf16.mxu0 0
    %1125 = vmatpush1.bf16.msra.mxu0 0
    %1126 = vmatprep.subr.bf16.mxu0 0
    %1127 = vmatpush1.bf16.msra.mxu0 0
    %1128 = vmatprep.mubr.bf16.mxu0 0
    %1129 = vmatmul.mubr.bf16.gmra.mrb[0].mxu0 %v533
    %v1130 = vpop.f32.mrb[0].mxu0
    %v1131 = vadd.f32 %v1058, %v1130
    %v1132 = vpop.f32.mrb[0].mxu0
    %v1133 = vadd.f32 %v1060, %v1132
    %v1134 = vpop.f32.mrb[0].mxu0
    %v1135 = vadd.f32 %v1062, %v1134
    %v1136 = vpop.f32.mrb[0].mxu0
    %v1137 = vadd.f32 %v1064, %v1136
    %1138 = vmatprep.mubr.bf16.mxu0 0
    %1139 = vmatmul.mubr.bf16.gmra.mrb[0].mxu0 %v536
    %v1140 = vpop.f32.mrb[0].mxu0
    %v1141 = vadd.f32 %v1068, %v1140
    %v1142 = vpop.f32.mrb[0].mxu0
    %v1143 = vadd.f32 %v1070, %v1142
    %v1144 = vpop.f32.mrb[0].mxu0
    %v1145 = vadd.f32 %v1072, %v1144
    %v1146 = vpop.f32.mrb[0].mxu0
    %v1147 = vadd.f32 %v1074, %v1146
    %1148 = vmatprep.mubr.bf16.mxu0 0
    %1149 = vmatmul.mubr.bf16.gmra.mrb[0].mxu0 %v539
    %v1150 = vpop.f32.mrb[0].mxu0
    %v1151 = vadd.f32 %v1078, %v1150
    %v1152 = vpop.f32.mrb[0].mxu0
    %v1153 = vadd.f32 %v1080, %v1152
    %v1154 = vpop.f32.mrb[0].mxu0
    %v1155 = vadd.f32 %v1082, %v1154
    %v1156 = vpop.f32.mrb[0].mxu0
    %v1157 = vadd.f32 %v1084, %v1156
    %1158 = vmatprep.mubr.bf16.mxu0 0
    %1159 = vmatmul.mubr.bf16.gmra.mrb[0].mxu0 %v542
    %v1160 = vpop.f32.mrb[0].mxu0
    %v1161 = vadd.f32 %v1088, %v1160
    %v1162 = vpop.f32.mrb[0].mxu0
    %v1163 = vadd.f32 %v1090, %v1162
    %v1164 = vpop.f32.mrb[0].mxu0
    %v1165 = vadd.f32 %v1092, %v1164
    %v1166 = vpop.f32.mrb[0].mxu0
    %v1167 = vadd.f32 %v1094, %v1166
    %1168 = vdwg.mxu0
    %1169 = vmatprep.subr.bf16.mxu0 0
    %1170 = vmatpush1.bf16.msra.mxu0 %v881
    %1171 = vmatprep.subr.bf16.mxu0 0
    %1172 = vmatpush1.bf16.msra.mxu0 %v884
    %1173 = vmatprep.subr.bf16.mxu0 0
    %1174 = vmatpush1.bf16.msra.mxu0 %v887
    %1175 = vmatprep.subr.bf16.mxu0 0
    %1176 = vmatpush1.bf16.msra.mxu0 %v890
    %1177 = vmatprep.subr.bf16.mxu0 0
    %1178 = vmatpush1.bf16.msra.mxu0 %v893
    %1179 = vmatprep.subr.bf16.mxu0 0
    %1180 = vmatpush1.bf16.msra.mxu0 %v896
    %1181 = vmatprep.subr.bf16.mxu0 0
    %1182 = vmatpush1.bf16.msra.mxu0 %v899
    %1183 = vmatprep.subr.bf16.mxu0 0
    %1184 = vmatpush1.bf16.msra.mxu0 %v902
    %1185 = vmatprep.subr.bf16.mxu0 0
    %1186 = vmatpush1.bf16.msra.mxu0 %v905
    %1187 = vmatprep.subr.bf16.mxu0 0
    %1188 = vmatpush1.bf16.msra.mxu0 %v908
    %1189 = vmatprep.subr.bf16.mxu0 0
    %1190 = vmatpush1.bf16.msra.mxu0 %v911
    %1191 = vmatprep.subr.bf16.mxu0 0
    %1192 = vmatpush1.bf16.msra.mxu0 %v914
    %1193 = vmatprep.subr.bf16.mxu0 0
    %1194 = vmatpush1.bf16.msra.mxu0 %v917
    %1195 = vmatprep.subr.bf16.mxu0 0
    %1196 = vmatpush1.bf16.msra.mxu0 %v920
    %1197 = vmatprep.subr.bf16.mxu0 0
    %1198 = vmatpush1.bf16.msra.mxu0 %v923
    %1199 = vmatprep.subr.bf16.mxu0 0
    %1200 = vmatpush1.bf16.msra.mxu0 %v926
    %1201 = vmatprep.mubr.bf16.mxu0 %v532
    %1202 = vmatmul.mubr.bf16.gmra.mrb[0].mxu0 %v531
    %v1203 = vpop.f32.mrb[0].mxu0
    %v1204 = vadd.f32 0.0, %v1203
    %v1205 = vpop.f32.mrb[0].mxu0
    %v1206 = vpop.f32.mrb[0].mxu0
    %v1207 = vadd.f32 0.0, %v1206
    %v1208 = vpop.f32.mrb[0].mxu0
    %1209 = vmatprep.mubr.bf16.mxu0 %v535
    %1210 = vmatmul.mubr.bf16.gmra.mrb[0].mxu0 %v534
    %v1211 = vpop.f32.mrb[0].mxu0
    %v1212 = vadd.f32 0.0, %v1211
    %v1213 = vpop.f32.mrb[0].mxu0
    %v1214 = vpop.f32.mrb[0].mxu0
    %v1215 = vadd.f32 0.0, %v1214
    %v1216 = vpop.f32.mrb[0].mxu0
    %1217 = vmatprep.mubr.bf16.mxu0 %v538
    %1218 = vmatmul.mubr.bf16.gmra.mrb[0].mxu0 %v537
    %v1219 = vpop.f32.mrb[0].mxu0
    %v1220 = vadd.f32 0.0, %v1219
    %v1221 = vpop.f32.mrb[0].mxu0
    %v1222 = vpop.f32.mrb[0].mxu0
    %v1223 = vadd.f32 0.0, %v1222
    %v1224 = vpop.f32.mrb[0].mxu0
    %1225 = vmatprep.mubr.bf16.mxu0 %v541
    %1226 = vmatmul.mubr.bf16.gmra.mrb[0].mxu0 %v540
    %v1227 = vpop.f32.mrb[0].mxu0
    %v1228 = vadd.f32 0.0, %v1227
    %v1229 = vpop.f32.mrb[0].mxu0
    %v1230 = vpop.f32.mrb[0].mxu0
    %v1231 = vadd.f32 0.0, %v1230
    %v1232 = vpop.f32.mrb[0].mxu0
    %1233 = vdwg.mxu0
    %1234 = vmatprep.subr.bf16.mxu0 0
    %1235 = vmatpush1.bf16.msra.mxu0 %v929
    %1236 = vmatprep.subr.bf16.mxu0 0
    %1237 = vmatpush1.bf16.msra.mxu0 %v932
    %1238 = vmatprep.subr.bf16.mxu0 0
    %1239 = vmatpush1.bf16.msra.mxu0 %v935
    %1240 = vmatprep.subr.bf16.mxu0 0
    %1241 = vmatpush1.bf16.msra.mxu0 %v938
    %1242 = vmatprep.subr.bf16.mxu0 0
    %1243 = vmatpush1.bf16.msra.mxu0 %v941
    %1244 = vmatprep.subr.bf16.mxu0 0
    %1245 = vmatpush1.bf16.msra.mxu0 %v944
    %1246 = vmatprep.subr.bf16.mxu0 0
    %1247 = vmatpush1.bf16.msra.mxu0 %v947
    %1248 = vmatprep.subr.bf16.mxu0 0
    %1249 = vmatpush1.bf16.msra.mxu0 %v950
    %1250 = vmatprep.subr.bf16.mxu0 0
    %1251 = vmatpush1.bf16.msra.mxu0 0
    %1252 = vmatprep.subr.bf16.mxu0 0
    %1253 = vmatpush1.bf16.msra.mxu0 0
    %1254 = vmatprep.subr.bf16.mxu0 0
    %1255 = vmatpush1.bf16.msra.mxu0 0
    %1256 = vmatprep.subr.bf16.mxu0 0
    %1257 = vmatpush1.bf16.msra.mxu0 0
    %1258 = vmatprep.subr.bf16.mxu0 0
    %1259 = vmatpush1.bf16.msra.mxu0 0
    %1260 = vmatprep.subr.bf16.mxu0 0
    %1261 = vmatpush1.bf16.msra.mxu0 0
    %1262 = vmatprep.subr.bf16.mxu0 0
    %1263 = vmatpush1.bf16.msra.mxu0 0
    %1264 = vmatprep.subr.bf16.mxu0 0
    %1265 = vmatpush1.bf16.msra.mxu0 0
    %1266 = vmatprep.mubr.bf16.mxu0 0
    %1267 = vmatmul.mubr.bf16.gmra.mrb[0].mxu0 %v533
    %v1268 = vpop.f32.mrb[0].mxu0
    %v1269 = vadd.f32 %v1204, %v1268
    %v1270 = vpop.f32.mrb[0].mxu0
    %v1271 = vpop.f32.mrb[0].mxu0
    %v1272 = vadd.f32 %v1207, %v1271
    %v1273 = vpop.f32.mrb[0].mxu0
    %1274 = vmatprep.mubr.bf16.mxu0 0
    %1275 = vmatmul.mubr.bf16.gmra.mrb[0].mxu0 %v536
    %v1276 = vpop.f32.mrb[0].mxu0
    %v1277 = vadd.f32 %v1212, %v1276
    %v1278 = vpop.f32.mrb[0].mxu0
    %v1279 = vpop.f32.mrb[0].mxu0
    %v1280 = vadd.f32 %v1215, %v1279
    %v1281 = vpop.f32.mrb[0].mxu0
    %1282 = vmatprep.mubr.bf16.mxu0 0
    %1283 = vmatmul.mubr.bf16.gmra.mrb[0].mxu0 %v539
    %v1284 = vpop.f32.mrb[0].mxu0
    %v1285 = vadd.f32 %v1220, %v1284
    %v1286 = vpop.f32.mrb[0].mxu0
    %v1287 = vpop.f32.mrb[0].mxu0
    %v1288 = vadd.f32 %v1223, %v1287
    %v1289 = vpop.f32.mrb[0].mxu0
    %1290 = vmatprep.mubr.bf16.mxu0 0
    %1291 = vmatmul.mubr.bf16.gmra.mrb[0].mxu0 %v542
    %v1292 = vpop.f32.mrb[0].mxu0
    %v1293 = vadd.f32 %v1228, %v1292
    %v1294 = vpop.f32.mrb[0].mxu0
    %v1295 = vpop.f32.mrb[0].mxu0
    %v1296 = vadd.f32 %v1231, %v1295
    %v1297 = vpop.f32.mrb[0].mxu0
    %1298 = vdwg.mxu0
    %s1299 = scalar_lea.vmem %s4, 1
    %v1300 = vld [vmem:[%s1299] ss:$8 sm:$0x7]
    %s1301 = scalar_lea.vmem %s4, 5
    %v1302 = vld [vmem:[%s1301] ss:$8 sm:$0x7]
    %v1303 = vadd.f32 %v1131, %v1135
    %v1304 = vadd.f32 %v1303, %v1141
    %v1305 = vadd.f32 %v1304, %v1145
    %v1306 = vadd.f32 %v1305, %v1151
    %v1307 = vadd.f32 %v1306, %v1155
    %v1308 = vadd.f32 %v1307, %v1161
    %v1309 = vadd.f32 %v1308, %v1165
    %v1310 = vrot.slane %v1309, 4
    %v1311 = vadd.f32 %v1309, %v1310
    %v1312 = vrot.slane %v1311, 2
    %v1313 = vadd.f32 %v1311, %v1312
    %v1314 = vrot.slane %v1313, 1
    %v1315 = vadd.f32 %v1313, %v1314
    %v1316 = vadd.f32 %v1133, %v1137
    %v1317 = vadd.f32 %v1316, %v1143
    %v1318 = vadd.f32 %v1317, %v1147
    %v1319 = vadd.f32 %v1318, %v1153
    %v1320 = vadd.f32 %v1319, %v1157
    %v1321 = vadd.f32 %v1320, %v1163
    %v1322 = vadd.f32 %v1321, %v1167
    %v1323 = vrot.slane %v1322, 4
    %v1324 = vadd.f32 %v1322, %v1323
    %v1325 = vrot.slane %v1324, 2
    %v1326 = vadd.f32 %v1324, %v1325
    %v1327 = vrot.slane %v1326, 1
    %v1328 = vadd.f32 %v1326, %v1327
    %v1329 = vadd.f32 %v1269, %v1272
    %v1330 = vadd.f32 %v1329, %v1277
    %v1331 = vadd.f32 %v1330, %v1280
    %v1332 = vadd.f32 %v1331, %v1285
    %v1333 = vadd.f32 %v1332, %v1288
    %v1334 = vadd.f32 %v1333, %v1293
    %v1335 = vadd.f32 %v1334, %v1296
    %v1336 = vrot.slane %v1335, 4
    %v1337 = vadd.f32 %v1335, %v1336
    %v1338 = vrot.slane %v1337, 2
    %v1339 = vadd.f32 %v1337, %v1338
    %v1340 = vrot.slane %v1339, 1
    %v1341 = vadd.f32 %v1339, %v1340
    %v1342 = vmul.f32 %v1315, %v296
    %v1343 = vmul.f32 %v1328, %v296
    %v1344 = vmul.f32 %v1341, %v296
    %v1345 = vmul.f32 %v1131, %v1131
    %v1346 = vmul.f32 %v1133, %v1133
    %v1347 = vmul.f32 %v1269, %v1269
    %v1348 = vmul.f32 %v1135, %v1135
    %v1349 = vmul.f32 %v1137, %v1137
    %v1350 = vmul.f32 %v1272, %v1272
    %v1351 = vmul.f32 %v1141, %v1141
    %v1352 = vmul.f32 %v1143, %v1143
    %v1353 = vmul.f32 %v1277, %v1277
    %v1354 = vmul.f32 %v1145, %v1145
    %v1355 = vmul.f32 %v1147, %v1147
    %v1356 = vmul.f32 %v1280, %v1280
    %v1357 = vmul.f32 %v1151, %v1151
    %v1358 = vmul.f32 %v1153, %v1153
    %v1359 = vmul.f32 %v1285, %v1285
    %v1360 = vmul.f32 %v1155, %v1155
    %v1361 = vmul.f32 %v1157, %v1157
    %v1362 = vmul.f32 %v1288, %v1288
    %v1363 = vmul.f32 %v1161, %v1161
    %v1364 = vmul.f32 %v1163, %v1163
    %v1365 = vmul.f32 %v1293, %v1293
    %v1366 = vmul.f32 %v1165, %v1165
    %v1367 = vmul.f32 %v1167, %v1167
    %v1368 = vmul.f32 %v1296, %v1296
    %v1369 = vadd.f32 %v1345, %v1348
    %v1370 = vadd.f32 %v1369, %v1351
    %v1371 = vadd.f32 %v1370, %v1354
    %v1372 = vadd.f32 %v1371, %v1357
    %v1373 = vadd.f32 %v1372, %v1360
    %v1374 = vadd.f32 %v1373, %v1363
    %v1375 = vadd.f32 %v1374, %v1366
    %v1376 = vrot.slane %v1375, 4
    %v1377 = vadd.f32 %v1375, %v1376
    %v1378 = vrot.slane %v1377, 2
    %v1379 = vadd.f32 %v1377, %v1378
    %v1380 = vrot.slane %v1379, 1
    %v1381 = vadd.f32 %v1379, %v1380
    %v1382 = vadd.f32 %v1346, %v1349
    %v1383 = vadd.f32 %v1382, %v1352
    %v1384 = vadd.f32 %v1383, %v1355
    %v1385 = vadd.f32 %v1384, %v1358
    %v1386 = vadd.f32 %v1385, %v1361
    %v1387 = vadd.f32 %v1386, %v1364
    %v1388 = vadd.f32 %v1387, %v1367
    %v1389 = vrot.slane %v1388, 4
    %v1390 = vadd.f32 %v1388, %v1389
    %v1391 = vrot.slane %v1390, 2
    %v1392 = vadd.f32 %v1390, %v1391
    %v1393 = vrot.slane %v1392, 1
    %v1394 = vadd.f32 %v1392, %v1393
    %v1395 = vadd.f32 %v1347, %v1350
    %v1396 = vadd.f32 %v1395, %v1353
    %v1397 = vadd.f32 %v1396, %v1356
    %v1398 = vadd.f32 %v1397, %v1359
    %v1399 = vadd.f32 %v1398, %v1362
    %v1400 = vadd.f32 %v1399, %v1365
    %v1401 = vadd.f32 %v1400, %v1368
    %v1402 = vrot.slane %v1401, 4
    %v1403 = vadd.f32 %v1401, %v1402
    %v1404 = vrot.slane %v1403, 2
    %v1405 = vadd.f32 %v1403, %v1404
    %v1406 = vrot.slane %v1405, 1
    %v1407 = vadd.f32 %v1405, %v1406
    %v1408 = vmul.f32 %v1381, %v296
    %v1409 = vmul.f32 %v1394, %v296
    %v1410 = vmul.f32 %v1407, %v296
    %v1411 = vmul.f32 %v1342, %v1342
    %v1412 = vmul.f32 %v1343, %v1343
    %v1413 = vmul.f32 %v1344, %v1344
    %v1414 = vsub.f32 %v1408, %v1411
    %v1415 = vsub.f32 %v1409, %v1412
    %v1416 = vsub.f32 %v1410, %v1413
    %v1417 = vmax.f32 %v1414, 0.0
    %v1418 = vmax.f32 %v1415, 0.0
    %v1419 = vmax.f32 %v1416, 0.0
    %v1420 = vadd.f32 %v1417, 1e-05
    %v1421 = vadd.f32 %v1418, 1e-05
    %v1422 = vadd.f32 %v1419, 1e-05
    %v1423 = vrsqrt.pop %v1420
    %v1424 = vrsqrt.pop %v1421
    %v1425 = vrsqrt.pop %v1422
    %v1427 = vlaneseq
    %v1428 = vshrl.u32 %v1427, 7
    %v1429 = vsub.s32 0, %v1428
    %v1430 = vrot.slane %v1300, %v1429
    %v1431 = vlaneseq
    %v1432 = vshrl.u32 %v1431, 7
    %v1433 = vsub.s32 1, %v1432
    %v1434 = vrot.slane %v1300, %v1433
    %v1435 = vlaneseq
    %v1436 = vshrl.u32 %v1435, 7
    %v1437 = vsub.s32 2, %v1436
    %v1438 = vrot.slane %v1300, %v1437
    %v1442 = vmul.f32 %v1423, %v1430
    %v1443 = vmul.f32 %v1424, %v1434
    %v1444 = vmul.f32 %v1425, %v1438
    %v1445 = vmul.f32 %v1342, %v1442
    %v1446 = vmul.f32 %v1343, %v1443
    %v1447 = vmul.f32 %v1344, %v1444
    %v1451 = vcombine.low %v1445, %v1446
    %v1453 = vunpack.c.l.s4 1966171168
    %v1454 = vunpack.c.0.s8 %v1453
    %v1455 = vlaneseq
    %v1456 = vshrl.u32 %v1455, 7
    %v1457 = vsub.s32 %v1454, %v1456
    %v1458 = vrot.slane %v1451, %v1457
    %v1460 = vunpack.c.l.s4 1966171168
    %v1461 = vunpack.c.0.s8 %v1460
    %v1462 = vlaneseq
    %v1463 = vshrl.u32 %v1462, 7
    %v1464 = vsub.s32 %v1461, %v1463
    %v1465 = vrot.slane %v1447, %v1464
    %v1466 = vcombine.low %v1458, %v1465
    %v1468 = vunpack.c.l.s4 1966171168
    %v1469 = vunpack.c.0.s8 %v1468
    %v1470 = vlaneseq
    %v1471 = vshrl.u32 %v1470, 7
    %v1472 = vsub.s32 %v1469, %v1471
    %v1473 = vrot.slane %v1466, %v1472
    %v1475 = vsub.f32 %v1302, %v1473
    %v1476 = vlaneseq
    %v1477 = vshrl.u32 %v1476, 7
    %v1478 = vsub.s32 0, %v1477
    %v1479 = vrot.slane %v1442, %v1478
    %v1480 = vlaneseq
    %v1481 = vshrl.u32 %v1480, 7
    %v1482 = vsub.s32 0, %v1481
    %v1483 = vrot.slane %v1443, %v1482
    %v1484 = vlaneseq
    %v1485 = vshrl.u32 %v1484, 7
    %v1486 = vsub.s32 0, %v1485
    %v1487 = vrot.slane %v1444, %v1486
    %v1488 = vmul.f32 %v1131, %v1479
    %v1489 = vmul.f32 %v1133, %v1483
    %v1490 = vmul.f32 %v1269, %v1487
    %v1491 = vmul.f32 %v1135, %v1479
    %v1492 = vmul.f32 %v1137, %v1483
    %v1493 = vmul.f32 %v1272, %v1487
    %v1494 = vmul.f32 %v1141, %v1479
    %v1495 = vmul.f32 %v1143, %v1483
    %v1496 = vmul.f32 %v1277, %v1487
    %v1497 = vmul.f32 %v1145, %v1479
    %v1498 = vmul.f32 %v1147, %v1483
    %v1499 = vmul.f32 %v1280, %v1487
    %v1500 = vmul.f32 %v1151, %v1479
    %v1501 = vmul.f32 %v1153, %v1483
    %v1502 = vmul.f32 %v1285, %v1487
    %v1503 = vmul.f32 %v1155, %v1479
    %v1504 = vmul.f32 %v1157, %v1483
    %v1505 = vmul.f32 %v1288, %v1487
    %v1506 = vmul.f32 %v1161, %v1479
    %v1507 = vmul.f32 %v1163, %v1483
    %v1508 = vmul.f32 %v1293, %v1487
    %v1509 = vmul.f32 %v1165, %v1479
    %v1510 = vmul.f32 %v1167, %v1483
    %v1511 = vmul.f32 %v1296, %v1487
    %v1513 = vlaneseq
    %v1514 = vshrl.u32 %v1513, 7
    %v1515 = vsub.s32 0, %v1514
    %v1516 = vrot.slane %v1475, %v1515
    %v1517 = vlaneseq
    %v1518 = vshrl.u32 %v1517, 7
    %v1519 = vsub.s32 1, %v1518
    %v1520 = vrot.slane %v1475, %v1519
    %v1521 = vlaneseq
    %v1522 = vshrl.u32 %v1521, 7
    %v1523 = vsub.s32 2, %v1522
    %v1524 = vrot.slane %v1475, %v1523
    %v1528 = vadd.f32 %v1488, %v1516
    %v1529 = vadd.f32 %v1489, %v1520
    %v1530 = vadd.f32 %v1490, %v1524
    %v1531 = vadd.f32 %v1491, %v1516
    %v1532 = vadd.f32 %v1492, %v1520
    %v1533 = vadd.f32 %v1493, %v1524
    %v1534 = vadd.f32 %v1494, %v1516
    %v1535 = vadd.f32 %v1495, %v1520
    %v1536 = vadd.f32 %v1496, %v1524
    %v1537 = vadd.f32 %v1497, %v1516
    %v1538 = vadd.f32 %v1498, %v1520
    %v1539 = vadd.f32 %v1499, %v1524
    %v1540 = vadd.f32 %v1500, %v1516
    %v1541 = vadd.f32 %v1501, %v1520
    %v1542 = vadd.f32 %v1502, %v1524
    %v1543 = vadd.f32 %v1503, %v1516
    %v1544 = vadd.f32 %v1504, %v1520
    %v1545 = vadd.f32 %v1505, %v1524
    %v1546 = vadd.f32 %v1506, %v1516
    %v1547 = vadd.f32 %v1507, %v1520
    %v1548 = vadd.f32 %v1508, %v1524
    %v1549 = vadd.f32 %v1509, %v1516
    %v1550 = vadd.f32 %v1510, %v1520
    %v1551 = vadd.f32 %v1511, %v1524
    %v1552 = vmax.f32 %v1528, 0.0
    %v1553 = vmax.f32 %v1529, 0.0
    %v1554 = vmax.f32 %v1530, 0.0
    %v1555 = vmax.f32 %v1531, 0.0
    %v1556 = vmax.f32 %v1532, 0.0
    %v1557 = vmax.f32 %v1533, 0.0
    %v1558 = vmax.f32 %v1534, 0.0
    %v1559 = vmax.f32 %v1535, 0.0
    %v1560 = vmax.f32 %v1536, 0.0
    %v1561 = vmax.f32 %v1537, 0.0
    %v1562 = vmax.f32 %v1538, 0.0
    %v1563 = vmax.f32 %v1539, 0.0
    %v1564 = vmax.f32 %v1540, 0.0
    %v1565 = vmax.f32 %v1541, 0.0
    %v1566 = vmax.f32 %v1542, 0.0
    %v1567 = vmax.f32 %v1543, 0.0
    %v1568 = vmax.f32 %v1544, 0.0
    %v1569 = vmax.f32 %v1545, 0.0
    %v1570 = vmax.f32 %v1546, 0.0
    %v1571 = vmax.f32 %v1547, 0.0
    %v1572 = vmax.f32 %v1548, 0.0
    %v1573 = vmax.f32 %v1549, 0.0
    %v1574 = vmax.f32 %v1550, 0.0
    %v1575 = vmax.f32 %v1551, 0.0
    %v1576 = vpack.c.bf16 %v1555, %v1552
    %v1577 = vpack.c.bf16 %v1556, %v1553
    %v1578 = vpack.c.bf16 %v1557, %v1554
    %v1579 = vpack.c.bf16 %v1561, %v1558
    %v1580 = vpack.c.bf16 %v1562, %v1559
    %v1581 = vpack.c.bf16 %v1563, %v1560
    %v1582 = vpack.c.bf16 %v1567, %v1564
    %v1583 = vpack.c.bf16 %v1568, %v1565
    %v1584 = vpack.c.bf16 %v1569, %v1566
    %v1585 = vpack.c.bf16 %v1573, %v1570
    %v1586 = vpack.c.bf16 %v1574, %v1571
    %v1587 = vpack.c.bf16 %v1575, %v1572
    %v1588 = vld [vmem:[#allocation4 + $0x240] sm:$0xff]
    %v1589 = vld [vmem:[#allocation4 + $0x248] sm:$0xf]
    %v1590 = vld [vmem:[#allocation4 + $0x24c] sm:$0xff]
    %v1591 = vld [vmem:[#allocation4 + $0x254] sm:$0xf]
    %v1592 = vld [vmem:[#allocation4 + $0x258] sm:$0xff]
    %v1593 = vld [vmem:[#allocation4 + $0x260] sm:$0xf]
    %v1594 = vld [vmem:[#allocation4 + $0x264] sm:$0xff]
    %v1595 = vld [vmem:[#allocation4 + $0x26c] sm:$0xf]
    %v1596 = vld [vmem:[#allocation4 + $0x270] sm:$0xff]
    %v1597 = vld [vmem:[#allocation4 + $0x278] sm:$0xf]
    %v1598 = vld [vmem:[#allocation4 + $0x27c] sm:$0xff]
    %v1599 = vld [vmem:[#allocation4 + $0x284] sm:$0xf]
    %v1600 = vld [vmem:[#allocation4 + $0x288] sm:$0xff]
    %v1601 = vld [vmem:[#allocation4 + $0x290] sm:$0xf]
    %v1602 = vld [vmem:[#allocation4 + $0x294] sm:$0xff]
    %v1603 = vld [vmem:[#allocation4 + $0x29c] sm:$0xf]
    %v1604 = vld [vmem:[#allocation4 + $0x2a0] sm:$0xff]
    %v1605 = vld [vmem:[#allocation4 + $0x2a8] sm:$0xf]
    %v1606 = vld [vmem:[#allocation4 + $0x2ac] sm:$0xff]
    %v1607 = vld [vmem:[#allocation4 + $0x2b4] sm:$0xf]
    %v1608 = vld [vmem:[#allocation4 + $0x2b8] sm:$0xff]
    %v1609 = vld [vmem:[#allocation4 + $0x2c0] sm:$0xf]
    %v1610 = vld [vmem:[#allocation4 + $0x2c4] sm:$0xff]
    %v1611 = vld [vmem:[#allocation4 + $0x2cc] sm:$0xf]
    %v1612 = vld [vmem:[#allocation4 + $0x2d0] sm:$0xff]
    %v1613 = vld [vmem:[#allocation4 + $0x2d8] sm:$0xf]
    %v1614 = vld [vmem:[#allocation4 + $0x2dc] sm:$0xff]
    %v1615 = vld [vmem:[#allocation4 + $0x2e4] sm:$0xf]
    %v1616 = vld [vmem:[#allocation4 + $0x2e8] sm:$0xff]
    %v1617 = vld [vmem:[#allocation4 + $0x2f0] sm:$0xf]
    %v1618 = vld [vmem:[#allocation4 + $0x2f4] sm:$0xff]
    %v1619 = vld [vmem:[#allocation4 + $0x2fc] sm:$0xf]
    %v1620 = vld [vmem:[#allocation4 + $0x300] sm:$0xff]
    %v1621 = vld [vmem:[#allocation4 + $0x308] sm:$0xf]
    %v1622 = vld [vmem:[#allocation4 + $0x30c] sm:$0xff]
    %v1623 = vld [vmem:[#allocation4 + $0x314] sm:$0xf]
    %v1624 = vld [vmem:[#allocation4 + $0x318] sm:$0xff]
    %v1625 = vld [vmem:[#allocation4 + $0x320] sm:$0xf]
    %v1626 = vld [vmem:[#allocation4 + $0x324] sm:$0xff]
    %v1627 = vld [vmem:[#allocation4 + $0x32c] sm:$0xf]
    %v1628 = vld [vmem:[#allocation4 + $0x330] sm:$0xff]
    %v1629 = vld [vmem:[#allocation4 + $0x338] sm:$0xf]
    %v1630 = vld [vmem:[#allocation4 + $0x33c] sm:$0xff]
    %v1631 = vld [vmem:[#allocation4 + $0x344] sm:$0xf]
    %v1632 = vld [vmem:[#allocation4 + $0x348] sm:$0xff]
    %v1633 = vld [vmem:[#allocation4 + $0x350] sm:$0xf]
    %v1634 = vld [vmem:[#allocation4 + $0x354] sm:$0xff]
    %v1635 = vld [vmem:[#allocation4 + $0x35c] sm:$0xf]
    %v1636 = vld [vmem:[#allocation4 + $0x360] sm:$0xff]
    %v1637 = vld [vmem:[#allocation4 + $0x368] sm:$0xf]
    %v1638 = vld [vmem:[#allocation4 + $0x36c] sm:$0xff]
    %v1639 = vld [vmem:[#allocation4 + $0x374] sm:$0xf]
    %v1640 = vld [vmem:[#allocation4 + $0x378] sm:$0xff]
    %v1641 = vld [vmem:[#allocation4 + $0x380] sm:$0xf]
    %v1642 = vld [vmem:[#allocation4 + $0x384] sm:$0xff]
    %v1643 = vld [vmem:[#allocation4 + $0x38c] sm:$0xf]
    %v1644 = vld [vmem:[#allocation4 + $0x390] sm:$0xff]
    %v1645 = vld [vmem:[#allocation4 + $0x398] sm:$0xf]
    %v1646 = vld [vmem:[#allocation4 + $0x39c] sm:$0xff]
    %v1647 = vld [vmem:[#allocation4 + $0x3a4] sm:$0xf]
    %v1648 = vld [vmem:[#allocation4 + $0x3a8] sm:$0xff]
    %v1649 = vld [vmem:[#allocation4 + $0x3b0] sm:$0xf]
    %v1650 = vld [vmem:[#allocation4 + $0x3b4] sm:$0xff]
    %v1651 = vld [vmem:[#allocation4 + $0x3bc] sm:$0xf]
    %v1652 = vld [vmem:[#allocation4 + $0x3c0] sm:$0xff]
    %v1653 = vld [vmem:[#allocation4 + $0x3c8] sm:$0xf]
    %v1654 = vld [vmem:[#allocation4 + $0x3cc] sm:$0xff]
    %v1655 = vld [vmem:[#allocation4 + $0x3d4] sm:$0xf]
    %v1656 = vld [vmem:[#allocation4 + $0x3d8] sm:$0xff]
    %v1657 = vld [vmem:[#allocation4 + $0x3e0] sm:$0xf]
    %v1658 = vld [vmem:[#allocation4 + $0x3e4] sm:$0xff]
    %v1659 = vld [vmem:[#allocation4 + $0x3ec] sm:$0xf]
    %v1660 = vld [vmem:[#allocation4 + $0x3f0] sm:$0xff]
    %v1661 = vld [vmem:[#allocation4 + $0x3f8] sm:$0xf]
    %v1662 = vld [vmem:[#allocation4 + $0x3fc] sm:$0xff]
    %v1663 = vld [vmem:[#allocation4 + $0x404] sm:$0xf]
    %v1664 = vld [vmem:[#allocation4 + $0x408] sm:$0xff]
    %v1665 = vld [vmem:[#allocation4 + $0x410] sm:$0xf]
    %v1666 = vld [vmem:[#allocation4 + $0x414] sm:$0xff]
    %v1667 = vld [vmem:[#allocation4 + $0x41c] sm:$0xf]
    %v1668 = vld [vmem:[#allocation4 + $0x420] sm:$0xff]
    %v1669 = vld [vmem:[#allocation4 + $0x428] sm:$0xf]
    %v1670 = vld [vmem:[#allocation4 + $0x42c] sm:$0xff]
    %v1671 = vld [vmem:[#allocation4 + $0x434] sm:$0xf]
    %v1672 = vld [vmem:[#allocation4 + $0x438] sm:$0xff]
    %v1673 = vld [vmem:[#allocation4 + $0x440] sm:$0xf]
    %v1674 = vld [vmem:[#allocation4 + $0x444] sm:$0xff]
    %v1675 = vld [vmem:[#allocation4 + $0x44c] sm:$0xf]
    %v1676 = vld [vmem:[#allocation4 + $0x450] sm:$0xff]
    %v1677 = vld [vmem:[#allocation4 + $0x458] sm:$0xf]
    %v1678 = vld [vmem:[#allocation4 + $0x45c] sm:$0xff]
    %v1679 = vld [vmem:[#allocation4 + $0x464] sm:$0xf]
    %v1680 = vld [vmem:[#allocation4 + $0x468] sm:$0xff]
    %v1681 = vld [vmem:[#allocation4 + $0x470] sm:$0xf]
    %v1682 = vld [vmem:[#allocation4 + $0x474] sm:$0xff]
    %v1683 = vld [vmem:[#allocation4 + $0x47c] sm:$0xf]
    %v1780 = vunpack.c.l.b16 %v1588
    %v1781 = vunpack.c.h.b16 %v1588
    %v1782 = vunpack.c.l.b16 %v1589
    %v1783 = vunpack.c.l.b16 %v1590
    %v1784 = vunpack.c.h.b16 %v1590
    %v1785 = vunpack.c.l.b16 %v1591
    %v1786 = vunpack.c.l.b16 %v1592
    %v1787 = vunpack.c.h.b16 %v1592
    %v1788 = vunpack.c.l.b16 %v1593
    %v1789 = vunpack.c.l.b16 %v1594
    %v1790 = vunpack.c.h.b16 %v1594
    %v1791 = vunpack.c.l.b16 %v1595
    %v1792 = vunpack.c.l.b16 %v1596
    %v1793 = vunpack.c.h.b16 %v1596
    %v1794 = vunpack.c.l.b16 %v1597
    %v1795 = vunpack.c.l.b16 %v1598
    %v1796 = vunpack.c.h.b16 %v1598
    %v1797 = vunpack.c.l.b16 %v1599
    %v1798 = vunpack.c.l.b16 %v1600
    %v1799 = vunpack.c.h.b16 %v1600
    %v1800 = vunpack.c.l.b16 %v1601
    %v1801 = vunpack.c.l.b16 %v1602
    %v1802 = vunpack.c.h.b16 %v1602
    %v1803 = vunpack.c.l.b16 %v1603
    %v1804 = vunpack.c.l.b16 %v1604
    %v1805 = vunpack.c.h.b16 %v1604
    %v1806 = vunpack.c.l.b16 %v1605
    %v1807 = vunpack.c.l.b16 %v1606
    %v1808 = vunpack.c.h.b16 %v1606
    %v1809 = vunpack.c.l.b16 %v1607
    %v1810 = vunpack.c.l.b16 %v1608
    %v1811 = vunpack.c.h.b16 %v1608
    %v1812 = vunpack.c.l.b16 %v1609
    %v1813 = vunpack.c.l.b16 %v1610
    %v1814 = vunpack.c.h.b16 %v1610
    %v1815 = vunpack.c.l.b16 %v1611
    %v1816 = vunpack.c.l.b16 %v1612
    %v1817 = vunpack.c.h.b16 %v1612
    %v1818 = vunpack.c.l.b16 %v1613
    %v1819 = vunpack.c.l.b16 %v1614
    %v1820 = vunpack.c.h.b16 %v1614
    %v1821 = vunpack.c.l.b16 %v1615
    %v1822 = vunpack.c.l.b16 %v1616
    %v1823 = vunpack.c.h.b16 %v1616
    %v1824 = vunpack.c.l.b16 %v1617
    %v1825 = vunpack.c.l.b16 %v1618
    %v1826 = vunpack.c.h.b16 %v1618
    %v1827 = vunpack.c.l.b16 %v1619
    %v1828 = vunpack.c.l.b16 %v1620
    %v1829 = vunpack.c.h.b16 %v1620
    %v1830 = vunpack.c.l.b16 %v1621
    %v1831 = vunpack.c.l.b16 %v1622
    %v1832 = vunpack.c.h.b16 %v1622
    %v1833 = vunpack.c.l.b16 %v1623
    %v1834 = vunpack.c.l.b16 %v1624
    %v1835 = vunpack.c.h.b16 %v1624
    %v1836 = vunpack.c.l.b16 %v1625
    %v1837 = vunpack.c.l.b16 %v1626
    %v1838 = vunpack.c.h.b16 %v1626
    %v1839 = vunpack.c.l.b16 %v1627
    %v1840 = vunpack.c.l.b16 %v1628
    %v1841 = vunpack.c.h.b16 %v1628
    %v1842 = vunpack.c.l.b16 %v1629
    %v1843 = vunpack.c.l.b16 %v1630
    %v1844 = vunpack.c.h.b16 %v1630
    %v1845 = vunpack.c.l.b16 %v1631
    %v1846 = vunpack.c.l.b16 %v1632
    %v1847 = vunpack.c.h.b16 %v1632
    %v1848 = vunpack.c.l.b16 %v1633
    %v1849 = vunpack.c.l.b16 %v1634
    %v1850 = vunpack.c.h.b16 %v1634
    %v1851 = vunpack.c.l.b16 %v1635
    %v1852 = vunpack.c.l.b16 %v1636
    %v1853 = vunpack.c.h.b16 %v1636
    %v1854 = vunpack.c.l.b16 %v1637
    %v1855 = vunpack.c.l.b16 %v1638
    %v1856 = vunpack.c.h.b16 %v1638
    %v1857 = vunpack.c.l.b16 %v1639
    %v1858 = vunpack.c.l.b16 %v1640
    %v1859 = vunpack.c.h.b16 %v1640
    %v1860 = vunpack.c.l.b16 %v1641
    %v1861 = vunpack.c.l.b16 %v1642
    %v1862 = vunpack.c.h.b16 %v1642
    %v1863 = vunpack.c.l.b16 %v1643
    %v1864 = vunpack.c.l.b16 %v1644
    %v1865 = vunpack.c.h.b16 %v1644
    %v1866 = vunpack.c.l.b16 %v1645
    %v1867 = vunpack.c.l.b16 %v1646
    %v1868 = vunpack.c.h.b16 %v1646
    %v1869 = vunpack.c.l.b16 %v1647
    %v1870 = vunpack.c.l.b16 %v1648
    %v1871 = vunpack.c.h.b16 %v1648
    %v1872 = vunpack.c.l.b16 %v1649
    %v1873 = vunpack.c.l.b16 %v1650
    %v1874 = vunpack.c.h.b16 %v1650
    %v1875 = vunpack.c.l.b16 %v1651
    %v1876 = vunpack.c.l.b16 %v1652
    %v1877 = vunpack.c.h.b16 %v1652
    %v1878 = vunpack.c.l.b16 %v1653
    %v1879 = vunpack.c.l.b16 %v1654
    %v1880 = vunpack.c.h.b16 %v1654
    %v1881 = vunpack.c.l.b16 %v1655
    %v1882 = vunpack.c.l.b16 %v1656
    %v1883 = vunpack.c.h.b16 %v1656
    %v1884 = vunpack.c.l.b16 %v1657
    %v1885 = vunpack.c.l.b16 %v1658
    %v1886 = vunpack.c.h.b16 %v1658
    %v1887 = vunpack.c.l.b16 %v1659
    %v1888 = vunpack.c.l.b16 %v1660
    %v1889 = vunpack.c.h.b16 %v1660
    %v1890 = vunpack.c.l.b16 %v1661
    %v1891 = vunpack.c.l.b16 %v1662
    %v1892 = vunpack.c.h.b16 %v1662
    %v1893 = vunpack.c.l.b16 %v1663
    %v1894 = vunpack.c.l.b16 %v1664
    %v1895 = vunpack.c.h.b16 %v1664
    %v1896 = vunpack.c.l.b16 %v1665
    %v1897 = vunpack.c.l.b16 %v1666
    %v1898 = vunpack.c.h.b16 %v1666
    %v1899 = vunpack.c.l.b16 %v1667
    %v1900 = vunpack.c.l.b16 %v1668
    %v1901 = vunpack.c.h.b16 %v1668
    %v1902 = vunpack.c.l.b16 %v1669
    %v1903 = vunpack.c.l.b16 %v1670
    %v1904 = vunpack.c.h.b16 %v1670
    %v1905 = vunpack.c.l.b16 %v1671
    %v1906 = vunpack.c.l.b16 %v1672
    %v1907 = vunpack.c.h.b16 %v1672
    %v1908 = vunpack.c.l.b16 %v1673
    %v1909 = vunpack.c.l.b16 %v1674
    %v1910 = vunpack.c.h.b16 %v1674
    %v1911 = vunpack.c.l.b16 %v1675
    %v1912 = vunpack.c.l.b16 %v1676
    %v1913 = vunpack.c.h.b16 %v1676
    %v1914 = vunpack.c.l.b16 %v1677
    %v1915 = vunpack.c.l.b16 %v1678
    %v1916 = vunpack.c.h.b16 %v1678
    %v1917 = vunpack.c.l.b16 %v1679
    %v1918 = vunpack.c.l.b16 %v1680
    %v1919 = vunpack.c.h.b16 %v1680
    %v1920 = vunpack.c.l.b16 %v1681
    %v1921 = vunpack.c.l.b16 %v1682
    %v1922 = vunpack.c.h.b16 %v1682
    %v1923 = vunpack.c.l.b16 %v1683
    %v1924 = vpack.c.b16 %v1783, %v1780
    %v1925 = vpack.c.b16 %v1784, %v1781
    %v1926 = vpack.c.b16 %v1785, %v1782
    %v1927 = vpack.c.b16 %v1789, %v1786
    %v1928 = vpack.c.b16 %v1790, %v1787
    %v1929 = vpack.c.b16 %v1791, %v1788
    %v1930 = vpack.c.b16 %v1795, %v1792
    %v1931 = vpack.c.b16 %v1796, %v1793
    %v1932 = vpack.c.b16 %v1797, %v1794
    %v1933 = vpack.c.b16 %v1801, %v1798
    %v1934 = vpack.c.b16 %v1802, %v1799
    %v1935 = vpack.c.b16 %v1803, %v1800
    %v1936 = vpack.c.b16 %v1807, %v1804
    %v1937 = vpack.c.b16 %v1808, %v1805
    %v1938 = vpack.c.b16 %v1809, %v1806
    %v1939 = vpack.c.b16 %v1813, %v1810
    %v1940 = vpack.c.b16 %v1814, %v1811
    %v1941 = vpack.c.b16 %v1815, %v1812
    %v1942 = vpack.c.b16 %v1819, %v1816
    %v1943 = vpack.c.b16 %v1820, %v1817
    %v1944 = vpack.c.b16 %v1821, %v1818
    %v1945 = vpack.c.b16 %v1825, %v1822
    %v1946 = vpack.c.b16 %v1826, %v1823
    %v1947 = vpack.c.b16 %v1827, %v1824
    %v1948 = vpack.c.b16 %v1831, %v1828
    %v1949 = vpack.c.b16 %v1832, %v1829
    %v1950 = vpack.c.b16 %v1833, %v1830
    %v1951 = vpack.c.b16 %v1837, %v1834
    %v1952 = vpack.c.b16 %v1838, %v1835
    %v1953 = vpack.c.b16 %v1839, %v1836
    %v1954 = vpack.c.b16 %v1843, %v1840
    %v1955 = vpack.c.b16 %v1844, %v1841
    %v1956 = vpack.c.b16 %v1845, %v1842
    %v1957 = vpack.c.b16 %v1849, %v1846
    %v1958 = vpack.c.b16 %v1850, %v1847
    %v1959 = vpack.c.b16 %v1851, %v1848
    %v1960 = vpack.c.b16 %v1855, %v1852
    %v1961 = vpack.c.b16 %v1856, %v1853
    %v1962 = vpack.c.b16 %v1857, %v1854
    %v1963 = vpack.c.b16 %v1861, %v1858
    %v1964 = vpack.c.b16 %v1862, %v1859
    %v1965 = vpack.c.b16 %v1863, %v1860
    %v1966 = vpack.c.b16 %v1867, %v1864
    %v1967 = vpack.c.b16 %v1868, %v1865
    %v1968 = vpack.c.b16 %v1869, %v1866
    %v1969 = vpack.c.b16 %v1873, %v1870
    %v1970 = vpack.c.b16 %v1874, %v1871
    %v1971 = vpack.c.b16 %v1875, %v1872
    %v1972 = vpack.c.b16 %v1879, %v1876
    %v1973 = vpack.c.b16 %v1880, %v1877
    %v1974 = vpack.c.b16 %v1881, %v1878
    %v1975 = vpack.c.b16 %v1885, %v1882
    %v1976 = vpack.c.b16 %v1886, %v1883
    %v1977 = vpack.c.b16 %v1887, %v1884
    %v1978 = vpack.c.b16 %v1891, %v1888
    %v1979 = vpack.c.b16 %v1892, %v1889
    %v1980 = vpack.c.b16 %v1893, %v1890
    %v1981 = vpack.c.b16 %v1897, %v1894
    %v1982 = vpack.c.b16 %v1898, %v1895
    %v1983 = vpack.c.b16 %v1899, %v1896
    %v1984 = vpack.c.b16 %v1903, %v1900
    %v1985 = vpack.c.b16 %v1904, %v1901
    %v1986 = vpack.c.b16 %v1905, %v1902
    %v1987 = vpack.c.b16 %v1909, %v1906
    %v1988 = vpack.c.b16 %v1910, %v1907
    %v1989 = vpack.c.b16 %v1911, %v1908
    %v1990 = vpack.c.b16 %v1915, %v1912
    %v1991 = vpack.c.b16 %v1916, %v1913
    %v1992 = vpack.c.b16 %v1917, %v1914
    %v1993 = vpack.c.b16 %v1921, %v1918
    %v1994 = vpack.c.b16 %v1922, %v1919
    %v1995 = vpack.c.b16 %v1923, %v1920
    %2068 = vmatprep.subr.bf16.mxu0 %v1925
    %2069 = vmatpush1.bf16.msra.mxu0 %v1924
    %2070 = vmatprep.subr.bf16.mxu0 %v1928
    %2071 = vmatpush1.bf16.msra.mxu0 %v1927
    %2072 = vmatprep.subr.bf16.mxu0 %v1931
    %2073 = vmatpush1.bf16.msra.mxu0 %v1930
    %2074 = vmatprep.subr.bf16.mxu0 %v1934
    %2075 = vmatpush1.bf16.msra.mxu0 %v1933
    %2076 = vmatprep.subr.bf16.mxu0 %v1937
    %2077 = vmatpush1.bf16.msra.mxu0 %v1936
    %2078 = vmatprep.subr.bf16.mxu0 %v1940
    %2079 = vmatpush1.bf16.msra.mxu0 %v1939
    %2080 = vmatprep.subr.bf16.mxu0 %v1943
    %2081 = vmatpush1.bf16.msra.mxu0 %v1942
    %2082 = vmatprep.subr.bf16.mxu0 %v1946
    %2083 = vmatpush1.bf16.msra.mxu0 %v1945
    %2084 = vmatprep.subr.bf16.mxu0 %v1949
    %2085 = vmatpush1.bf16.msra.mxu0 %v1948
    %2086 = vmatprep.subr.bf16.mxu0 %v1952
    %2087 = vmatpush1.bf16.msra.mxu0 %v1951
    %2088 = vmatprep.subr.bf16.mxu0 %v1955
    %2089 = vmatpush1.bf16.msra.mxu0 %v1954
    %2090 = vmatprep.subr.bf16.mxu0 %v1958
    %2091 = vmatpush1.bf16.msra.mxu0 %v1957
    %2092 = vmatprep.subr.bf16.mxu0 %v1961
    %2093 = vmatpush1.bf16.msra.mxu0 %v1960
    %2094 = vmatprep.subr.bf16.mxu0 %v1964
    %2095 = vmatpush1.bf16.msra.mxu0 %v1963
    %2096 = vmatprep.subr.bf16.mxu0 %v1967
    %2097 = vmatpush1.bf16.msra.mxu0 %v1966
    %2098 = vmatprep.subr.bf16.mxu0 %v1970
    %2099 = vmatpush1.bf16.msra.mxu0 %v1969
    %2100 = vmatprep.mubr.bf16.mxu0 %v1577
    %2101 = vmatmul.mubr.bf16.gmra.mrb[0].mxu0 %v1576
    %v2102 = vpop.f32.mrb[0].mxu0
    %v2103 = vadd.f32 0.0, %v2102
    %v2104 = vpop.f32.mrb[0].mxu0
    %v2105 = vadd.f32 0.0, %v2104
    %v2106 = vpop.f32.mrb[0].mxu0
    %v2107 = vadd.f32 0.0, %v2106
    %v2108 = vpop.f32.mrb[0].mxu0
    %v2109 = vadd.f32 0.0, %v2108
    %2110 = vmatprep.mubr.bf16.mxu0 %v1580
    %2111 = vmatmul.mubr.bf16.gmra.mrb[0].mxu0 %v1579
    %v2112 = vpop.f32.mrb[0].mxu0
    %v2113 = vadd.f32 0.0, %v2112
    %v2114 = vpop.f32.mrb[0].mxu0
    %v2115 = vadd.f32 0.0, %v2114
    %v2116 = vpop.f32.mrb[0].mxu0
    %v2117 = vadd.f32 0.0, %v2116
    %v2118 = vpop.f32.mrb[0].mxu0
    %v2119 = vadd.f32 0.0, %v2118
    %2120 = vmatprep.mubr.bf16.mxu0 %v1583
    %2121 = vmatmul.mubr.bf16.gmra.mrb[0].mxu0 %v1582
    %v2122 = vpop.f32.mrb[0].mxu0
    %v2123 = vadd.f32 0.0, %v2122
    %v2124 = vpop.f32.mrb[0].mxu0
    %v2125 = vadd.f32 0.0, %v2124
    %v2126 = vpop.f32.mrb[0].mxu0
    %v2127 = vadd.f32 0.0, %v2126
    %v2128 = vpop.f32.mrb[0].mxu0
    %v2129 = vadd.f32 0.0, %v2128
    %2130 = vmatprep.mubr.bf16.mxu0 %v1586
    %2131 = vmatmul.mubr.bf16.gmra.mrb[0].mxu0 %v1585
    %v2132 = vpop.f32.mrb[0].mxu0
    %v2133 = vadd.f32 0.0, %v2132
    %v2134 = vpop.f32.mrb[0].mxu0
    %v2135 = vadd.f32 0.0, %v2134
    %v2136 = vpop.f32.mrb[0].mxu0
    %v2137 = vadd.f32 0.0, %v2136
    %v2138 = vpop.f32.mrb[0].mxu0
    %v2139 = vadd.f32 0.0, %v2138
    %2140 = vdwg.mxu0
    %2141 = vmatprep.subr.bf16.mxu0 %v1973
    %2142 = vmatpush1.bf16.msra.mxu0 %v1972
    %2143 = vmatprep.subr.bf16.mxu0 %v1976
    %2144 = vmatpush1.bf16.msra.mxu0 %v1975
    %2145 = vmatprep.subr.bf16.mxu0 %v1979
    %2146 = vmatpush1.bf16.msra.mxu0 %v1978
    %2147 = vmatprep.subr.bf16.mxu0 %v1982
    %2148 = vmatpush1.bf16.msra.mxu0 %v1981
    %2149 = vmatprep.subr.bf16.mxu0 %v1985
    %2150 = vmatpush1.bf16.msra.mxu0 %v1984
    %2151 = vmatprep.subr.bf16.mxu0 %v1988
    %2152 = vmatpush1.bf16.msra.mxu0 %v1987
    %2153 = vmatprep.subr.bf16.mxu0 %v1991
    %2154 = vmatpush1.bf16.msra.mxu0 %v1990
    %2155 = vmatprep.subr.bf16.mxu0 %v1994
    %2156 = vmatpush1.bf16.msra.mxu0 %v1993
    %2157 = vmatprep.subr.bf16.mxu0 0
    %2158 = vmatpush1.bf16.msra.mxu0 0
    %2159 = vmatprep.subr.bf16.mxu0 0
    %2160 = vmatpush1.bf16.msra.mxu0 0
    %2161 = vmatprep.subr.bf16.mxu0 0
    %2162 = vmatpush1.bf16.msra.mxu0 0
    %2163 = vmatprep.subr.bf16.mxu0 0
    %2164 = vmatpush1.bf16.msra.mxu0 0
    %2165 = vmatprep.subr.bf16.mxu0 0
    %2166 = vmatpush1.bf16.msra.mxu0 0
    %2167 = vmatprep.subr.bf16.mxu0 0
    %2168 = vmatpush1.bf16.msra.mxu0 0
    %2169 = vmatprep.subr.bf16.mxu0 0
    %2170 = vmatpush1.bf16.msra.mxu0 0
    %2171 = vmatprep.subr.bf16.mxu0 0
    %2172 = vmatpush1.bf16.msra.mxu0 0
    %2173 = vmatprep.mubr.bf16.mxu0 0
    %2174 = vmatmul.mubr.bf16.gmra.mrb[0].mxu0 %v1578
    %v2175 = vpop.f32.mrb[0].mxu0
    %v2176 = vadd.f32 %v2103, %v2175
    %v2177 = vpop.f32.mrb[0].mxu0
    %v2178 = vadd.f32 %v2105, %v2177
    %v2179 = vpop.f32.mrb[0].mxu0
    %v2180 = vadd.f32 %v2107, %v2179
    %v2181 = vpop.f32.mrb[0].mxu0
    %v2182 = vadd.f32 %v2109, %v2181
    %2183 = vmatprep.mubr.bf16.mxu0 0
    %2184 = vmatmul.mubr.bf16.gmra.mrb[0].mxu0 %v1581
    %v2185 = vpop.f32.mrb[0].mxu0
    %v2186 = vadd.f32 %v2113, %v2185
    %v2187 = vpop.f32.mrb[0].mxu0
    %v2188 = vadd.f32 %v2115, %v2187
    %v2189 = vpop.f32.mrb[0].mxu0
    %v2190 = vadd.f32 %v2117, %v2189
    %v2191 = vpop.f32.mrb[0].mxu0
    %v2192 = vadd.f32 %v2119, %v2191
    %2193 = vmatprep.mubr.bf16.mxu0 0
    %2194 = vmatmul.mubr.bf16.gmra.mrb[0].mxu0 %v1584
    %v2195 = vpop.f32.mrb[0].mxu0
    %v2196 = vadd.f32 %v2123, %v2195
    %v2197 = vpop.f32.mrb[0].mxu0
    %v2198 = vadd.f32 %v2125, %v2197
    %v2199 = vpop.f32.mrb[0].mxu0
    %v2200 = vadd.f32 %v2127, %v2199
    %v2201 = vpop.f32.mrb[0].mxu0
    %v2202 = vadd.f32 %v2129, %v2201
    %2203 = vmatprep.mubr.bf16.mxu0 0
    %2204 = vmatmul.mubr.bf16.gmra.mrb[0].mxu0 %v1587
    %v2205 = vpop.f32.mrb[0].mxu0
    %v2206 = vadd.f32 %v2133, %v2205
    %v2207 = vpop.f32.mrb[0].mxu0
    %v2208 = vadd.f32 %v2135, %v2207
    %v2209 = vpop.f32.mrb[0].mxu0
    %v2210 = vadd.f32 %v2137, %v2209
    %v2211 = vpop.f32.mrb[0].mxu0
    %v2212 = vadd.f32 %v2139, %v2211
    %2213 = vdwg.mxu0
    %2214 = vmatprep.subr.bf16.mxu0 0
    %2215 = vmatpush1.bf16.msra.mxu0 %v1926
    %2216 = vmatprep.subr.bf16.mxu0 0
    %2217 = vmatpush1.bf16.msra.mxu0 %v1929
    %2218 = vmatprep.subr.bf16.mxu0 0
    %2219 = vmatpush1.bf16.msra.mxu0 %v1932
    %2220 = vmatprep.subr.bf16.mxu0 0
    %2221 = vmatpush1.bf16.msra.mxu0 %v1935
    %2222 = vmatprep.subr.bf16.mxu0 0
    %2223 = vmatpush1.bf16.msra.mxu0 %v1938
    %2224 = vmatprep.subr.bf16.mxu0 0
    %2225 = vmatpush1.bf16.msra.mxu0 %v1941
    %2226 = vmatprep.subr.bf16.mxu0 0
    %2227 = vmatpush1.bf16.msra.mxu0 %v1944
    %2228 = vmatprep.subr.bf16.mxu0 0
    %2229 = vmatpush1.bf16.msra.mxu0 %v1947
    %2230 = vmatprep.subr.bf16.mxu0 0
    %2231 = vmatpush1.bf16.msra.mxu0 %v1950
    %2232 = vmatprep.subr.bf16.mxu0 0
    %2233 = vmatpush1.bf16.msra.mxu0 %v1953
    %2234 = vmatprep.subr.bf16.mxu0 0
    %2235 = vmatpush1.bf16.msra.mxu0 %v1956
    %2236 = vmatprep.subr.bf16.mxu0 0
    %2237 = vmatpush1.bf16.msra.mxu0 %v1959
    %2238 = vmatprep.subr.bf16.mxu0 0
    %2239 = vmatpush1.bf16.msra.mxu0 %v1962
    %2240 = vmatprep.subr.bf16.mxu0 0
    %2241 = vmatpush1.bf16.msra.mxu0 %v1965
    %2242 = vmatprep.subr.bf16.mxu0 0
    %2243 = vmatpush1.bf16.msra.mxu0 %v1968
    %2244 = vmatprep.subr.bf16.mxu0 0
    %2245 = vmatpush1.bf16.msra.mxu0 %v1971
    %2246 = vmatprep.mubr.bf16.mxu0 %v1577
    %2247 = vmatmul.mubr.bf16.gmra.mrb[0].mxu0 %v1576
    %v2248 = vpop.f32.mrb[0].mxu0
    %v2249 = vadd.f32 0.0, %v2248
    %v2250 = vpop.f32.mrb[0].mxu0
    %v2251 = vpop.f32.mrb[0].mxu0
    %v2252 = vadd.f32 0.0, %v2251
    %v2253 = vpop.f32.mrb[0].mxu0
    %2254 = vmatprep.mubr.bf16.mxu0 %v1580
    %2255 = vmatmul.mubr.bf16.gmra.mrb[0].mxu0 %v1579
    %v2256 = vpop.f32.mrb[0].mxu0
    %v2257 = vadd.f32 0.0, %v2256
    %v2258 = vpop.f32.mrb[0].mxu0
    %v2259 = vpop.f32.mrb[0].mxu0
    %v2260 = vadd.f32 0.0, %v2259
    %v2261 = vpop.f32.mrb[0].mxu0
    %2262 = vmatprep.mubr.bf16.mxu0 %v1583
    %2263 = vmatmul.mubr.bf16.gmra.mrb[0].mxu0 %v1582
    %v2264 = vpop.f32.mrb[0].mxu0
    %v2265 = vadd.f32 0.0, %v2264
    %v2266 = vpop.f32.mrb[0].mxu0
    %v2267 = vpop.f32.mrb[0].mxu0
    %v2268 = vadd.f32 0.0, %v2267
    %v2269 = vpop.f32.mrb[0].mxu0
    %2270 = vmatprep.mubr.bf16.mxu0 %v1586
    %2271 = vmatmul.mubr.bf16.gmra.mrb[0].mxu0 %v1585
    %v2272 = vpop.f32.mrb[0].mxu0
    %v2273 = vadd.f32 0.0, %v2272
    %v2274 = vpop.f32.mrb[0].mxu0
    %v2275 = vpop.f32.mrb[0].mxu0
    %v2276 = vadd.f32 0.0, %v2275
    %v2277 = vpop.f32.mrb[0].mxu0
    %2278 = vdwg.mxu0
    %2279 = vmatprep.subr.bf16.mxu0 0
    %2280 = vmatpush1.bf16.msra.mxu0 %v1974
    %2281 = vmatprep.subr.bf16.mxu0 0
    %2282 = vmatpush1.bf16.msra.mxu0 %v1977
    %2283 = vmatprep.subr.bf16.mxu0 0
    %2284 = vmatpush1.bf16.msra.mxu0 %v1980
    %2285 = vmatprep.subr.bf16.mxu0 0
    %2286 = vmatpush1.bf16.msra.mxu0 %v1983
    %2287 = vmatprep.subr.bf16.mxu0 0
    %2288 = vmatpush1.bf16.msra.mxu0 %v1986
    %2289 = vmatprep.subr.bf16.mxu0 0
    %2290 = vmatpush1.bf16.msra.mxu0 %v1989
    %2291 = vmatprep.subr.bf16.mxu0 0
    %2292 = vmatpush1.bf16.msra.mxu0 %v1992
    %2293 = vmatprep.subr.bf16.mxu0 0
    %2294 = vmatpush1.bf16.msra.mxu0 %v1995
    %2295 = vmatprep.subr.bf16.mxu0 0
    %2296 = vmatpush1.bf16.msra.mxu0 0
    %2297 = vmatprep.subr.bf16.mxu0 0
    %2298 = vmatpush1.bf16.msra.mxu0 0
    %2299 = vmatprep.subr.bf16.mxu0 0
    %2300 = vmatpush1.bf16.msra.mxu0 0
    %2301 = vmatprep.subr.bf16.mxu0 0
    %2302 = vmatpush1.bf16.msra.mxu0 0
    %2303 = vmatprep.subr.bf16.mxu0 0
    %2304 = vmatpush1.bf16.msra.mxu0 0
    %2305 = vmatprep.subr.bf16.mxu0 0
    %2306 = vmatpush1.bf16.msra.mxu0 0
    %2307 = vmatprep.subr.bf16.mxu0 0
    %2308 = vmatpush1.bf16.msra.mxu0 0
    %2309 = vmatprep.subr.bf16.mxu0 0
    %2310 = vmatpush1.bf16.msra.mxu0 0
    %2311 = vmatprep.mubr.bf16.mxu0 0
    %2312 = vmatmul.mubr.bf16.gmra.mrb[0].mxu0 %v1578
    %v2313 = vpop.f32.mrb[0].mxu0
    %v2314 = vadd.f32 %v2249, %v2313
    %v2315 = vpop.f32.mrb[0].mxu0
    %v2316 = vpop.f32.mrb[0].mxu0
    %v2317 = vadd.f32 %v2252, %v2316
    %v2318 = vpop.f32.mrb[0].mxu0
    %2319 = vmatprep.mubr.bf16.mxu0 0
    %2320 = vmatmul.mubr.bf16.gmra.mrb[0].mxu0 %v1581
    %v2321 = vpop.f32.mrb[0].mxu0
    %v2322 = vadd.f32 %v2257, %v2321
    %v2323 = vpop.f32.mrb[0].mxu0
    %v2324 = vpop.f32.mrb[0].mxu0
    %v2325 = vadd.f32 %v2260, %v2324
    %v2326 = vpop.f32.mrb[0].mxu0
    %2327 = vmatprep.mubr.bf16.mxu0 0
    %2328 = vmatmul.mubr.bf16.gmra.mrb[0].mxu0 %v1584
    %v2329 = vpop.f32.mrb[0].mxu0
    %v2330 = vadd.f32 %v2265, %v2329
    %v2331 = vpop.f32.mrb[0].mxu0
    %v2332 = vpop.f32.mrb[0].mxu0
    %v2333 = vadd.f32 %v2268, %v2332
    %v2334 = vpop.f32.mrb[0].mxu0
    %2335 = vmatprep.mubr.bf16.mxu0 0
    %2336 = vmatmul.mubr.bf16.gmra.mrb[0].mxu0 %v1587
    %v2337 = vpop.f32.mrb[0].mxu0
    %v2338 = vadd.f32 %v2273, %v2337
    %v2339 = vpop.f32.mrb[0].mxu0
    %v2340 = vpop.f32.mrb[0].mxu0
    %v2341 = vadd.f32 %v2276, %v2340
    %v2342 = vpop.f32.mrb[0].mxu0
    %2343 = vdwg.mxu0
    %s2344 = scalar_lea.vmem %s4, 2
    %v2345 = vld [vmem:[%s2344] ss:$8 sm:$0x7]
    %s2346 = scalar_lea.vmem %s4, 6
    %v2347 = vld [vmem:[%s2346] ss:$8 sm:$0x7]
    %v2348 = vadd.f32 %v2176, %v2180
    %v2349 = vadd.f32 %v2348, %v2186
    %v2350 = vadd.f32 %v2349, %v2190
    %v2351 = vadd.f32 %v2350, %v2196
    %v2352 = vadd.f32 %v2351, %v2200
    %v2353 = vadd.f32 %v2352, %v2206
    %v2354 = vadd.f32 %v2353, %v2210
    %v2355 = vrot.slane %v2354, 4
    %v2356 = vadd.f32 %v2354, %v2355
    %v2357 = vrot.slane %v2356, 2
    %v2358 = vadd.f32 %v2356, %v2357
    %v2359 = vrot.slane %v2358, 1
    %v2360 = vadd.f32 %v2358, %v2359
    %v2361 = vadd.f32 %v2178, %v2182
    %v2362 = vadd.f32 %v2361, %v2188
    %v2363 = vadd.f32 %v2362, %v2192
    %v2364 = vadd.f32 %v2363, %v2198
    %v2365 = vadd.f32 %v2364, %v2202
    %v2366 = vadd.f32 %v2365, %v2208
    %v2367 = vadd.f32 %v2366, %v2212
    %v2368 = vrot.slane %v2367, 4
    %v2369 = vadd.f32 %v2367, %v2368
    %v2370 = vrot.slane %v2369, 2
    %v2371 = vadd.f32 %v2369, %v2370
    %v2372 = vrot.slane %v2371, 1
    %v2373 = vadd.f32 %v2371, %v2372
    %v2374 = vadd.f32 %v2314, %v2317
    %v2375 = vadd.f32 %v2374, %v2322
    %v2376 = vadd.f32 %v2375, %v2325
    %v2377 = vadd.f32 %v2376, %v2330
    %v2378 = vadd.f32 %v2377, %v2333
    %v2379 = vadd.f32 %v2378, %v2338
    %v2380 = vadd.f32 %v2379, %v2341
    %v2381 = vrot.slane %v2380, 4
    %v2382 = vadd.f32 %v2380, %v2381
    %v2383 = vrot.slane %v2382, 2
    %v2384 = vadd.f32 %v2382, %v2383
    %v2385 = vrot.slane %v2384, 1
    %v2386 = vadd.f32 %v2384, %v2385
    %v2387 = vmul.f32 %v2360, %v296
    %v2388 = vmul.f32 %v2373, %v296
    %v2389 = vmul.f32 %v2386, %v296
    %v2390 = vmul.f32 %v2176, %v2176
    %v2391 = vmul.f32 %v2178, %v2178
    %v2392 = vmul.f32 %v2314, %v2314
    %v2393 = vmul.f32 %v2180, %v2180
    %v2394 = vmul.f32 %v2182, %v2182
    %v2395 = vmul.f32 %v2317, %v2317
    %v2396 = vmul.f32 %v2186, %v2186
    %v2397 = vmul.f32 %v2188, %v2188
    %v2398 = vmul.f32 %v2322, %v2322
    %v2399 = vmul.f32 %v2190, %v2190
    %v2400 = vmul.f32 %v2192, %v2192
    %v2401 = vmul.f32 %v2325, %v2325
    %v2402 = vmul.f32 %v2196, %v2196
    %v2403 = vmul.f32 %v2198, %v2198
    %v2404 = vmul.f32 %v2330, %v2330
    %v2405 = vmul.f32 %v2200, %v2200
    %v2406 = vmul.f32 %v2202, %v2202
    %v2407 = vmul.f32 %v2333, %v2333
    %v2408 = vmul.f32 %v2206, %v2206
    %v2409 = vmul.f32 %v2208, %v2208
    %v2410 = vmul.f32 %v2338, %v2338
    %v2411 = vmul.f32 %v2210, %v2210
    %v2412 = vmul.f32 %v2212, %v2212
    %v2413 = vmul.f32 %v2341, %v2341
    %v2414 = vadd.f32 %v2390, %v2393
    %v2415 = vadd.f32 %v2414, %v2396
    %v2416 = vadd.f32 %v2415, %v2399
    %v2417 = vadd.f32 %v2416, %v2402
    %v2418 = vadd.f32 %v2417, %v2405
    %v2419 = vadd.f32 %v2418, %v2408
    %v2420 = vadd.f32 %v2419, %v2411
    %v2421 = vrot.slane %v2420, 4
    %v2422 = vadd.f32 %v2420, %v2421
    %v2423 = vrot.slane %v2422, 2
    %v2424 = vadd.f32 %v2422, %v2423
    %v2425 = vrot.slane %v2424, 1
    %v2426 = vadd.f32 %v2424, %v2425
    %v2427 = vadd.f32 %v2391, %v2394
    %v2428 = vadd.f32 %v2427, %v2397
    %v2429 = vadd.f32 %v2428, %v2400
    %v2430 = vadd.f32 %v2429, %v2403
    %v2431 = vadd.f32 %v2430, %v2406
    %v2432 = vadd.f32 %v2431, %v2409
    %v2433 = vadd.f32 %v2432, %v2412
    %v2434 = vrot.slane %v2433, 4
    %v2435 = vadd.f32 %v2433, %v2434
    %v2436 = vrot.slane %v2435, 2
    %v2437 = vadd.f32 %v2435, %v2436
    %v2438 = vrot.slane %v2437, 1
    %v2439 = vadd.f32 %v2437, %v2438
    %v2440 = vadd.f32 %v2392, %v2395
    %v2441 = vadd.f32 %v2440, %v2398
    %v2442 = vadd.f32 %v2441, %v2401
    %v2443 = vadd.f32 %v2442, %v2404
    %v2444 = vadd.f32 %v2443, %v2407
    %v2445 = vadd.f32 %v2444, %v2410
    %v2446 = vadd.f32 %v2445, %v2413
    %v2447 = vrot.slane %v2446, 4
    %v2448 = vadd.f32 %v2446, %v2447
    %v2449 = vrot.slane %v2448, 2
    %v2450 = vadd.f32 %v2448, %v2449
    %v2451 = vrot.slane %v2450, 1
    %v2452 = vadd.f32 %v2450, %v2451
    %v2453 = vmul.f32 %v2426, %v296
    %v2454 = vmul.f32 %v2439, %v296
    %v2455 = vmul.f32 %v2452, %v296
    %v2456 = vmul.f32 %v2387, %v2387
    %v2457 = vmul.f32 %v2388, %v2388
    %v2458 = vmul.f32 %v2389, %v2389
    %v2459 = vsub.f32 %v2453, %v2456
    %v2460 = vsub.f32 %v2454, %v2457
    %v2461 = vsub.f32 %v2455, %v2458
    %v2462 = vmax.f32 %v2459, 0.0
    %v2463 = vmax.f32 %v2460, 0.0
    %v2464 = vmax.f32 %v2461, 0.0
    %v2465 = vadd.f32 %v2462, 1e-05
    %v2466 = vadd.f32 %v2463, 1e-05
    %v2467 = vadd.f32 %v2464, 1e-05
    %v2468 = vrsqrt.pop %v2465
    %v2469 = vrsqrt.pop %v2466
    %v2470 = vrsqrt.pop %v2467
    %v2472 = vlaneseq
    %v2473 = vshrl.u32 %v2472, 7
    %v2474 = vsub.s32 0, %v2473
    %v2475 = vrot.slane %v2345, %v2474
    %v2476 = vlaneseq
    %v2477 = vshrl.u32 %v2476, 7
    %v2478 = vsub.s32 1, %v2477
    %v2479 = vrot.slane %v2345, %v2478
    %v2480 = vlaneseq
    %v2481 = vshrl.u32 %v2480, 7
    %v2482 = vsub.s32 2, %v2481
    %v2483 = vrot.slane %v2345, %v2482
    %v2487 = vmul.f32 %v2468, %v2475
    %v2488 = vmul.f32 %v2469, %v2479
    %v2489 = vmul.f32 %v2470, %v2483
    %v2490 = vmul.f32 %v2387, %v2487
    %v2491 = vmul.f32 %v2388, %v2488
    %v2492 = vmul.f32 %v2389, %v2489
    %v2496 = vcombine.low %v2490, %v2491
    %v2498 = vunpack.c.l.s4 1966171168
    %v2499 = vunpack.c.0.s8 %v2498
    %v2500 = vlaneseq
    %v2501 = vshrl.u32 %v2500, 7
    %v2502 = vsub.s32 %v2499, %v2501
    %v2503 = vrot.slane %v2496, %v2502
    %v2505 = vunpack.c.l.s4 1966171168
    %v2506 = vunpack.c.0.s8 %v2505
    %v2507 = vlaneseq
    %v2508 = vshrl.u32 %v2507, 7
    %v2509 = vsub.s32 %v2506, %v2508
    %v2510 = vrot.slane %v2492, %v2509
    %v2511 = vcombine.low %v2503, %v2510
    %v2513 = vunpack.c.l.s4 1966171168
    %v2514 = vunpack.c.0.s8 %v2513
    %v2515 = vlaneseq
    %v2516 = vshrl.u32 %v2515, 7
    %v2517 = vsub.s32 %v2514, %v2516
    %v2518 = vrot.slane %v2511, %v2517
    %v2520 = vsub.f32 %v2347, %v2518
    %v2521 = vlaneseq
    %v2522 = vshrl.u32 %v2521, 7
    %v2523 = vsub.s32 0, %v2522
    %v2524 = vrot.slane %v2487, %v2523
    %v2525 = vlaneseq
    %v2526 = vshrl.u32 %v2525, 7
    %v2527 = vsub.s32 0, %v2526
    %v2528 = vrot.slane %v2488, %v2527
    %v2529 = vlaneseq
    %v2530 = vshrl.u32 %v2529, 7
    %v2531 = vsub.s32 0, %v2530
    %v2532 = vrot.slane %v2489, %v2531
    %v2533 = vmul.f32 %v2176, %v2524
    %v2534 = vmul.f32 %v2178, %v2528
    %v2535 = vmul.f32 %v2314, %v2532
    %v2536 = vmul.f32 %v2180, %v2524
    %v2537 = vmul.f32 %v2182, %v2528
    %v2538 = vmul.f32 %v2317, %v2532
    %v2539 = vmul.f32 %v2186, %v2524
    %v2540 = vmul.f32 %v2188, %v2528
    %v2541 = vmul.f32 %v2322, %v2532
    %v2542 = vmul.f32 %v2190, %v2524
    %v2543 = vmul.f32 %v2192, %v2528
    %v2544 = vmul.f32 %v2325, %v2532
    %v2545 = vmul.f32 %v2196, %v2524
    %v2546 = vmul.f32 %v2198, %v2528
    %v2547 = vmul.f32 %v2330, %v2532
    %v2548 = vmul.f32 %v2200, %v2524
    %v2549 = vmul.f32 %v2202, %v2528
    %v2550 = vmul.f32 %v2333, %v2532
    %v2551 = vmul.f32 %v2206, %v2524
    %v2552 = vmul.f32 %v2208, %v2528
    %v2553 = vmul.f32 %v2338, %v2532
    %v2554 = vmul.f32 %v2210, %v2524
    %v2555 = vmul.f32 %v2212, %v2528
    %v2556 = vmul.f32 %v2341, %v2532
    %v2558 = vlaneseq
    %v2559 = vshrl.u32 %v2558, 7
    %v2560 = vsub.s32 0, %v2559
    %v2561 = vrot.slane %v2520, %v2560
    %v2562 = vlaneseq
    %v2563 = vshrl.u32 %v2562, 7
    %v2564 = vsub.s32 1, %v2563
    %v2565 = vrot.slane %v2520, %v2564
    %v2566 = vlaneseq
    %v2567 = vshrl.u32 %v2566, 7
    %v2568 = vsub.s32 2, %v2567
    %v2569 = vrot.slane %v2520, %v2568
    %v2573 = vadd.f32 %v2533, %v2561
    %v2574 = vadd.f32 %v2534, %v2565
    %v2575 = vadd.f32 %v2535, %v2569
    %v2576 = vadd.f32 %v2536, %v2561
    %v2577 = vadd.f32 %v2537, %v2565
    %v2578 = vadd.f32 %v2538, %v2569
    %v2579 = vadd.f32 %v2539, %v2561
    %v2580 = vadd.f32 %v2540, %v2565
    %v2581 = vadd.f32 %v2541, %v2569
    %v2582 = vadd.f32 %v2542, %v2561
    %v2583 = vadd.f32 %v2543, %v2565
    %v2584 = vadd.f32 %v2544, %v2569
    %v2585 = vadd.f32 %v2545, %v2561
    %v2586 = vadd.f32 %v2546, %v2565
    %v2587 = vadd.f32 %v2547, %v2569
    %v2588 = vadd.f32 %v2548, %v2561
    %v2589 = vadd.f32 %v2549, %v2565
    %v2590 = vadd.f32 %v2550, %v2569
    %v2591 = vadd.f32 %v2551, %v2561
    %v2592 = vadd.f32 %v2552, %v2565
    %v2593 = vadd.f32 %v2553, %v2569
    %v2594 = vadd.f32 %v2554, %v2561
    %v2595 = vadd.f32 %v2555, %v2565
    %v2596 = vadd.f32 %v2556, %v2569
    %v2597 = vmax.f32 %v2573, 0.0
    %v2598 = vmax.f32 %v2574, 0.0
    %v2599 = vmax.f32 %v2575, 0.0
    %v2600 = vmax.f32 %v2576, 0.0
    %v2601 = vmax.f32 %v2577, 0.0
    %v2602 = vmax.f32 %v2578, 0.0
    %v2603 = vmax.f32 %v2579, 0.0
    %v2604 = vmax.f32 %v2580, 0.0
    %v2605 = vmax.f32 %v2581, 0.0
    %v2606 = vmax.f32 %v2582, 0.0
    %v2607 = vmax.f32 %v2583, 0.0
    %v2608 = vmax.f32 %v2584, 0.0
    %v2609 = vmax.f32 %v2585, 0.0
    %v2610 = vmax.f32 %v2586, 0.0
    %v2611 = vmax.f32 %v2587, 0.0
    %v2612 = vmax.f32 %v2588, 0.0
    %v2613 = vmax.f32 %v2589, 0.0
    %v2614 = vmax.f32 %v2590, 0.0
    %v2615 = vmax.f32 %v2591, 0.0
    %v2616 = vmax.f32 %v2592, 0.0
    %v2617 = vmax.f32 %v2593, 0.0
    %v2618 = vmax.f32 %v2594, 0.0
    %v2619 = vmax.f32 %v2595, 0.0
    %v2620 = vmax.f32 %v2596, 0.0
    %v2621 = vpack.c.bf16 %v2600, %v2597
    %v2622 = vpack.c.bf16 %v2601, %v2598
    %v2623 = vpack.c.bf16 %v2602, %v2599
    %v2624 = vpack.c.bf16 %v2606, %v2603
    %v2625 = vpack.c.bf16 %v2607, %v2604
    %v2626 = vpack.c.bf16 %v2608, %v2605
    %v2627 = vpack.c.bf16 %v2612, %v2609
    %v2628 = vpack.c.bf16 %v2613, %v2610
    %v2629 = vpack.c.bf16 %v2614, %v2611
    %v2630 = vpack.c.bf16 %v2618, %v2615
    %v2631 = vpack.c.bf16 %v2619, %v2616
    %v2632 = vpack.c.bf16 %v2620, %v2617
    %v2633 = vld [vmem:[#allocation4 + $0x480] sm:$0xff]
    %v2634 = vld [vmem:[#allocation4 + $0x488] sm:$0xf]
    %v2635 = vld [vmem:[#allocation4 + $0x48c] sm:$0xff]
    %v2636 = vld [vmem:[#allocation4 + $0x494] sm:$0xf]
    %v2637 = vld [vmem:[#allocation4 + $0x498] sm:$0xff]
    %v2638 = vld [vmem:[#allocation4 + $0x4a0] sm:$0xf]
    %v2639 = vld [vmem:[#allocation4 + $0x4a4] sm:$0xff]
    %v2640 = vld [vmem:[#allocation4 + $0x4ac] sm:$0xf]
    %v2641 = vld [vmem:[#allocation4 + $0x4b0] sm:$0xff]
    %v2642 = vld [vmem:[#allocation4 + $0x4b8] sm:$0xf]
    %v2643 = vld [vmem:[#allocation4 + $0x4bc] sm:$0xff]
    %v2644 = vld [vmem:[#allocation4 + $0x4c4] sm:$0xf]
    %v2645 = vld [vmem:[#allocation4 + $0x4c8] sm:$0xff]
    %v2646 = vld [vmem:[#allocation4 + $0x4d0] sm:$0xf]
    %v2647 = vld [vmem:[#allocation4 + $0x4d4] sm:$0xff]
    %v2648 = vld [vmem:[#allocation4 + $0x4dc] sm:$0xf]
    %v2649 = vld [vmem:[#allocation4 + $0x4e0] sm:$0xff]
    %v2650 = vld [vmem:[#allocation4 + $0x4e8] sm:$0xf]
    %v2651 = vld [vmem:[#allocation4 + $0x4ec] sm:$0xff]
    %v2652 = vld [vmem:[#allocation4 + $0x4f4] sm:$0xf]
    %v2653 = vld [vmem:[#allocation4 + $0x4f8] sm:$0xff]
    %v2654 = vld [vmem:[#allocation4 + $0x500] sm:$0xf]
    %v2655 = vld [vmem:[#allocation4 + $0x504] sm:$0xff]
    %v2656 = vld [vmem:[#allocation4 + $0x50c] sm:$0xf]
    %v2657 = vld [vmem:[#allocation4 + $0x510] sm:$0xff]
    %v2658 = vld [vmem:[#allocation4 + $0x518] sm:$0xf]
    %v2659 = vld [vmem:[#allocation4 + $0x51c] sm:$0xff]
    %v2660 = vld [vmem:[#allocation4 + $0x524] sm:$0xf]
    %v2661 = vld [vmem:[#allocation4 + $0x528] sm:$0xff]
    %v2662 = vld [vmem:[#allocation4 + $0x530] sm:$0xf]
    %v2663 = vld [vmem:[#allocation4 + $0x534] sm:$0xff]
    %v2664 = vld [vmem:[#allocation4 + $0x53c] sm:$0xf]
    %v2665 = vld [vmem:[#allocation4 + $0x540] sm:$0xff]
    %v2666 = vld [vmem:[#allocation4 + $0x548] sm:$0xf]
    %v2667 = vld [vmem:[#allocation4 + $0x54c] sm:$0xff]
    %v2668 = vld [vmem:[#allocation4 + $0x554] sm:$0xf]
    %v2669 = vld [vmem:[#allocation4 + $0x558] sm:$0xff]
    %v2670 = vld [vmem:[#allocation4 + $0x560] sm:$0xf]
    %v2671 = vld [vmem:[#allocation4 + $0x564] sm:$0xff]
    %v2672 = vld [vmem:[#allocation4 + $0x56c] sm:$0xf]
    %v2673 = vld [vmem:[#allocation4 + $0x570] sm:$0xff]
    %v2674 = vld [vmem:[#allocation4 + $0x578] sm:$0xf]
    %v2675 = vld [vmem:[#allocation4 + $0x57c] sm:$0xff]
    %v2676 = vld [vmem:[#allocation4 + $0x584] sm:$0xf]
    %v2677 = vld [vmem:[#allocation4 + $0x588] sm:$0xff]
    %v2678 = vld [vmem:[#allocation4 + $0x590] sm:$0xf]
    %v2679 = vld [vmem:[#allocation4 + $0x594] sm:$0xff]
    %v2680 = vld [vmem:[#allocation4 + $0x59c] sm:$0xf]
    %v2681 = vld [vmem:[#allocation4 + $0x5a0] sm:$0xff]
    %v2682 = vld [vmem:[#allocation4 + $0x5a8] sm:$0xf]
    %v2683 = vld [vmem:[#allocation4 + $0x5ac] sm:$0xff]
    %v2684 = vld [vmem:[#allocation4 + $0x5b4] sm:$0xf]
    %v2685 = vld [vmem:[#allocation4 + $0x5b8] sm:$0xff]
    %v2686 = vld [vmem:[#allocation4 + $0x5c0] sm:$0xf]
    %v2687 = vld [vmem:[#allocation4 + $0x5c4] sm:$0xff]
    %v2688 = vld [vmem:[#allocation4 + $0x5cc] sm:$0xf]
    %v2689 = vld [vmem:[#allocation4 + $0x5d0] sm:$0xff]
    %v2690 = vld [vmem:[#allocation4 + $0x5d8] sm:$0xf]
    %v2691 = vld [vmem:[#allocation4 + $0x5dc] sm:$0xff]
    %v2692 = vld [vmem:[#allocation4 + $0x5e4] sm:$0xf]
    %v2693 = vld [vmem:[#allocation4 + $0x5e8] sm:$0xff]
    %v2694 = vld [vmem:[#allocation4 + $0x5f0] sm:$0xf]
    %v2695 = vld [vmem:[#allocation4 + $0x5f4] sm:$0xff]
    %v2696 = vld [vmem:[#allocation4 + $0x5fc] sm:$0xf]
    %v2697 = vld [vmem:[#allocation4 + $0x600] sm:$0xff]
    %v2698 = vld [vmem:[#allocation4 + $0x608] sm:$0xf]
    %v2699 = vld [vmem:[#allocation4 + $0x60c] sm:$0xff]
    %v2700 = vld [vmem:[#allocation4 + $0x614] sm:$0xf]
    %v2701 = vld [vmem:[#allocation4 + $0x618] sm:$0xff]
    %v2702 = vld [vmem:[#allocation4 + $0x620] sm:$0xf]
    %v2703 = vld [vmem:[#allocation4 + $0x624] sm:$0xff]
    %v2704 = vld [vmem:[#allocation4 + $0x62c] sm:$0xf]
    %v2705 = vld [vmem:[#allocation4 + $0x630] sm:$0xff]
    %v2706 = vld [vmem:[#allocation4 + $0x638] sm:$0xf]
    %v2707 = vld [vmem:[#allocation4 + $0x63c] sm:$0xff]
    %v2708 = vld [vmem:[#allocation4 + $0x644] sm:$0xf]
    %v2709 = vld [vmem:[#allocation4 + $0x648] sm:$0xff]
    %v2710 = vld [vmem:[#allocation4 + $0x650] sm:$0xf]
    %v2711 = vld [vmem:[#allocation4 + $0x654] sm:$0xff]
    %v2712 = vld [vmem:[#allocation4 + $0x65c] sm:$0xf]
    %v2713 = vld [vmem:[#allocation4 + $0x660] sm:$0xff]
    %v2714 = vld [vmem:[#allocation4 + $0x668] sm:$0xf]
    %v2715 = vld [vmem:[#allocation4 + $0x66c] sm:$0xff]
    %v2716 = vld [vmem:[#allocation4 + $0x674] sm:$0xf]
    %v2717 = vld [vmem:[#allocation4 + $0x678] sm:$0xff]
    %v2718 = vld [vmem:[#allocation4 + $0x680] sm:$0xf]
    %v2719 = vld [vmem:[#allocation4 + $0x684] sm:$0xff]
    %v2720 = vld [vmem:[#allocation4 + $0x68c] sm:$0xf]
    %v2721 = vld [vmem:[#allocation4 + $0x690] sm:$0xff]
    %v2722 = vld [vmem:[#allocation4 + $0x698] sm:$0xf]
    %v2723 = vld [vmem:[#allocation4 + $0x69c] sm:$0xff]
    %v2724 = vld [vmem:[#allocation4 + $0x6a4] sm:$0xf]
    %v2725 = vld [vmem:[#allocation4 + $0x6a8] sm:$0xff]
    %v2726 = vld [vmem:[#allocation4 + $0x6b0] sm:$0xf]
    %v2727 = vld [vmem:[#allocation4 + $0x6b4] sm:$0xff]
    %v2728 = vld [vmem:[#allocation4 + $0x6bc] sm:$0xf]
    %v2825 = vunpack.c.l.b16 %v2633
    %v2826 = vunpack.c.h.b16 %v2633
    %v2827 = vunpack.c.l.b16 %v2634
    %v2828 = vunpack.c.l.b16 %v2635
    %v2829 = vunpack.c.h.b16 %v2635
    %v2830 = vunpack.c.l.b16 %v2636
    %v2831 = vunpack.c.l.b16 %v2637
    %v2832 = vunpack.c.h.b16 %v2637
    %v2833 = vunpack.c.l.b16 %v2638
    %v2834 = vunpack.c.l.b16 %v2639
    %v2835 = vunpack.c.h.b16 %v2639
    %v2836 = vunpack.c.l.b16 %v2640
    %v2837 = vunpack.c.l.b16 %v2641
    %v2838 = vunpack.c.h.b16 %v2641
    %v2839 = vunpack.c.l.b16 %v2642
    %v2840 = vunpack.c.l.b16 %v2643
    %v2841 = vunpack.c.h.b16 %v2643
    %v2842 = vunpack.c.l.b16 %v2644
    %v2843 = vunpack.c.l.b16 %v2645
    %v2844 = vunpack.c.h.b16 %v2645
    %v2845 = vunpack.c.l.b16 %v2646
    %v2846 = vunpack.c.l.b16 %v2647
    %v2847 = vunpack.c.h.b16 %v2647
    %v2848 = vunpack.c.l.b16 %v2648
    %v2849 = vunpack.c.l.b16 %v2649
    %v2850 = vunpack.c.h.b16 %v2649
    %v2851 = vunpack.c.l.b16 %v2650
    %v2852 = vunpack.c.l.b16 %v2651
    %v2853 = vunpack.c.h.b16 %v2651
    %v2854 = vunpack.c.l.b16 %v2652
    %v2855 = vunpack.c.l.b16 %v2653
    %v2856 = vunpack.c.h.b16 %v2653
    %v2857 = vunpack.c.l.b16 %v2654
    %v2858 = vunpack.c.l.b16 %v2655
    %v2859 = vunpack.c.h.b16 %v2655
    %v2860 = vunpack.c.l.b16 %v2656
    %v2861 = vunpack.c.l.b16 %v2657
    %v2862 = vunpack.c.h.b16 %v2657
    %v2863 = vunpack.c.l.b16 %v2658
    %v2864 = vunpack.c.l.b16 %v2659
    %v2865 = vunpack.c.h.b16 %v2659
    %v2866 = vunpack.c.l.b16 %v2660
    %v2867 = vunpack.c.l.b16 %v2661
    %v2868 = vunpack.c.h.b16 %v2661
    %v2869 = vunpack.c.l.b16 %v2662
    %v2870 = vunpack.c.l.b16 %v2663
    %v2871 = vunpack.c.h.b16 %v2663
    %v2872 = vunpack.c.l.b16 %v2664
    %v2873 = vunpack.c.l.b16 %v2665
    %v2874 = vunpack.c.h.b16 %v2665
    %v2875 = vunpack.c.l.b16 %v2666
    %v2876 = vunpack.c.l.b16 %v2667
    %v2877 = vunpack.c.h.b16 %v2667
    %v2878 = vunpack.c.l.b16 %v2668
    %v2879 = vunpack.c.l.b16 %v2669
    %v2880 = vunpack.c.h.b16 %v2669
    %v2881 = vunpack.c.l.b16 %v2670
    %v2882 = vunpack.c.l.b16 %v2671
    %v2883 = vunpack.c.h.b16 %v2671
    %v2884 = vunpack.c.l.b16 %v2672
    %v2885 = vunpack.c.l.b16 %v2673
    %v2886 = vunpack.c.h.b16 %v2673
    %v2887 = vunpack.c.l.b16 %v2674
    %v2888 = vunpack.c.l.b16 %v2675
    %v2889 = vunpack.c.h.b16 %v2675
    %v2890 = vunpack.c.l.b16 %v2676
    %v2891 = vunpack.c.l.b16 %v2677
    %v2892 = vunpack.c.h.b16 %v2677
    %v2893 = vunpack.c.l.b16 %v2678
    %v2894 = vunpack.c.l.b16 %v2679
    %v2895 = vunpack.c.h.b16 %v2679
    %v2896 = vunpack.c.l.b16 %v2680
    %v2897 = vunpack.c.l.b16 %v2681
    %v2898 = vunpack.c.h.b16 %v2681
    %v2899 = vunpack.c.l.b16 %v2682
    %v2900 = vunpack.c.l.b16 %v2683
    %v2901 = vunpack.c.h.b16 %v2683
    %v2902 = vunpack.c.l.b16 %v2684
    %v2903 = vunpack.c.l.b16 %v2685
    %v2904 = vunpack.c.h.b16 %v2685
    %v2905 = vunpack.c.l.b16 %v2686
    %v2906 = vunpack.c.l.b16 %v2687
    %v2907 = vunpack.c.h.b16 %v2687
    %v2908 = vunpack.c.l.b16 %v2688
    %v2909 = vunpack.c.l.b16 %v2689
    %v2910 = vunpack.c.h.b16 %v2689
    %v2911 = vunpack.c.l.b16 %v2690
    %v2912 = vunpack.c.l.b16 %v2691
    %v2913 = vunpack.c.h.b16 %v2691
    %v2914 = vunpack.c.l.b16 %v2692
    %v2915 = vunpack.c.l.b16 %v2693
    %v2916 = vunpack.c.h.b16 %v2693
    %v2917 = vunpack.c.l.b16 %v2694
    %v2918 = vunpack.c.l.b16 %v2695
    %v2919 = vunpack.c.h.b16 %v2695
    %v2920 = vunpack.c.l.b16 %v2696
    %v2921 = vunpack.c.l.b16 %v2697
    %v2922 = vunpack.c.h.b16 %v2697
    %v2923 = vunpack.c.l.b16 %v2698
    %v2924 = vunpack.c.l.b16 %v2699
    %v2925 = vunpack.c.h.b16 %v2699
    %v2926 = vunpack.c.l.b16 %v2700
    %v2927 = vunpack.c.l.b16 %v2701
    %v2928 = vunpack.c.h.b16 %v2701
    %v2929 = vunpack.c.l.b16 %v2702
    %v2930 = vunpack.c.l.b16 %v2703
    %v2931 = vunpack.c.h.b16 %v2703
    %v2932 = vunpack.c.l.b16 %v2704
    %v2933 = vunpack.c.l.b16 %v2705
    %v2934 = vunpack.c.h.b16 %v2705
    %v2935 = vunpack.c.l.b16 %v2706
    %v2936 = vunpack.c.l.b16 %v2707
    %v2937 = vunpack.c.h.b16 %v2707
    %v2938 = vunpack.c.l.b16 %v2708
    %v2939 = vunpack.c.l.b16 %v2709
    %v2940 = vunpack.c.h.b16 %v2709
    %v2941 = vunpack.c.l.b16 %v2710
    %v2942 = vunpack.c.l.b16 %v2711
    %v2943 = vunpack.c.h.b16 %v2711
    %v2944 = vunpack.c.l.b16 %v2712
    %v2945 = vunpack.c.l.b16 %v2713
    %v2946 = vunpack.c.h.b16 %v2713
    %v2947 = vunpack.c.l.b16 %v2714
    %v2948 = vunpack.c.l.b16 %v2715
    %v2949 = vunpack.c.h.b16 %v2715
    %v2950 = vunpack.c.l.b16 %v2716
    %v2951 = vunpack.c.l.b16 %v2717
    %v2952 = vunpack.c.h.b16 %v2717
    %v2953 = vunpack.c.l.b16 %v2718
    %v2954 = vunpack.c.l.b16 %v2719
    %v2955 = vunpack.c.h.b16 %v2719
    %v2956 = vunpack.c.l.b16 %v2720
    %v2957 = vunpack.c.l.b16 %v2721
    %v2958 = vunpack.c.h.b16 %v2721
    %v2959 = vunpack.c.l.b16 %v2722
    %v2960 = vunpack.c.l.b16 %v2723
    %v2961 = vunpack.c.h.b16 %v2723
    %v2962 = vunpack.c.l.b16 %v2724
    %v2963 = vunpack.c.l.b16 %v2725
    %v2964 = vunpack.c.h.b16 %v2725
    %v2965 = vunpack.c.l.b16 %v2726
    %v2966 = vunpack.c.l.b16 %v2727
    %v2967 = vunpack.c.h.b16 %v2727
    %v2968 = vunpack.c.l.b16 %v2728
    %v2969 = vpack.c.b16 %v2828, %v2825
    %v2970 = vpack.c.b16 %v2829, %v2826
    %v2971 = vpack.c.b16 %v2830, %v2827
    %v2972 = vpack.c.b16 %v2834, %v2831
    %v2973 = vpack.c.b16 %v2835, %v2832
    %v2974 = vpack.c.b16 %v2836, %v2833
    %v2975 = vpack.c.b16 %v2840, %v2837
    %v2976 = vpack.c.b16 %v2841, %v2838
    %v2977 = vpack.c.b16 %v2842, %v2839
    %v2978 = vpack.c.b16 %v2846, %v2843
    %v2979 = vpack.c.b16 %v2847, %v2844
    %v2980 = vpack.c.b16 %v2848, %v2845
    %v2981 = vpack.c.b16 %v2852, %v2849
    %v2982 = vpack.c.b16 %v2853, %v2850
    %v2983 = vpack.c.b16 %v2854, %v2851
    %v2984 = vpack.c.b16 %v2858, %v2855
    %v2985 = vpack.c.b16 %v2859, %v2856
    %v2986 = vpack.c.b16 %v2860, %v2857
    %v2987 = vpack.c.b16 %v2864, %v2861
    %v2988 = vpack.c.b16 %v2865, %v2862
    %v2989 = vpack.c.b16 %v2866, %v2863
    %v2990 = vpack.c.b16 %v2870, %v2867
    %v2991 = vpack.c.b16 %v2871, %v2868
    %v2992 = vpack.c.b16 %v2872, %v2869
    %v2993 = vpack.c.b16 %v2876, %v2873
    %v2994 = vpack.c.b16 %v2877, %v2874
    %v2995 = vpack.c.b16 %v2878, %v2875
    %v2996 = vpack.c.b16 %v2882, %v2879
    %v2997 = vpack.c.b16 %v2883, %v2880
    %v2998 = vpack.c.b16 %v2884, %v2881
    %v2999 = vpack.c.b16 %v2888, %v2885
    %v3000 = vpack.c.b16 %v2889, %v2886
    %v3001 = vpack.c.b16 %v2890, %v2887
    %v3002 = vpack.c.b16 %v2894, %v2891
    %v3003 = vpack.c.b16 %v2895, %v2892
    %v3004 = vpack.c.b16 %v2896, %v2893
    %v3005 = vpack.c.b16 %v2900, %v2897
    %v3006 = vpack.c.b16 %v2901, %v2898
    %v3007 = vpack.c.b16 %v2902, %v2899
    %v3008 = vpack.c.b16 %v2906, %v2903
    %v3009 = vpack.c.b16 %v2907, %v2904
    %v3010 = vpack.c.b16 %v2908, %v2905
    %v3011 = vpack.c.b16 %v2912, %v2909
    %v3012 = vpack.c.b16 %v2913, %v2910
    %v3013 = vpack.c.b16 %v2914, %v2911
    %v3014 = vpack.c.b16 %v2918, %v2915
    %v3015 = vpack.c.b16 %v2919, %v2916
    %v3016 = vpack.c.b16 %v2920, %v2917
    %v3017 = vpack.c.b16 %v2924, %v2921
    %v3018 = vpack.c.b16 %v2925, %v2922
    %v3019 = vpack.c.b16 %v2926, %v2923
    %v3020 = vpack.c.b16 %v2930, %v2927
    %v3021 = vpack.c.b16 %v2931, %v2928
    %v3022 = vpack.c.b16 %v2932, %v2929
    %v3023 = vpack.c.b16 %v2936, %v2933
    %v3024 = vpack.c.b16 %v2937, %v2934
    %v3025 = vpack.c.b16 %v2938, %v2935
    %v3026 = vpack.c.b16 %v2942, %v2939
    %v3027 = vpack.c.b16 %v2943, %v2940
    %v3028 = vpack.c.b16 %v2944, %v2941
    %v3029 = vpack.c.b16 %v2948, %v2945
    %v3030 = vpack.c.b16 %v2949, %v2946
    %v3031 = vpack.c.b16 %v2950, %v2947
    %v3032 = vpack.c.b16 %v2954, %v2951
    %v3033 = vpack.c.b16 %v2955, %v2952
    %v3034 = vpack.c.b16 %v2956, %v2953
    %v3035 = vpack.c.b16 %v2960, %v2957
    %v3036 = vpack.c.b16 %v2961, %v2958
    %v3037 = vpack.c.b16 %v2962, %v2959
    %v3038 = vpack.c.b16 %v2966, %v2963
    %v3039 = vpack.c.b16 %v2967, %v2964
    %v3040 = vpack.c.b16 %v2968, %v2965
    %3113 = vmatprep.subr.bf16.mxu0 %v2970
    %3114 = vmatpush1.bf16.msra.mxu0 %v2969
    %3115 = vmatprep.subr.bf16.mxu0 %v2973
    %3116 = vmatpush1.bf16.msra.mxu0 %v2972
    %3117 = vmatprep.subr.bf16.mxu0 %v2976
    %3118 = vmatpush1.bf16.msra.mxu0 %v2975
    %3119 = vmatprep.subr.bf16.mxu0 %v2979
    %3120 = vmatpush1.bf16.msra.mxu0 %v2978
    %3121 = vmatprep.subr.bf16.mxu0 %v2982
    %3122 = vmatpush1.bf16.msra.mxu0 %v2981
    %3123 = vmatprep.subr.bf16.mxu0 %v2985
    %3124 = vmatpush1.bf16.msra.mxu0 %v2984
    %3125 = vmatprep.subr.bf16.mxu0 %v2988
    %3126 = vmatpush1.bf16.msra.mxu0 %v2987
    %3127 = vmatprep.subr.bf16.mxu0 %v2991
    %3128 = vmatpush1.bf16.msra.mxu0 %v2990
    %3129 = vmatprep.subr.bf16.mxu0 %v2994
    %3130 = vmatpush1.bf16.msra.mxu0 %v2993
    %3131 = vmatprep.subr.bf16.mxu0 %v2997
    %3132 = vmatpush1.bf16.msra.mxu0 %v2996
    %3133 = vmatprep.subr.bf16.mxu0 %v3000
    %3134 = vmatpush1.bf16.msra.mxu0 %v2999
    %3135 = vmatprep.subr.bf16.mxu0 %v3003
    %3136 = vmatpush1.bf16.msra.mxu0 %v3002
    %3137 = vmatprep.subr.bf16.mxu0 %v3006
    %3138 = vmatpush1.bf16.msra.mxu0 %v3005
    %3139 = vmatprep.subr.bf16.mxu0 %v3009
    %3140 = vmatpush1.bf16.msra.mxu0 %v3008
    %3141 = vmatprep.subr.bf16.mxu0 %v3012
    %3142 = vmatpush1.bf16.msra.mxu0 %v3011
    %3143 = vmatprep.subr.bf16.mxu0 %v3015
    %3144 = vmatpush1.bf16.msra.mxu0 %v3014
    %3145 = vmatprep.mubr.bf16.mxu0 %v2622
    %3146 = vmatmul.mubr.bf16.gmra.mrb[0].mxu0 %v2621
    %v3147 = vpop.f32.mrb[0].mxu0
    %v3148 = vadd.f32 0.0, %v3147
    %v3149 = vpop.f32.mrb[0].mxu0
    %v3150 = vadd.f32 0.0, %v3149
    %v3151 = vpop.f32.mrb[0].mxu0
    %v3152 = vadd.f32 0.0, %v3151
    %v3153 = vpop.f32.mrb[0].mxu0
    %v3154 = vadd.f32 0.0, %v3153
    %3155 = vmatprep.mubr.bf16.mxu0 %v2625
    %3156 = vmatmul.mubr.bf16.gmra.mrb[0].mxu0 %v2624
    %v3157 = vpop.f32.mrb[0].mxu0
    %v3158 = vadd.f32 0.0, %v3157
    %v3159 = vpop.f32.mrb[0].mxu0
    %v3160 = vadd.f32 0.0, %v3159
    %v3161 = vpop.f32.mrb[0].mxu0
    %v3162 = vadd.f32 0.0, %v3161
    %v3163 = vpop.f32.mrb[0].mxu0
    %v3164 = vadd.f32 0.0, %v3163
    %3165 = vmatprep.mubr.bf16.mxu0 %v2628
    %3166 = vmatmul.mubr.bf16.gmra.mrb[0].mxu0 %v2627
    %v3167 = vpop.f32.mrb[0].mxu0
    %v3168 = vadd.f32 0.0, %v3167
    %v3169 = vpop.f32.mrb[0].mxu0
    %v3170 = vadd.f32 0.0, %v3169
    %v3171 = vpop.f32.mrb[0].mxu0
    %v3172 = vadd.f32 0.0, %v3171
    %v3173 = vpop.f32.mrb[0].mxu0
    %v3174 = vadd.f32 0.0, %v3173
    %3175 = vmatprep.mubr.bf16.mxu0 %v2631
    %3176 = vmatmul.mubr.bf16.gmra.mrb[0].mxu0 %v2630
    %v3177 = vpop.f32.mrb[0].mxu0
    %v3178 = vadd.f32 0.0, %v3177
    %v3179 = vpop.f32.mrb[0].mxu0
    %v3180 = vadd.f32 0.0, %v3179
    %v3181 = vpop.f32.mrb[0].mxu0
    %v3182 = vadd.f32 0.0, %v3181
    %v3183 = vpop.f32.mrb[0].mxu0
    %v3184 = vadd.f32 0.0, %v3183
    %3185 = vdwg.mxu0
    %3186 = vmatprep.subr.bf16.mxu0 %v3018
    %3187 = vmatpush1.bf16.msra.mxu0 %v3017
    %3188 = vmatprep.subr.bf16.mxu0 %v3021
    %3189 = vmatpush1.bf16.msra.mxu0 %v3020
    %3190 = vmatprep.subr.bf16.mxu0 %v3024
    %3191 = vmatpush1.bf16.msra.mxu0 %v3023
    %3192 = vmatprep.subr.bf16.mxu0 %v3027
    %3193 = vmatpush1.bf16.msra.mxu0 %v3026
    %3194 = vmatprep.subr.bf16.mxu0 %v3030
    %3195 = vmatpush1.bf16.msra.mxu0 %v3029
    %3196 = vmatprep.subr.bf16.mxu0 %v3033
    %3197 = vmatpush1.bf16.msra.mxu0 %v3032
    %3198 = vmatprep.subr.bf16.mxu0 %v3036
    %3199 = vmatpush1.bf16.msra.mxu0 %v3035
    %3200 = vmatprep.subr.bf16.mxu0 %v3039
    %3201 = vmatpush1.bf16.msra.mxu0 %v3038
    %3202 = vmatprep.subr.bf16.mxu0 0
    %3203 = vmatpush1.bf16.msra.mxu0 0
    %3204 = vmatprep.subr.bf16.mxu0 0
    %3205 = vmatpush1.bf16.msra.mxu0 0
    %3206 = vmatprep.subr.bf16.mxu0 0
    %3207 = vmatpush1.bf16.msra.mxu0 0
    %3208 = vmatprep.subr.bf16.mxu0 0
    %3209 = vmatpush1.bf16.msra.mxu0 0
    %3210 = vmatprep.subr.bf16.mxu0 0
    %3211 = vmatpush1.bf16.msra.mxu0 0
    %3212 = vmatprep.subr.bf16.mxu0 0
    %3213 = vmatpush1.bf16.msra.mxu0 0
    %3214 = vmatprep.subr.bf16.mxu0 0
    %3215 = vmatpush1.bf16.msra.mxu0 0
    %3216 = vmatprep.subr.bf16.mxu0 0
    %3217 = vmatpush1.bf16.msra.mxu0 0
    %3218 = vmatprep.mubr.bf16.mxu0 0
    %3219 = vmatmul.mubr.bf16.gmra.mrb[0].mxu0 %v2623
    %v3220 = vpop.f32.mrb[0].mxu0
    %v3221 = vadd.f32 %v3148, %v3220
    %v3222 = vpop.f32.mrb[0].mxu0
    %v3223 = vadd.f32 %v3150, %v3222
    %v3224 = vpop.f32.mrb[0].mxu0
    %v3225 = vadd.f32 %v3152, %v3224
    %v3226 = vpop.f32.mrb[0].mxu0
    %v3227 = vadd.f32 %v3154, %v3226
    %3228 = vmatprep.mubr.bf16.mxu0 0
    %3229 = vmatmul.mubr.bf16.gmra.mrb[0].mxu0 %v2626
    %v3230 = vpop.f32.mrb[0].mxu0
    %v3231 = vadd.f32 %v3158, %v3230
    %v3232 = vpop.f32.mrb[0].mxu0
    %v3233 = vadd.f32 %v3160, %v3232
    %v3234 = vpop.f32.mrb[0].mxu0
    %v3235 = vadd.f32 %v3162, %v3234
    %v3236 = vpop.f32.mrb[0].mxu0
    %v3237 = vadd.f32 %v3164, %v3236
    %3238 = vmatprep.mubr.bf16.mxu0 0
    %3239 = vmatmul.mubr.bf16.gmra.mrb[0].mxu0 %v2629
    %v3240 = vpop.f32.mrb[0].mxu0
    %v3241 = vadd.f32 %v3168, %v3240
    %v3242 = vpop.f32.mrb[0].mxu0
    %v3243 = vadd.f32 %v3170, %v3242
    %v3244 = vpop.f32.mrb[0].mxu0
    %v3245 = vadd.f32 %v3172, %v3244
    %v3246 = vpop.f32.mrb[0].mxu0
    %v3247 = vadd.f32 %v3174, %v3246
    %3248 = vmatprep.mubr.bf16.mxu0 0
    %3249 = vmatmul.mubr.bf16.gmra.mrb[0].mxu0 %v2632
    %v3250 = vpop.f32.mrb[0].mxu0
    %v3251 = vadd.f32 %v3178, %v3250
    %v3252 = vpop.f32.mrb[0].mxu0
    %v3253 = vadd.f32 %v3180, %v3252
    %v3254 = vpop.f32.mrb[0].mxu0
    %v3255 = vadd.f32 %v3182, %v3254
    %v3256 = vpop.f32.mrb[0].mxu0
    %v3257 = vadd.f32 %v3184, %v3256
    %3258 = vdwg.mxu0
    %3259 = vmatprep.subr.bf16.mxu0 0
    %3260 = vmatpush1.bf16.msra.mxu0 %v2971
    %3261 = vmatprep.subr.bf16.mxu0 0
    %3262 = vmatpush1.bf16.msra.mxu0 %v2974
    %3263 = vmatprep.subr.bf16.mxu0 0
    %3264 = vmatpush1.bf16.msra.mxu0 %v2977
    %3265 = vmatprep.subr.bf16.mxu0 0
    %3266 = vmatpush1.bf16.msra.mxu0 %v2980
    %3267 = vmatprep.subr.bf16.mxu0 0
    %3268 = vmatpush1.bf16.msra.mxu0 %v2983
    %3269 = vmatprep.subr.bf16.mxu0 0
    %3270 = vmatpush1.bf16.msra.mxu0 %v2986
    %3271 = vmatprep.subr.bf16.mxu0 0
    %3272 = vmatpush1.bf16.msra.mxu0 %v2989
    %3273 = vmatprep.subr.bf16.mxu0 0
    %3274 = vmatpush1.bf16.msra.mxu0 %v2992
    %3275 = vmatprep.subr.bf16.mxu0 0
    %3276 = vmatpush1.bf16.msra.mxu0 %v2995
    %3277 = vmatprep.subr.bf16.mxu0 0
    %3278 = vmatpush1.bf16.msra.mxu0 %v2998
    %3279 = vmatprep.subr.bf16.mxu0 0
    %3280 = vmatpush1.bf16.msra.mxu0 %v3001
    %3281 = vmatprep.subr.bf16.mxu0 0
    %3282 = vmatpush1.bf16.msra.mxu0 %v3004
    %3283 = vmatprep.subr.bf16.mxu0 0
    %3284 = vmatpush1.bf16.msra.mxu0 %v3007
    %3285 = vmatprep.subr.bf16.mxu0 0
    %3286 = vmatpush1.bf16.msra.mxu0 %v3010
    %3287 = vmatprep.subr.bf16.mxu0 0
    %3288 = vmatpush1.bf16.msra.mxu0 %v3013
    %3289 = vmatprep.subr.bf16.mxu0 0
    %3290 = vmatpush1.bf16.msra.mxu0 %v3016
    %3291 = vmatprep.mubr.bf16.mxu0 %v2622
    %3292 = vmatmul.mubr.bf16.gmra.mrb[0].mxu0 %v2621
    %v3293 = vpop.f32.mrb[0].mxu0
    %v3294 = vadd.f32 0.0, %v3293
    %v3295 = vpop.f32.mrb[0].mxu0
    %v3296 = vpop.f32.mrb[0].mxu0
    %v3297 = vadd.f32 0.0, %v3296
    %v3298 = vpop.f32.mrb[0].mxu0
    %3299 = vmatprep.mubr.bf16.mxu0 %v2625
    %3300 = vmatmul.mubr.bf16.gmra.mrb[0].mxu0 %v2624
    %v3301 = vpop.f32.mrb[0].mxu0
    %v3302 = vadd.f32 0.0, %v3301
    %v3303 = vpop.f32.mrb[0].mxu0
    %v3304 = vpop.f32.mrb[0].mxu0
    %v3305 = vadd.f32 0.0, %v3304
    %v3306 = vpop.f32.mrb[0].mxu0
    %3307 = vmatprep.mubr.bf16.mxu0 %v2628
    %3308 = vmatmul.mubr.bf16.gmra.mrb[0].mxu0 %v2627
    %v3309 = vpop.f32.mrb[0].mxu0
    %v3310 = vadd.f32 0.0, %v3309
    %v3311 = vpop.f32.mrb[0].mxu0
    %v3312 = vpop.f32.mrb[0].mxu0
    %v3313 = vadd.f32 0.0, %v3312
    %v3314 = vpop.f32.mrb[0].mxu0
    %3315 = vmatprep.mubr.bf16.mxu0 %v2631
    %3316 = vmatmul.mubr.bf16.gmra.mrb[0].mxu0 %v2630
    %v3317 = vpop.f32.mrb[0].mxu0
    %v3318 = vadd.f32 0.0, %v3317
    %v3319 = vpop.f32.mrb[0].mxu0
    %v3320 = vpop.f32.mrb[0].mxu0
    %v3321 = vadd.f32 0.0, %v3320
    %v3322 = vpop.f32.mrb[0].mxu0
    %3323 = vdwg.mxu0
    %3324 = vmatprep.subr.bf16.mxu0 0
    %3325 = vmatpush1.bf16.msra.mxu0 %v3019
    %3326 = vmatprep.subr.bf16.mxu0 0
    %3327 = vmatpush1.bf16.msra.mxu0 %v3022
    %3328 = vmatprep.subr.bf16.mxu0 0
    %3329 = vmatpush1.bf16.msra.mxu0 %v3025
    %3330 = vmatprep.subr.bf16.mxu0 0
    %3331 = vmatpush1.bf16.msra.mxu0 %v3028
    %3332 = vmatprep.subr.bf16.mxu0 0
    %3333 = vmatpush1.bf16.msra.mxu0 %v3031
    %3334 = vmatprep.subr.bf16.mxu0 0
    %3335 = vmatpush1.bf16.msra.mxu0 %v3034
    %3336 = vmatprep.subr.bf16.mxu0 0
    %3337 = vmatpush1.bf16.msra.mxu0 %v3037
    %3338 = vmatprep.subr.bf16.mxu0 0
    %3339 = vmatpush1.bf16.msra.mxu0 %v3040
    %3340 = vmatprep.subr.bf16.mxu0 0
    %3341 = vmatpush1.bf16.msra.mxu0 0
    %3342 = vmatprep.subr.bf16.mxu0 0
    %3343 = vmatpush1.bf16.msra.mxu0 0
    %3344 = vmatprep.subr.bf16.mxu0 0
    %3345 = vmatpush1.bf16.msra.mxu0 0
    %3346 = vmatprep.subr.bf16.mxu0 0
    %3347 = vmatpush1.bf16.msra.mxu0 0
    %3348 = vmatprep.subr.bf16.mxu0 0
    %3349 = vmatpush1.bf16.msra.mxu0 0
    %3350 = vmatprep.subr.bf16.mxu0 0
    %3351 = vmatpush1.bf16.msra.mxu0 0
    %3352 = vmatprep.subr.bf16.mxu0 0
    %3353 = vmatpush1.bf16.msra.mxu0 0
    %3354 = vmatprep.subr.bf16.mxu0 0
    %3355 = vmatpush1.bf16.msra.mxu0 0
    %3356 = vmatprep.mubr.bf16.mxu0 0
    %3357 = vmatmul.mubr.bf16.gmra.mrb[0].mxu0 %v2623
    %v3358 = vpop.f32.mrb[0].mxu0
    %v3359 = vadd.f32 %v3294, %v3358
    %v3360 = vpop.f32.mrb[0].mxu0
    %v3361 = vpop.f32.mrb[0].mxu0
    %v3362 = vadd.f32 %v3297, %v3361
    %v3363 = vpop.f32.mrb[0].mxu0
    %3364 = vmatprep.mubr.bf16.mxu0 0
    %3365 = vmatmul.mubr.bf16.gmra.mrb[0].mxu0 %v2626
    %v3366 = vpop.f32.mrb[0].mxu0
    %v3367 = vadd.f32 %v3302, %v3366
    %v3368 = vpop.f32.mrb[0].mxu0
    %v3369 = vpop.f32.mrb[0].mxu0
    %v3370 = vadd.f32 %v3305, %v3369
    %v3371 = vpop.f32.mrb[0].mxu0
    %3372 = vmatprep.mubr.bf16.mxu0 0
    %3373 = vmatmul.mubr.bf16.gmra.mrb[0].mxu0 %v2629
    %v3374 = vpop.f32.mrb[0].mxu0
    %v3375 = vadd.f32 %v3310, %v3374
    %v3376 = vpop.f32.mrb[0].mxu0
    %v3377 = vpop.f32.mrb[0].mxu0
    %v3378 = vadd.f32 %v3313, %v3377
    %v3379 = vpop.f32.mrb[0].mxu0
    %3380 = vmatprep.mubr.bf16.mxu0 0
    %3381 = vmatmul.mubr.bf16.gmra.mrb[0].mxu0 %v2632
    %v3382 = vpop.f32.mrb[0].mxu0
    %v3383 = vadd.f32 %v3318, %v3382
    %v3384 = vpop.f32.mrb[0].mxu0
    %v3385 = vpop.f32.mrb[0].mxu0
    %v3386 = vadd.f32 %v3321, %v3385
    %v3387 = vpop.f32.mrb[0].mxu0
    %3388 = vdwg.mxu0
    %3389 = vst [vmem:[#allocation2] sm:$0xff] %v3221
    %3390 = vst [vmem:[#allocation2 + $0x8] sm:$0xff] %v3223
    %3391 = vst [vmem:[#allocation2 + $0x10] sm:$0xff] %v3359
    %3392 = vst [vmem:[#allocation2 + $0x18] sm:$0xff] %v3225
    %3393 = vst [vmem:[#allocation2 + $0x20] sm:$0xff] %v3227
    %3394 = vst [vmem:[#allocation2 + $0x28] sm:$0xff] %v3362
    %3395 = vst [vmem:[#allocation2 + $0x30] sm:$0xff] %v3231
    %3396 = vst [vmem:[#allocation2 + $0x38] sm:$0xff] %v3233
    %3397 = vst [vmem:[#allocation2 + $0x40] sm:$0xff] %v3367
    %3398 = vst [vmem:[#allocation2 + $0x48] sm:$0xff] %v3235
    %3399 = vst [vmem:[#allocation2 + $0x50] sm:$0xff] %v3237
    %3400 = vst [vmem:[#allocation2 + $0x58] sm:$0xff] %v3370
    %3401 = vst [vmem:[#allocation2 + $0x60] sm:$0xff] %v3241
    %3402 = vst [vmem:[#allocation2 + $0x68] sm:$0xff] %v3243
    %3403 = vst [vmem:[#allocation2 + $0x70] sm:$0xff] %v3375
    %3404 = vst [vmem:[#allocation2 + $0x78] sm:$0xff] %v3245
    %3405 = vst [vmem:[#allocation2 + $0x80] sm:$0xff] %v3247
    %3406 = vst [vmem:[#allocation2 + $0x88] sm:$0xff] %v3378
    %3407 = vst [vmem:[#allocation2 + $0x90] sm:$0xff] %v3251
    %3408 = vst [vmem:[#allocation2 + $0x98] sm:$0xff] %v3253
    %3409 = vst [vmem:[#allocation2 + $0xa0] sm:$0xff] %v3383
    %3410 = vst [vmem:[#allocation2 + $0xa8] sm:$0xff] %v3255
    %3411 = vst [vmem:[#allocation2 + $0xb0] sm:$0xff] %v3257
    %3412 = vst [vmem:[#allocation2 + $0xb8] sm:$0xff] %v3386
    // Predicated region
    $region30: #{mlp_phi_forward.1} parent=1 // pred_check
      _
    $region31: #{mlp_phi_forward.1} parent=1 // pred_check_branch
      %3414 = sbr.rel target = $region33
    $region32: #{mlp_phi_forward.1} parent=1 // pred_region
      %3415 = sst [smem:[#allocation10]] [#allocation9]
      %3416 = sst [smem:[#allocation11]] [#allocation8]
    $region33: #{mlp_phi_forward.1} parent=1 // pred_fallthru
      _
    %3418 = shalt.err (0)
    %s3420 = sshll.u32 [#allocation2], 4
    %s3421 = int_to_ptr.vmem [resolvable:$true] %s3420
    %3423 = dma.vmem_to_hbm [thread:$0]  %s3421, 3072, %s5, [#allocation3]
    %s3424 = scalar_lea.vmem %s4, 3
    %v3425 = vld [vmem:[%s3424] ss:$8 sm:$0x7]
    %s3426 = scalar_lea.vmem %s4, 7
    %v3427 = vld [vmem:[%s3426] ss:$8 sm:$0x7]
    %v3428 = vadd.f32 %v3221, %v3225
    %v3429 = vadd.f32 %v3428, %v3231
    %v3430 = vadd.f32 %v3429, %v3235
    %v3431 = vadd.f32 %v3430, %v3241
    %v3432 = vadd.f32 %v3431, %v3245
    %v3433 = vadd.f32 %v3432, %v3251
    %v3434 = vadd.f32 %v3433, %v3255
    %v3435 = vrot.slane %v3434, 4
    %v3436 = vadd.f32 %v3434, %v3435
    %v3437 = vrot.slane %v3436, 2
    %v3438 = vadd.f32 %v3436, %v3437
    %v3439 = vrot.slane %v3438, 1
    %v3440 = vadd.f32 %v3438, %v3439
    %v3441 = vadd.f32 %v3223, %v3227
    %v3442 = vadd.f32 %v3441, %v3233
    %v3443 = vadd.f32 %v3442, %v3237
    %v3444 = vadd.f32 %v3443, %v3243
    %v3445 = vadd.f32 %v3444, %v3247
    %v3446 = vadd.f32 %v3445, %v3253
    %v3447 = vadd.f32 %v3446, %v3257
    %v3448 = vrot.slane %v3447, 4
    %v3449 = vadd.f32 %v3447, %v3448
    %v3450 = vrot.slane %v3449, 2
    %v3451 = vadd.f32 %v3449, %v3450
    %v3452 = vrot.slane %v3451, 1
    %v3453 = vadd.f32 %v3451, %v3452
    %v3454 = vadd.f32 %v3359, %v3362
    %v3455 = vadd.f32 %v3454, %v3367
    %v3456 = vadd.f32 %v3455, %v3370
    %v3457 = vadd.f32 %v3456, %v3375
    %v3458 = vadd.f32 %v3457, %v3378
    %v3459 = vadd.f32 %v3458, %v3383
    %v3460 = vadd.f32 %v3459, %v3386
    %v3461 = vrot.slane %v3460, 4
    %v3462 = vadd.f32 %v3460, %v3461
    %v3463 = vrot.slane %v3462, 2
    %v3464 = vadd.f32 %v3462, %v3463
    %v3465 = vrot.slane %v3464, 1
    %v3466 = vadd.f32 %v3464, %v3465
    %v3467 = vmul.f32 %v3440, %v296
    %v3468 = vmul.f32 %v3453, %v296
    %v3469 = vmul.f32 %v3466, %v296
    %v3470 = vmul.f32 %v3221, %v3221
    %v3471 = vmul.f32 %v3223, %v3223
    %v3472 = vmul.f32 %v3359, %v3359
    %v3473 = vmul.f32 %v3225, %v3225
    %v3474 = vmul.f32 %v3227, %v3227
    %v3475 = vmul.f32 %v3362, %v3362
    %v3476 = vmul.f32 %v3231, %v3231
    %v3477 = vmul.f32 %v3233, %v3233
    %v3478 = vmul.f32 %v3367, %v3367
    %v3479 = vmul.f32 %v3235, %v3235
    %v3480 = vmul.f32 %v3237, %v3237
    %v3481 = vmul.f32 %v3370, %v3370
    %v3482 = vmul.f32 %v3241, %v3241
    %v3483 = vmul.f32 %v3243, %v3243
    %v3484 = vmul.f32 %v3375, %v3375
    %v3485 = vmul.f32 %v3245, %v3245
    %v3486 = vmul.f32 %v3247, %v3247
    %v3487 = vmul.f32 %v3378, %v3378
    %v3488 = vmul.f32 %v3251, %v3251
    %v3489 = vmul.f32 %v3253, %v3253
    %v3490 = vmul.f32 %v3383, %v3383
    %v3491 = vmul.f32 %v3255, %v3255
    %v3492 = vmul.f32 %v3257, %v3257
    %v3493 = vmul.f32 %v3386, %v3386
    %v3494 = vadd.f32 %v3470, %v3473
    %v3495 = vadd.f32 %v3494, %v3476
    %v3496 = vadd.f32 %v3495, %v3479
    %v3497 = vadd.f32 %v3496, %v3482
    %v3498 = vadd.f32 %v3497, %v3485
    %v3499 = vadd.f32 %v3498, %v3488
    %v3500 = vadd.f32 %v3499, %v3491
    %v3501 = vrot.slane %v3500, 4
    %v3502 = vadd.f32 %v3500, %v3501
    %v3503 = vrot.slane %v3502, 2
    %v3504 = vadd.f32 %v3502, %v3503
    %v3505 = vrot.slane %v3504, 1
    %v3506 = vadd.f32 %v3504, %v3505
    %v3507 = vadd.f32 %v3471, %v3474
    %v3508 = vadd.f32 %v3507, %v3477
    %v3509 = vadd.f32 %v3508, %v3480
    %v3510 = vadd.f32 %v3509, %v3483
    %v3511 = vadd.f32 %v3510, %v3486
    %v3512 = vadd.f32 %v3511, %v3489
    %v3513 = vadd.f32 %v3512, %v3492
    %v3514 = vrot.slane %v3513, 4
    %v3515 = vadd.f32 %v3513, %v3514
    %v3516 = vrot.slane %v3515, 2
    %v3517 = vadd.f32 %v3515, %v3516
    %v3518 = vrot.slane %v3517, 1
    %v3519 = vadd.f32 %v3517, %v3518
    %v3520 = vadd.f32 %v3472, %v3475
    %v3521 = vadd.f32 %v3520, %v3478
    %v3522 = vadd.f32 %v3521, %v3481
    %v3523 = vadd.f32 %v3522, %v3484
    %v3524 = vadd.f32 %v3523, %v3487
    %v3525 = vadd.f32 %v3524, %v3490
    %v3526 = vadd.f32 %v3525, %v3493
    %v3527 = vrot.slane %v3526, 4
    %v3528 = vadd.f32 %v3526, %v3527
    %v3529 = vrot.slane %v3528, 2
    %v3530 = vadd.f32 %v3528, %v3529
    %v3531 = vrot.slane %v3530, 1
    %v3532 = vadd.f32 %v3530, %v3531
    %v3533 = vmul.f32 %v3506, %v296
    %v3534 = vmul.f32 %v3519, %v296
    %v3535 = vmul.f32 %v3532, %v296
    %v3536 = vmul.f32 %v3467, %v3467
    %v3537 = vmul.f32 %v3468, %v3468
    %v3538 = vmul.f32 %v3469, %v3469
    %v3539 = vsub.f32 %v3533, %v3536
    %v3540 = vsub.f32 %v3534, %v3537
    %v3541 = vsub.f32 %v3535, %v3538
    %v3542 = vmax.f32 %v3539, 0.0
    %v3543 = vmax.f32 %v3540, 0.0
    %v3544 = vmax.f32 %v3541, 0.0
    %v3545 = vadd.f32 %v3542, 1e-05
    %v3546 = vadd.f32 %v3543, 1e-05
    %v3547 = vadd.f32 %v3544, 1e-05
    %v3548 = vrsqrt.pop %v3545
    %v3549 = vrsqrt.pop %v3546
    %v3550 = vrsqrt.pop %v3547
    %v3552 = vlaneseq
    %v3553 = vshrl.u32 %v3552, 7
    %v3554 = vsub.s32 0, %v3553
    %v3555 = vrot.slane %v3425, %v3554
    %v3556 = vlaneseq
    %v3557 = vshrl.u32 %v3556, 7
    %v3558 = vsub.s32 1, %v3557
    %v3559 = vrot.slane %v3425, %v3558
    %v3560 = vlaneseq
    %v3561 = vshrl.u32 %v3560, 7
    %v3562 = vsub.s32 2, %v3561
    %v3563 = vrot.slane %v3425, %v3562
    %v3567 = vmul.f32 %v3548, %v3555
    %v3568 = vmul.f32 %v3549, %v3559
    %v3569 = vmul.f32 %v3550, %v3563
    %v3570 = vmul.f32 %v3467, %v3567
    %v3571 = vmul.f32 %v3468, %v3568
    %v3572 = vmul.f32 %v3469, %v3569
    %v3576 = vcombine.low %v3570, %v3571
    %v3578 = vunpack.c.l.s4 1966171168
    %v3579 = vunpack.c.0.s8 %v3578
    %v3580 = vlaneseq
    %v3581 = vshrl.u32 %v3580, 7
    %v3582 = vsub.s32 %v3579, %v3581
    %v3583 = vrot.slane %v3576, %v3582
    %v3585 = vunpack.c.l.s4 1966171168
    %v3586 = vunpack.c.0.s8 %v3585
    %v3587 = vlaneseq
    %v3588 = vshrl.u32 %v3587, 7
    %v3589 = vsub.s32 %v3586, %v3588
    %v3590 = vrot.slane %v3572, %v3589
    %v3591 = vcombine.low %v3583, %v3590
    %v3593 = vunpack.c.l.s4 1966171168
    %v3594 = vunpack.c.0.s8 %v3593
    %v3595 = vlaneseq
    %v3596 = vshrl.u32 %v3595, 7
    %v3597 = vsub.s32 %v3594, %v3596
    %v3598 = vrot.slane %v3591, %v3597
    %v3600 = vsub.f32 %v3427, %v3598
    %v3601 = vlaneseq
    %v3602 = vshrl.u32 %v3601, 7
    %v3603 = vsub.s32 0, %v3602
    %v3604 = vrot.slane %v3567, %v3603
    %v3605 = vlaneseq
    %v3606 = vshrl.u32 %v3605, 7
    %v3607 = vsub.s32 0, %v3606
    %v3608 = vrot.slane %v3568, %v3607
    %v3609 = vlaneseq
    %v3610 = vshrl.u32 %v3609, 7
    %v3611 = vsub.s32 0, %v3610
    %v3612 = vrot.slane %v3569, %v3611
    %v3613 = vmul.f32 %v3221, %v3604
    %v3614 = vmul.f32 %v3223, %v3608
    %v3615 = vmul.f32 %v3359, %v3612
    %v3616 = vmul.f32 %v3225, %v3604
    %v3617 = vmul.f32 %v3227, %v3608
    %v3618 = vmul.f32 %v3362, %v3612
    %v3619 = vmul.f32 %v3231, %v3604
    %v3620 = vmul.f32 %v3233, %v3608
    %v3621 = vmul.f32 %v3367, %v3612
    %v3622 = vmul.f32 %v3235, %v3604
    %v3623 = vmul.f32 %v3237, %v3608
    %v3624 = vmul.f32 %v3370, %v3612
    %v3625 = vmul.f32 %v3241, %v3604
    %v3626 = vmul.f32 %v3243, %v3608
    %v3627 = vmul.f32 %v3375, %v3612
    %v3628 = vmul.f32 %v3245, %v3604
    %v3629 = vmul.f32 %v3247, %v3608
    %v3630 = vmul.f32 %v3378, %v3612
    %v3631 = vmul.f32 %v3251, %v3604
    %v3632 = vmul.f32 %v3253, %v3608
    %v3633 = vmul.f32 %v3383, %v3612
    %v3634 = vmul.f32 %v3255, %v3604
    %v3635 = vmul.f32 %v3257, %v3608
    %v3636 = vmul.f32 %v3386, %v3612
    %v3638 = vlaneseq
    %v3639 = vshrl.u32 %v3638, 7
    %v3640 = vsub.s32 0, %v3639
    %v3641 = vrot.slane %v3600, %v3640
    %v3642 = vlaneseq
    %v3643 = vshrl.u32 %v3642, 7
    %v3644 = vsub.s32 1, %v3643
    %v3645 = vrot.slane %v3600, %v3644
    %v3646 = vlaneseq
    %v3647 = vshrl.u32 %v3646, 7
    %v3648 = vsub.s32 2, %v3647
    %v3649 = vrot.slane %v3600, %v3648
    %v3653 = vadd.f32 %v3613, %v3641
    %v3654 = vadd.f32 %v3614, %v3645
    %v3655 = vadd.f32 %v3615, %v3649
    %v3656 = vadd.f32 %v3616, %v3641
    %v3657 = vadd.f32 %v3617, %v3645
    %v3658 = vadd.f32 %v3618, %v3649
    %v3659 = vadd.f32 %v3619, %v3641
    %v3660 = vadd.f32 %v3620, %v3645
    %v3661 = vadd.f32 %v3621, %v3649
    %v3662 = vadd.f32 %v3622, %v3641
    %v3663 = vadd.f32 %v3623, %v3645
    %v3664 = vadd.f32 %v3624, %v3649
    %v3665 = vadd.f32 %v3625, %v3641
    %v3666 = vadd.f32 %v3626, %v3645
    %v3667 = vadd.f32 %v3627, %v3649
    %v3668 = vadd.f32 %v3628, %v3641
    %v3669 = vadd.f32 %v3629, %v3645
    %v3670 = vadd.f32 %v3630, %v3649
    %v3671 = vadd.f32 %v3631, %v3641
    %v3672 = vadd.f32 %v3632, %v3645
    %v3673 = vadd.f32 %v3633, %v3649
    %v3674 = vadd.f32 %v3634, %v3641
    %v3675 = vadd.f32 %v3635, %v3645
    %v3676 = vadd.f32 %v3636, %v3649
    %v3677 = vmax.f32 %v3653, 0.0
    %v3678 = vmax.f32 %v3654, 0.0
    %v3679 = vmax.f32 %v3655, 0.0
    %v3680 = vmax.f32 %v3656, 0.0
    %v3681 = vmax.f32 %v3657, 0.0
    %v3682 = vmax.f32 %v3658, 0.0
    %v3683 = vmax.f32 %v3659, 0.0
    %v3684 = vmax.f32 %v3660, 0.0
    %v3685 = vmax.f32 %v3661, 0.0
    %v3686 = vmax.f32 %v3662, 0.0
    %v3687 = vmax.f32 %v3663, 0.0
    %v3688 = vmax.f32 %v3664, 0.0
    %v3689 = vmax.f32 %v3665, 0.0
    %v3690 = vmax.f32 %v3666, 0.0
    %v3691 = vmax.f32 %v3667, 0.0
    %v3692 = vmax.f32 %v3668, 0.0
    %v3693 = vmax.f32 %v3669, 0.0
    %v3694 = vmax.f32 %v3670, 0.0
    %v3695 = vmax.f32 %v3671, 0.0
    %v3696 = vmax.f32 %v3672, 0.0
    %v3697 = vmax.f32 %v3673, 0.0
    %v3698 = vmax.f32 %v3674, 0.0
    %v3699 = vmax.f32 %v3675, 0.0
    %v3700 = vmax.f32 %v3676, 0.0
    %v3701 = vpack.c.bf16 %v3680, %v3677
    %v3702 = vpack.c.bf16 %v3681, %v3678
    %v3703 = vpack.c.bf16 %v3682, %v3679
    %v3704 = vpack.c.bf16 %v3686, %v3683
    %v3705 = vpack.c.bf16 %v3687, %v3684
    %v3706 = vpack.c.bf16 %v3688, %v3685
    %v3707 = vpack.c.bf16 %v3692, %v3689
    %v3708 = vpack.c.bf16 %v3693, %v3690
    %v3709 = vpack.c.bf16 %v3694, %v3691
    %v3710 = vpack.c.bf16 %v3698, %v3695
    %v3711 = vpack.c.bf16 %v3699, %v3696
    %v3712 = vpack.c.bf16 %v3700, %v3697
    %v3713 = vld [vmem:[#allocation6] sm:$0xf]
    %v3714 = vld [vmem:[#allocation6 + $0x4] sm:$0xf]
    %v3715 = vld [vmem:[#allocation6 + $0x8] sm:$0xf]
    %v3716 = vld [vmem:[#allocation6 + $0xc] sm:$0xf]
    %v3717 = vld [vmem:[#allocation6 + $0x10] sm:$0xf]
    %v3718 = vld [vmem:[#allocation6 + $0x14] sm:$0xf]
    %v3719 = vld [vmem:[#allocation6 + $0x18] sm:$0xf]
    %v3720 = vld [vmem:[#allocation6 + $0x1c] sm:$0xf]
    %v3721 = vld [vmem:[#allocation6 + $0x20] sm:$0xf]
    %v3722 = vld [vmem:[#allocation6 + $0x24] sm:$0xf]
    %v3723 = vld [vmem:[#allocation6 + $0x28] sm:$0xf]
    %v3724 = vld [vmem:[#allocation6 + $0x2c] sm:$0xf]
    %v3725 = vld [vmem:[#allocation6 + $0x30] sm:$0xf]
    %v3726 = vld [vmem:[#allocation6 + $0x34] sm:$0xf]
    %v3727 = vld [vmem:[#allocation6 + $0x38] sm:$0xf]
    %v3728 = vld [vmem:[#allocation6 + $0x3c] sm:$0xf]
    %v3729 = vld [vmem:[#allocation6 + $0x40] sm:$0xf]
    %v3730 = vld [vmem:[#allocation6 + $0x44] sm:$0xf]
    %v3731 = vld [vmem:[#allocation6 + $0x48] sm:$0xf]
    %v3732 = vld [vmem:[#allocation6 + $0x4c] sm:$0xf]
    %v3733 = vld [vmem:[#allocation6 + $0x50] sm:$0xf]
    %v3734 = vld [vmem:[#allocation6 + $0x54] sm:$0xf]
    %v3735 = vld [vmem:[#allocation6 + $0x58] sm:$0xf]
    %v3736 = vld [vmem:[#allocation6 + $0x5c] sm:$0xf]
    %v3737 = vld [vmem:[#allocation6 + $0x60] sm:$0xf]
    %v3738 = vld [vmem:[#allocation6 + $0x64] sm:$0xf]
    %v3739 = vld [vmem:[#allocation6 + $0x68] sm:$0xf]
    %v3740 = vld [vmem:[#allocation6 + $0x6c] sm:$0xf]
    %v3741 = vld [vmem:[#allocation6 + $0x70] sm:$0xf]
    %v3742 = vld [vmem:[#allocation6 + $0x74] sm:$0xf]
    %v3743 = vld [vmem:[#allocation6 + $0x78] sm:$0xf]
    %v3744 = vld [vmem:[#allocation6 + $0x7c] sm:$0xf]
    %v3745 = vld [vmem:[#allocation6 + $0x80] sm:$0xf]
    %v3746 = vld [vmem:[#allocation6 + $0x84] sm:$0xf]
    %v3747 = vld [vmem:[#allocation6 + $0x88] sm:$0xf]
    %v3748 = vld [vmem:[#allocation6 + $0x8c] sm:$0xf]
    %v3749 = vld [vmem:[#allocation6 + $0x90] sm:$0xf]
    %v3750 = vld [vmem:[#allocation6 + $0x94] sm:$0xf]
    %v3751 = vld [vmem:[#allocation6 + $0x98] sm:$0xf]
    %v3752 = vld [vmem:[#allocation6 + $0x9c] sm:$0xf]
    %v3753 = vld [vmem:[#allocation6 + $0xa0] sm:$0xf]
    %v3754 = vld [vmem:[#allocation6 + $0xa4] sm:$0xf]
    %v3755 = vld [vmem:[#allocation6 + $0xa8] sm:$0xf]
    %v3756 = vld [vmem:[#allocation6 + $0xac] sm:$0xf]
    %v3757 = vld [vmem:[#allocation6 + $0xb0] sm:$0xf]
    %v3758 = vld [vmem:[#allocation6 + $0xb4] sm:$0xf]
    %v3759 = vld [vmem:[#allocation6 + $0xb8] sm:$0xf]
    %v3760 = vld [vmem:[#allocation6 + $0xbc] sm:$0xf]
    %v3761 = vld [vmem:[%s4 + $0x18] ss:$0 sm:$0xff]
    %v3810 = vunpack.c.l.b16 %v3713
    %v3811 = vunpack.c.l.b16 %v3714
    %v3812 = vunpack.c.l.b16 %v3715
    %v3813 = vunpack.c.l.b16 %v3716
    %v3814 = vunpack.c.l.b16 %v3717
    %v3815 = vunpack.c.l.b16 %v3718
    %v3816 = vunpack.c.l.b16 %v3719
    %v3817 = vunpack.c.l.b16 %v3720
    %v3818 = vunpack.c.l.b16 %v3721
    %v3819 = vunpack.c.l.b16 %v3722
    %v3820 = vunpack.c.l.b16 %v3723
    %v3821 = vunpack.c.l.b16 %v3724
    %v3822 = vunpack.c.l.b16 %v3725
    %v3823 = vunpack.c.l.b16 %v3726
    %v3824 = vunpack.c.l.b16 %v3727
    %v3825 = vunpack.c.l.b16 %v3728
    %v3826 = vunpack.c.l.b16 %v3729
    %v3827 = vunpack.c.l.b16 %v3730
    %v3828 = vunpack.c.l.b16 %v3731
    %v3829 = vunpack.c.l.b16 %v3732
    %v3830 = vunpack.c.l.b16 %v3733
    %v3831 = vunpack.c.l.b16 %v3734
    %v3832 = vunpack.c.l.b16 %v3735
    %v3833 = vunpack.c.l.b16 %v3736
    %v3834 = vunpack.c.l.b16 %v3737
    %v3835 = vunpack.c.l.b16 %v3738
    %v3836 = vunpack.c.l.b16 %v3739
    %v3837 = vunpack.c.l.b16 %v3740
    %v3838 = vunpack.c.l.b16 %v3741
    %v3839 = vunpack.c.l.b16 %v3742
    %v3840 = vunpack.c.l.b16 %v3743
    %v3841 = vunpack.c.l.b16 %v3744
    %v3842 = vunpack.c.l.b16 %v3745
    %v3843 = vunpack.c.l.b16 %v3746
    %v3844 = vunpack.c.l.b16 %v3747
    %v3845 = vunpack.c.l.b16 %v3748
    %v3846 = vunpack.c.l.b16 %v3749
    %v3847 = vunpack.c.l.b16 %v3750
    %v3848 = vunpack.c.l.b16 %v3751
    %v3849 = vunpack.c.l.b16 %v3752
    %v3850 = vunpack.c.l.b16 %v3753
    %v3851 = vunpack.c.l.b16 %v3754
    %v3852 = vunpack.c.l.b16 %v3755
    %v3853 = vunpack.c.l.b16 %v3756
    %v3854 = vunpack.c.l.b16 %v3757
    %v3855 = vunpack.c.l.b16 %v3758
    %v3856 = vunpack.c.l.b16 %v3759
    %v3857 = vunpack.c.l.b16 %v3760
    %v3858 = vpack.c.b16 %v3811, %v3810
    %v3859 = vpack.c.b16 %v3813, %v3812
    %v3860 = vpack.c.b16 %v3815, %v3814
    %v3861 = vpack.c.b16 %v3817, %v3816
    %v3862 = vpack.c.b16 %v3819, %v3818
    %v3863 = vpack.c.b16 %v3821, %v3820
    %v3864 = vpack.c.b16 %v3823, %v3822
    %v3865 = vpack.c.b16 %v3825, %v3824
    %v3866 = vpack.c.b16 %v3827, %v3826
    %v3867 = vpack.c.b16 %v3829, %v3828
    %v3868 = vpack.c.b16 %v3831, %v3830
    %v3869 = vpack.c.b16 %v3833, %v3832
    %v3870 = vpack.c.b16 %v3835, %v3834
    %v3871 = vpack.c.b16 %v3837, %v3836
    %v3872 = vpack.c.b16 %v3839, %v3838
    %v3873 = vpack.c.b16 %v3841, %v3840
    %v3874 = vpack.c.b16 %v3843, %v3842
    %v3875 = vpack.c.b16 %v3845, %v3844
    %v3876 = vpack.c.b16 %v3847, %v3846
    %v3877 = vpack.c.b16 %v3849, %v3848
    %v3878 = vpack.c.b16 %v3851, %v3850
    %v3879 = vpack.c.b16 %v3853, %v3852
    %v3880 = vpack.c.b16 %v3855, %v3854
    %v3881 = vpack.c.b16 %v3857, %v3856
    %3906 = vmatprep.subr.bf16.mxu0 0
    %3907 = vmatpush1.bf16.msra.mxu0 %v3858
    %3908 = vmatprep.subr.bf16.mxu0 0
    %3909 = vmatpush1.bf16.msra.mxu0 %v3859
    %3910 = vmatprep.subr.bf16.mxu0 0
    %3911 = vmatpush1.bf16.msra.mxu0 %v3860
    %3912 = vmatprep.subr.bf16.mxu0 0
    %3913 = vmatpush1.bf16.msra.mxu0 %v3861
    %3914 = vmatprep.subr.bf16.mxu0 0
    %3915 = vmatpush1.bf16.msra.mxu0 %v3862
    %3916 = vmatprep.subr.bf16.mxu0 0
    %3917 = vmatpush1.bf16.msra.mxu0 %v3863
    %3918 = vmatprep.subr.bf16.mxu0 0
    %3919 = vmatpush1.bf16.msra.mxu0 %v3864
    %3920 = vmatprep.subr.bf16.mxu0 0
    %3921 = vmatpush1.bf16.msra.mxu0 %v3865
    %3922 = vmatprep.subr.bf16.mxu0 0
    %3923 = vmatpush1.bf16.msra.mxu0 %v3866
    %3924 = vmatprep.subr.bf16.mxu0 0
    %3925 = vmatpush1.bf16.msra.mxu0 %v3867
    %3926 = vmatprep.subr.bf16.mxu0 0
    %3927 = vmatpush1.bf16.msra.mxu0 %v3868
    %3928 = vmatprep.subr.bf16.mxu0 0
    %3929 = vmatpush1.bf16.msra.mxu0 %v3869
    %3930 = vmatprep.subr.bf16.mxu0 0
    %3931 = vmatpush1.bf16.msra.mxu0 %v3870
    %3932 = vmatprep.subr.bf16.mxu0 0
    %3933 = vmatpush1.bf16.msra.mxu0 %v3871
    %3934 = vmatprep.subr.bf16.mxu0 0
    %3935 = vmatpush1.bf16.msra.mxu0 %v3872
    %3936 = vmatprep.subr.bf16.mxu0 0
    %3937 = vmatpush1.bf16.msra.mxu0 %v3873
    %3938 = vmatprep.mubr.bf16.mxu0 %v3702
    %3939 = vmatmul.mubr.bf16.gmra.mrb[0].mxu0 %v3701
    %v3940 = vpop.f32.mrb[0].mxu0
    %v3941 = vadd.f32 %v3761, %v3940
    %v3942 = vpop.f32.mrb[0].mxu0
    %v3943 = vpop.f32.mrb[0].mxu0
    %v3944 = vadd.f32 %v3761, %v3943
    %v3945 = vpop.f32.mrb[0].mxu0
    %3946 = vmatprep.mubr.bf16.mxu0 %v3705
    %3947 = vmatmul.mubr.bf16.gmra.mrb[0].mxu0 %v3704
    %v3948 = vpop.f32.mrb[0].mxu0
    %v3949 = vadd.f32 %v3761, %v3948
    %v3950 = vpop.f32.mrb[0].mxu0
    %v3951 = vpop.f32.mrb[0].mxu0
    %v3952 = vadd.f32 %v3761, %v3951
    %v3953 = vpop.f32.mrb[0].mxu0
    %3954 = vmatprep.mubr.bf16.mxu0 %v3708
    %3955 = vmatmul.mubr.bf16.gmra.mrb[0].mxu0 %v3707
    %v3956 = vpop.f32.mrb[0].mxu0
    %v3957 = vadd.f32 %v3761, %v3956
    %v3958 = vpop.f32.mrb[0].mxu0
    %v3959 = vpop.f32.mrb[0].mxu0
    %v3960 = vadd.f32 %v3761, %v3959
    %v3961 = vpop.f32.mrb[0].mxu0
    %3962 = vmatprep.mubr.bf16.mxu0 %v3711
    %3963 = vmatmul.mubr.bf16.gmra.mrb[0].mxu0 %v3710
    %v3964 = vpop.f32.mrb[0].mxu0
    %v3965 = vadd.f32 %v3761, %v3964
    %v3966 = vpop.f32.mrb[0].mxu0
    %v3967 = vpop.f32.mrb[0].mxu0
    %v3968 = vadd.f32 %v3761, %v3967
    %v3969 = vpop.f32.mrb[0].mxu0
    %3970 = vdwg.mxu0
    %3971 = vmatprep.subr.bf16.mxu0 0
    %3972 = vmatpush1.bf16.msra.mxu0 %v3874
    %3973 = vmatprep.subr.bf16.mxu0 0
    %3974 = vmatpush1.bf16.msra.mxu0 %v3875
    %3975 = vmatprep.subr.bf16.mxu0 0
    %3976 = vmatpush1.bf16.msra.mxu0 %v3876
    %3977 = vmatprep.subr.bf16.mxu0 0
    %3978 = vmatpush1.bf16.msra.mxu0 %v3877
    %3979 = vmatprep.subr.bf16.mxu0 0
    %3980 = vmatpush1.bf16.msra.mxu0 %v3878
    %3981 = vmatprep.subr.bf16.mxu0 0
    %3982 = vmatpush1.bf16.msra.mxu0 %v3879
    %3983 = vmatprep.subr.bf16.mxu0 0
    %3984 = vmatpush1.bf16.msra.mxu0 %v3880
    %3985 = vmatprep.subr.bf16.mxu0 0
    %3986 = vmatpush1.bf16.msra.mxu0 %v3881
    %3987 = vmatprep.subr.bf16.mxu0 0
    %3988 = vmatpush1.bf16.msra.mxu0 0
    %3989 = vmatprep.subr.bf16.mxu0 0
    %3990 = vmatpush1.bf16.msra.mxu0 0
    %3991 = vmatprep.subr.bf16.mxu0 0
    %3992 = vmatpush1.bf16.msra.mxu0 0
    %3993 = vmatprep.subr.bf16.mxu0 0
    %3994 = vmatpush1.bf16.msra.mxu0 0
    %3995 = vmatprep.subr.bf16.mxu0 0
    %3996 = vmatpush1.bf16.msra.mxu0 0
    %3997 = vmatprep.subr.bf16.mxu0 0
    %3998 = vmatpush1.bf16.msra.mxu0 0
    %3999 = vmatprep.subr.bf16.mxu0 0
    %4000 = vmatpush1.bf16.msra.mxu0 0
    %4001 = vmatprep.subr.bf16.mxu0 0
    %4002 = vmatpush1.bf16.msra.mxu0 0
    %4003 = vmatprep.mubr.bf16.mxu0 0
    %4004 = vmatmul.mubr.bf16.gmra.mrb[0].mxu0 %v3703
    %v4005 = vpop.f32.mrb[0].mxu0
    %v4006 = vadd.f32 %v3941, %v4005
    %v4007 = vpop.f32.mrb[0].mxu0
    %v4008 = vpop.f32.mrb[0].mxu0
    %v4009 = vadd.f32 %v3944, %v4008
    %v4010 = vpop.f32.mrb[0].mxu0
    %4011 = vmatprep.mubr.bf16.mxu0 0
    %4012 = vmatmul.mubr.bf16.gmra.mrb[0].mxu0 %v3706
    %v4013 = vpop.f32.mrb[0].mxu0
    %v4014 = vadd.f32 %v3949, %v4013
    %v4015 = vpop.f32.mrb[0].mxu0
    %v4016 = vpop.f32.mrb[0].mxu0
    %v4017 = vadd.f32 %v3952, %v4016
    %v4018 = vpop.f32.mrb[0].mxu0
    %4019 = vmatprep.mubr.bf16.mxu0 0
    %4020 = vmatmul.mubr.bf16.gmra.mrb[0].mxu0 %v3709
    %v4021 = vpop.f32.mrb[0].mxu0
    %v4022 = vadd.f32 %v3957, %v4021
    %v4023 = vpop.f32.mrb[0].mxu0
    %v4024 = vpop.f32.mrb[0].mxu0
    %v4025 = vadd.f32 %v3960, %v4024
    %v4026 = vpop.f32.mrb[0].mxu0
    %4027 = vmatprep.mubr.bf16.mxu0 0
    %4028 = vmatmul.mubr.bf16.gmra.mrb[0].mxu0 %v3712
    %v4029 = vpop.f32.mrb[0].mxu0
    %v4030 = vadd.f32 %v3965, %v4029
    %v4031 = vpop.f32.mrb[0].mxu0
    %v4032 = vpop.f32.mrb[0].mxu0
    %v4033 = vadd.f32 %v3968, %v4032
    %v4034 = vpop.f32.mrb[0].mxu0
    %4035 = vdwg.mxu0
    %4036 = vst [vmem:[%s6] sm:$0xff] %v4006
    %4037 = vst [vmem:[%s6 + $0x8] sm:$0xff] %v4009
    %4038 = vst [vmem:[%s6 + $0x10] sm:$0xff] %v4014
    %4039 = vst [vmem:[%s6 + $0x18] sm:$0xff] %v4017
    %4040 = vst [vmem:[%s6 + $0x20] sm:$0xff] %v4022
    %4041 = vst [vmem:[%s6 + $0x28] sm:$0xff] %v4025
    %4042 = vst [vmem:[%s6 + $0x30] sm:$0xff] %v4030
    %4043 = vst [vmem:[%s6 + $0x38] sm:$0xff] %v4033
    %s4044 = smul.u32 8, 8
    %s4045 = smul.u32 %s4044, 3
    %s4046 = sshll.u32 %s4045, 4
    %4047 = dma.done [#allocation3], %s4046
    // Predicated region
    $region34: #{mlp_phi_forward.1} parent=1 // pred_check
      _
    $region35: #{mlp_phi_forward.1} parent=1 // pred_check_branch
      %4049 = sbr.rel (0) target = $region37
    $region36: #{mlp_phi_forward.1} parent=1 // pred_region
      _
    $region37: #{mlp_phi_forward.1} parent=1 // pred_fallthru
      _
    // Predicated region
    $region38: #{mlp_phi_forward.1} parent=1 // pred_check
      _
    $region39: #{mlp_phi_forward.1} parent=1 // pred_check_branch
      %4051 = sbr.rel (0) target = $region41
    $region40: #{mlp_phi_forward.1} parent=1 // pred_region
      _
    $region41: #{mlp_phi_forward.1} parent=1 // pred_fallthru
      _
    %4052 = vsyncpa [#allocation5], 1
    %4053 = vsyncpa [#allocation7], 1
  %4054 = vsyncmov [#allocation3]
  %s4055 = vpop.sfrf %4054
  %p4056 = scmp.eq.s32.totalorder %s4055, 0
  %p4057 = pneg %p4056
  %4059 = shalt.err (%p4057)

</llo_original>
